<compile_context>
chip_gen: v6e
topology: v6e:2x2x1
jax: 0.10.0
libtpu: 0.0.40
codegen_flags: <defaults>
</compile_context>

<pallas_src>
import numpy as np
import jax
import jax.numpy as jnp
from jax import lax
from jax.experimental import pallas as pl
from jax.experimental.pallas import tpu as pltpu

BN_EPS = 1e-5

# Architecture constants from Extractor.__init__
_C1, _C2, _C3 = 16, 32, 32        # output channels of Seq1 / Seq2 / Seq3
_K1, _K2, _K3 = 5, 3, 3           # kernel sizes
_P1, _P2, _P3 = 2, 1, 1           # paddings


def _choose_layout(B, H):
    """Pick (images stacked per grid step, number of grid steps)."""
    hp = H + 2 * _P1
    if B % 2 == 0 and (B // 2) * hp >= 128:
        n_img = B // 2            # 2 steps -> v7x megacore gets one per TC
    else:
        n_img = B                 # collapse the grid entirely (v5e/v6e, tiny B)
    cap = max(1, 256 // hp)       # bound M (~256 rows) to limit vreg/scratch use
    while n_img > cap or B % n_img != 0:
        n_img -= 1
    return n_img, B // n_img


# ----------------------------------------------------------------------------
# Fused Pallas kernel
# ----------------------------------------------------------------------------
def _make_fused_kernel(H, W, C, n_img):
    bf16 = jnp.bfloat16
    f32 = jnp.float32
    Hp1, Hp2, Hp3 = H + 2 * _P1, H + 2 * _P2, H + 2 * _P3

    def kernel(x_ref, e1_ref, e2_ref, e3_ref,
               w1_ref, b1_ref, w2_ref, b2_ref, w3_ref, b3_ref,
               w4_ref, b4_ref,
               o_ref, a1, a2, a3):

        def zero_halos(a_ref, p, hp, ncols):
            # Only the 2p halo rows per image; interiors are overwritten below.
            z = jnp.zeros((p, ncols), bf16)
            for i in range(n_img):
                base = i * hp
                a_ref[base:base + p, :] = z
                a_ref[base + p + H:base + hp, :] = z

        zero_halos(a1, _P1, Hp1, W * C)
        zero_halos(a2, _P2, Hp2, W * _C1)
        zero_halos(a3, _P3, Hp3, W * _C2)

        def conv_stage(a_ref, w_ref, k, p, hp, bias, relu):
            # Shifted-window Toeplitz conv: sum over the k row offsets of one
            # (M, W*Cin) @ (W*Cin, W*Cout) MXU matmul over the whole stacked
            # buffer (BN scale already folded into w_ref).  Valid rows for
            # image i live at [i*hp, i*hp + H); the trailing 2p rows per image
            # are garbage and are never read back.
            r_out = n_img * hp - 2 * p
            acc = None
            for ky in range(k):
                d = jnp.dot(a_ref[ky:ky + r_out, :], w_ref[ky],
                            preferred_element_type=f32)
                acc = d if acc is None else acc + d
            out = acc + bias
            if relu:
                out = jnp.maximum(out, 0.0)
            return out

        # stage 1: 5x5 conv, C -> 16  (time embedding 1 added to the input)
        for i in range(n_img):
            a1[i * Hp1 + _P1:i * Hp1 + _P1 + H, :] = (
                x_ref[i] + e1_ref[i]).astype(bf16)
        h1 = conv_stage(a1, w1_ref, _K1, _P1, Hp1, b1_ref[...], True)

        # stage 2: 3x3 conv, 16 -> 32 (time embedding 2)
        for i in range(n_img):
            a2[i * Hp2 + _P2:i * Hp2 + _P2 + H, :] = (
                h1[i * Hp1:i * Hp1 + H, :] + e2_ref[i]).astype(bf16)
        h2 = conv_stage(a2, w2_ref, _K2, _P2, Hp2, b2_ref[...], True)

        # stage 3: 3x3 conv, 32 -> 32 (time embedding 3)
        for i in range(n_img):
            a3[i * Hp3 + _P3:i * Hp3 + _P3 + H, :] = (
                h2[i * Hp2:i * Hp2 + H, :] + e3_ref[i]).astype(bf16)
        h3 = conv_stage(a3, w3_ref, _K3, _P3, Hp3, b3_ref[...], True)

        # stage 4: 1x1 conv, 32 -> C (block-diagonal Toeplitz weight, no ReLU)
        h4 = jnp.dot(h3.astype(bf16), w4_ref[...],
                     preferred_element_type=f32) + b4_ref[...]
        for i in range(n_img):
            o_ref[i] = h4[i * Hp3:i * Hp3 + H, :]
        # NOTE: output last dim is W*C (=64 here) < 128 lanes, so these stores
        # are masked; packing images along the lane axis would need a
        # cross-lane relayout that costs more than it saves at this size.

    return kernel


def _fused_forward(x2d, e1r, e2r, e3r, pk, H, W, C):
    B = x2d.shape[0]
    n_img, n_steps = _choose_layout(B, H)
    kern = _make_fused_kernel(H, W, C, n_img)
    Hp1, Hp2, Hp3 = H + 2 * _P1, H + 2 * _P2, H + 2 * _P3

    def const_spec(shape):
        return pl.BlockSpec(shape, lambda s, _n=len(shape): (0,) * _n)

    def batched(ncols):
        return pl.BlockSpec((n_img, H, ncols), lambda s: (s, 0, 0))

    in_specs = [
        batched(W * C), batched(W * C), batched(W * _C1), batched(W * _C2),
        const_spec((_K1, W * C, W * _C1)),   const_spec((1, W * _C1)),
        const_spec((_K2, W * _C1, W * _C2)), const_spec((1, W * _C2)),
        const_spec((_K3, W * _C2, W * _C3)), const_spec((1, W * _C3)),
        const_spec((W * _C3, W * C)),        const_spec((1, W * C)),
    ]

    args = (x2d, e1r, e2r, e3r,
            pk["w1t"], pk["c1"], pk["w2t"], pk["c2"],
            pk["w3t"], pk["c3"], pk["w4t"], pk["c4"])

    # Actually-issued MXU FLOPs (Toeplitz matmuls do ~W x the dense-conv MACs).
    r1 = n_img * Hp1 - 2 * _P1
    r2 = n_img * Hp2 - 2 * _P2
    r3 = n_img * Hp3 - 2 * _P3
    flops = 2 * n_steps * (
        _K1 * r1 * (W * C) * (W * _C1)
        + _K2 * r2 * (W * _C1) * (W * _C2)
        + _K3 * r3 * (W * _C2) * (W * _C3)
        + r3 * (W * _C3) * (W * C))
    bytes_accessed = int(sum(int(np.prod(a.shape)) * a.dtype.itemsize
                             for a in args) + B * H * W * C * 4)

    return pl.pallas_call(
        kern,
        out_shape=jax.ShapeDtypeStruct((B, H, W * C), jnp.float32),
        grid_spec=pltpu.PrefetchScalarGridSpec(
            num_scalar_prefetch=0,
            grid=(n_steps,),
            in_specs=in_specs,
            out_specs=pl.BlockSpec((n_img, H, W * C), lambda s: (s, 0, 0)),
            scratch_shapes=[
                pltpu.VMEM((n_img * Hp1, W * C), jnp.bfloat16),
                pltpu.VMEM((n_img * Hp2, W * _C1), jnp.bfloat16),
                pltpu.VMEM((n_img * Hp3, W * _C2), jnp.bfloat16),
            ]),
        compiler_params=pltpu.CompilerParams(
            dimension_semantics=("parallel",),
            vmem_limit_bytes=32 * 1024 * 1024),
        cost_estimate=pl.CostEstimate(
            flops=int(flops), transcendentals=0,
            bytes_accessed=bytes_accessed),
    )(*args)


# ----------------------------------------------------------------------------
# One-time parameter packing (host side, outside the hot path)
# ----------------------------------------------------------------------------
def prepare_params(params, channels, neighbor):
    """Fold eval-mode BatchNorm into the conv weights (scale) and a per-channel
    bias; build per-ky Toeplitz conv weights (W*Cin, W*Cout) in bf16; tile the
    biases to the lane-dense (1, W*Cout) output layout."""
    W = neighbor

    def fold(g, be, m, v, b):
        g, be, m, v, b = (np.asarray(a, np.float64) for a in (g, be, m, v, b))
        scale = g / np.sqrt(v + BN_EPS)
        bias = (b - m) * scale + be
        return scale.astype(np.float32), bias.astype(np.float32)

    def toeplitz(w, p, scale=None):
        w = np.asarray(w, np.float32)                 # (k, k, Cin, Cout) HWIO
        if scale is not None:                         # fold BN scale offline
            w = w * np.asarray(scale, np.float32)[None, None, None, :]
        k, _, cin, cout = w.shape
        t = np.zeros((k, W * cin, W * cout), np.float32)
        for wo in range(W):
            for kx in range(k):
                wi = wo + kx - p
                if 0 <= wi < W:
                    t[:, wi * cin:(wi + 1) * cin,
                      wo * cout:(wo + 1) * cout] = w[:, kx]
        return t

    def rep(v):
        return jnp.asarray(np.tile(np.asarray(v, np.float32), W)[None, :])

    s1, c1 = fold(params["g1"], params["be1"], params["m1"], params["v1"], params["b1"])
    s2, c2 = fold(params["g2"], params["be2"], params["m2"], params["v2"], params["b2"])
    s3, c3 = fold(params["g3"], params["be3"], params["m3"], params["v3"], params["b3"])

    return {
        "emb1": jnp.asarray(params["emb1"]),
        "emb2": jnp.asarray(params["emb2"]),
        "emb3": jnp.asarray(params["emb3"]),
        "w1t": jnp.asarray(toeplitz(params["w1"], _P1, s1), jnp.bfloat16),
        "w2t": jnp.asarray(toeplitz(params["w2"], _P2, s2), jnp.bfloat16),
        "w3t": jnp.asarray(toeplitz(params["w3"], _P3, s3), jnp.bfloat16),
        "w4t": jnp.asarray(toeplitz(params["w4"], 0)[0], jnp.bfloat16),
        "c1": rep(c1), "c2": rep(c2), "c3": rep(c3),
        "c4": rep(params["b4"]),
    }


# ----------------------------------------------------------------------------
# Full forward (Pallas) and pure-JAX reference
# ----------------------------------------------------------------------------
@jax.jit
def extractor_forward(packed, x0_nchw, t):
    B, C, H, W = x0_nchw.shape
    x = jnp.transpose(x0_nchw, (0, 2, 3, 1)).astype(jnp.float32)    # NCHW->NHWC
    x2d = x.reshape(B, H, W * C)

    def expand(table, cin):
        e = table[t].reshape(B, H, W, 1)
        return jnp.broadcast_to(e, (B, H, W, cin)).reshape(B, H, W * cin) \
                  .astype(jnp.float32)

    e1r = expand(packed["emb1"], C)
    e2r = expand(packed["emb2"], _C1)
    e3r = expand(packed["emb3"], _C2)

    out2d = _fused_forward(x2d, e1r, e2r, e3r, packed, H, W, C)
    out = jnp.transpose(out2d.reshape(B, H, W, C), (0, 3, 1, 2))    # ->NCHW
    return out, out


def ref_forward(params, x0_nchw, t):
    """Pure-JAX (XLA conv) reference, eval-mode BatchNorm."""
    x = jnp.transpose(x0_nchw, (0, 2, 3, 1)).astype(jnp.float32)
    B, H, W, _ = x.shape

    def conv(x, w, b):
        y = lax.conv_general_dilated(
            x, w, window_strides=(1, 1), padding="SAME",
            dimension_numbers=("NHWC", "HWIO", "NHWC"))
        return y + b

    def bn_relu(y, g, be, m, v):
        return jnp.maximum((y - m) / jnp.sqrt(v + BN_EPS) * g + be, 0.0)

    x1 = x + params["emb1"][t].reshape(B, H, W, 1)
    x2 = bn_relu(conv(x1, params["w1"], params["b1"]),
                 params["g1"], params["be1"], params["m1"], params["v1"])
    x3 = x2 + params["emb2"][t].reshape(B, H, W, 1)
    x4 = bn_relu(conv(x3, params["w2"], params["b2"]),
                 params["g2"], params["be2"], params["m2"], params["v2"])
    x5 = x4 + params["emb3"][t].reshape(B, H, W, 1)
    x6 = bn_relu(conv(x5, params["w3"], params["b3"]),
                 params["g3"], params["be3"], params["m3"], params["v3"])
    x7 = conv(x6, params["w4"], params["b4"])
    out = jnp.transpose(x7, (0, 3, 1, 2))
    return out, out


# ----------------------------------------------------------------------------
# Deterministic parameter initialization (shapes per Extractor.__init__)
# ----------------------------------------------------------------------------
def init_params(key, channels, T, neighbor):
    ks = jax.random.split(key, 20)
    nrm = lambda k, s, sc=1.0: sc * jax.random.normal(k, s, jnp.float32)
    nn = neighbor * neighbor
    p = {
        "emb1": nrm(ks[0], (T, nn)),
        "emb2": nrm(ks[1], (T, nn)),
        "emb3": nrm(ks[2], (T, nn)),
        # conv weights in HWIO layout (k, k, Cin, Cout)
        "w1": nrm(ks[3], (5, 5, channels, 16), 0.1), "b1": nrm(ks[4], (16,), 0.1),
        "w2": nrm(ks[5], (3, 3, 16, 32), 0.1),       "b2": nrm(ks[6], (32,), 0.1),
        "w3": nrm(ks[7], (3, 3, 32, 32), 0.1),       "b3": nrm(ks[8], (32,), 0.1),
        "w4": nrm(ks[9], (1, 1, 32, channels), 0.1), "b4": nrm(ks[10], (channels,), 0.1),
        # BatchNorm params (gamma/beta perturbed so the fold is exercised;
        # running stats at PyTorch defaults mean=0, var=1)
        "g1": 1.0 + nrm(ks[11], (16,), 0.1), "be1": nrm(ks[12], (16,), 0.1),
        "m1": jnp.zeros((16,)), "v1": jnp.ones((16,)),
        "g2": 1.0 + nrm(ks[13], (32,), 0.1), "be2": nrm(ks[14], (32,), 0.1),
        "m2": jnp.zeros((32,)), "v2": jnp.ones((32,)),
        "g3": 1.0 + nrm(ks[15], (32,), 0.1), "be3": nrm(ks[16], (32,), 0.1),
        "m3": jnp.zeros((32,)), "v3": jnp.ones((32,)),
    }
    return p


if __name__ == "__main__":
    channels, T, neighbor, batch = 4, 10, 16, 2

    key = jax.random.PRNGKey(0)
    kp, kx = jax.random.split(key)
    params = init_params(kp, channels, T, neighbor)
    packed = prepare_params(params, channels, neighbor)   # one-time weight packing

    x0 = jax.random.normal(kx, (batch, channels, neighbor, neighbor), jnp.float32)
    t = jnp.array([3, 7], dtype=jnp.int32)

    out_pallas, out_pallas_dup = extractor_forward(packed, x0, t)
    out_pallas = jax.block_until_ready(out_pallas)

    # determinism across separate calls (replaces the previously-vacuous check)
    out_again, _ = extractor_forward(packed, x0, t)
    out_again = jax.block_until_ready(out_again)

    out_ref, _ = ref_forward(params, x0, t)
    assert out_pallas.shape == (batch, channels, neighbor, neighbor)
    # tolerance accounts for bf16 MXU operands (f32 accumulation)
    assert np.allclose(np.asarray(out_pallas), np.asarray(out_ref),
                       rtol=3e-2, atol=3e-2), "mismatch vs JAX reference"
    assert np.array_equal(np.asarray(out_pallas), np.asarray(out_again)), \
        "non-deterministic output across calls"

    print("KERNEL_OK")
</pallas_src>

<mosaic_0001>
module attributes {stable_mosaic.version = 11 : i64} {
  func.func @kernel(%arg0: i32, %arg1: memref<2x16x64xf32, #tpu.memory_space<vmem>>, %arg2: memref<2x16x64xf32, #tpu.memory_space<vmem>>, %arg3: memref<2x16x256xf32, #tpu.memory_space<vmem>>, %arg4: memref<2x16x512xf32, #tpu.memory_space<vmem>>, %arg5: memref<5x64x256xbf16, #tpu.memory_space<vmem>>, %arg6: memref<1x256xf32, #tpu.memory_space<vmem>>, %arg7: memref<3x256x512xbf16, #tpu.memory_space<vmem>>, %arg8: memref<1x512xf32, #tpu.memory_space<vmem>>, %arg9: memref<3x512x512xbf16, #tpu.memory_space<vmem>>, %arg10: memref<1x512xf32, #tpu.memory_space<vmem>>, %arg11: memref<512x64xbf16, #tpu.memory_space<vmem>>, %arg12: memref<1x64xf32, #tpu.memory_space<vmem>>, %arg13: memref<2x16x64xf32, #tpu.memory_space<vmem>>, %arg14: memref<40x64xbf16, #tpu.memory_space<vmem>>, %arg15: memref<36x256xbf16, #tpu.memory_space<vmem>>, %arg16: memref<36x512xbf16, #tpu.memory_space<vmem>>) attributes {dimension_semantics = [#tpu.dimension_semantics<parallel>], iteration_bounds = array<i64: 1>, scalar_prefetch = 0 : i64, scratch_operands = 3 : i64, tpu.core_type = #tpu.core_type<tc>, window_params = [{transform_indices = @transform_0, window_bounds = array<i64: 2, 16, 64>}, {transform_indices = @transform_1, window_bounds = array<i64: 2, 16, 64>}, {transform_indices = @transform_2, window_bounds = array<i64: 2, 16, 256>}, {transform_indices = @transform_3, window_bounds = array<i64: 2, 16, 512>}, {pipeline_mode = #tpu.pipeline_mode<synchronous>, transform_indices = @transform_4, window_bounds = array<i64: 5, 64, 256>}, {pipeline_mode = #tpu.pipeline_mode<synchronous>, transform_indices = @transform_5, window_bounds = array<i64: 1, 256>}, {pipeline_mode = #tpu.pipeline_mode<synchronous>, transform_indices = @transform_6, window_bounds = array<i64: 3, 256, 512>}, {pipeline_mode = #tpu.pipeline_mode<synchronous>, transform_indices = @transform_7, window_bounds = array<i64: 1, 512>}, {pipeline_mode = #tpu.pipeline_mode<synchronous>, transform_indices = @transform_8, window_bounds = array<i64: 3, 512, 512>}, {pipeline_mode = #tpu.pipeline_mode<synchronous>, transform_indices = @transform_9, window_bounds = array<i64: 1, 512>}, {pipeline_mode = #tpu.pipeline_mode<synchronous>, transform_indices = @transform_10, window_bounds = array<i64: 512, 64>}, {pipeline_mode = #tpu.pipeline_mode<synchronous>, transform_indices = @transform_11, window_bounds = array<i64: 1, 64>}, {transform_indices = @transform_12, window_bounds = array<i64: 2, 16, 64>}]} {
    %cst = arith.constant 0.000000e+00 : bf16
    %0 = vector.broadcast %cst : bf16 to vector<2x64xbf16>
    %c0 = arith.constant 0 : index
    %c0_0 = arith.constant 0 : index
    %1 = vector.load %arg14[%c0, %c0_0] : memref<40x64xbf16, #tpu.memory_space<vmem>>, vector<2x64xbf16>
    tpu.vector_store %arg14[%c0, %c0_0], %0 {strides = array<i32>} : memref<40x64xbf16, #tpu.memory_space<vmem>>, vector<2x64xbf16>,
    %c18 = arith.constant 18 : index
    %c0_1 = arith.constant 0 : index
    %2 = vector.load %arg14[%c18, %c0_1] : memref<40x64xbf16, #tpu.memory_space<vmem>>, vector<2x64xbf16>
    tpu.vector_store %arg14[%c18, %c0_1], %0 {strides = array<i32>} : memref<40x64xbf16, #tpu.memory_space<vmem>>, vector<2x64xbf16>,
    %c20 = arith.constant 20 : index
    %c0_2 = arith.constant 0 : index
    %3 = vector.load %arg14[%c20, %c0_2] : memref<40x64xbf16, #tpu.memory_space<vmem>>, vector<2x64xbf16>
    tpu.vector_store %arg14[%c20, %c0_2], %0 {strides = array<i32>} : memref<40x64xbf16, #tpu.memory_space<vmem>>, vector<2x64xbf16>,
    %c38 = arith.constant 38 : index
    %c0_3 = arith.constant 0 : index
    %4 = vector.load %arg14[%c38, %c0_3] : memref<40x64xbf16, #tpu.memory_space<vmem>>, vector<2x64xbf16>
    tpu.vector_store %arg14[%c38, %c0_3], %0 {strides = array<i32>} : memref<40x64xbf16, #tpu.memory_space<vmem>>, vector<2x64xbf16>,
    %cst_4 = arith.constant 0.000000e+00 : bf16
    %5 = vector.broadcast %cst_4 : bf16 to vector<1x256xbf16>
    %c0_5 = arith.constant 0 : index
    %c0_6 = arith.constant 0 : index
    %6 = vector.load %arg15[%c0_5, %c0_6] : memref<36x256xbf16, #tpu.memory_space<vmem>>, vector<1x256xbf16>
    tpu.vector_store %arg15[%c0_5, %c0_6], %5 {strides = array<i32>} : memref<36x256xbf16, #tpu.memory_space<vmem>>, vector<1x256xbf16>,
    %c17 = arith.constant 17 : index
    %c0_7 = arith.constant 0 : index
    %7 = vector.load %arg15[%c17, %c0_7] : memref<36x256xbf16, #tpu.memory_space<vmem>>, vector<1x256xbf16>
    tpu.vector_store %arg15[%c17, %c0_7], %5 {strides = array<i32>} : memref<36x256xbf16, #tpu.memory_space<vmem>>, vector<1x256xbf16>,
    %c18_8 = arith.constant 18 : index
    %c0_9 = arith.constant 0 : index
    %8 = vector.load %arg15[%c18_8, %c0_9] : memref<36x256xbf16, #tpu.memory_space<vmem>>, vector<1x256xbf16>
    tpu.vector_store %arg15[%c18_8, %c0_9], %5 {strides = array<i32>} : memref<36x256xbf16, #tpu.memory_space<vmem>>, vector<1x256xbf16>,
    %c35 = arith.constant 35 : index
    %c0_10 = arith.constant 0 : index
    %9 = vector.load %arg15[%c35, %c0_10] : memref<36x256xbf16, #tpu.memory_space<vmem>>, vector<1x256xbf16>
    tpu.vector_store %arg15[%c35, %c0_10], %5 {strides = array<i32>} : memref<36x256xbf16, #tpu.memory_space<vmem>>, vector<1x256xbf16>,
    %cst_11 = arith.constant 0.000000e+00 : bf16
    %10 = vector.broadcast %cst_11 : bf16 to vector<1x512xbf16>
    %c0_12 = arith.constant 0 : index
    %c0_13 = arith.constant 0 : index
    %11 = vector.load %arg16[%c0_12, %c0_13] : memref<36x512xbf16, #tpu.memory_space<vmem>>, vector<1x512xbf16>
    tpu.vector_store %arg16[%c0_12, %c0_13], %10 {strides = array<i32>} : memref<36x512xbf16, #tpu.memory_space<vmem>>, vector<1x512xbf16>,
    %c17_14 = arith.constant 17 : index
    %c0_15 = arith.constant 0 : index
    %12 = vector.load %arg16[%c17_14, %c0_15] : memref<36x512xbf16, #tpu.memory_space<vmem>>, vector<1x512xbf16>
    tpu.vector_store %arg16[%c17_14, %c0_15], %10 {strides = array<i32>} : memref<36x512xbf16, #tpu.memory_space<vmem>>, vector<1x512xbf16>,
    %c18_16 = arith.constant 18 : index
    %c0_17 = arith.constant 0 : index
    %13 = vector.load %arg16[%c18_16, %c0_17] : memref<36x512xbf16, #tpu.memory_space<vmem>>, vector<1x512xbf16>
    tpu.vector_store %arg16[%c18_16, %c0_17], %10 {strides = array<i32>} : memref<36x512xbf16, #tpu.memory_space<vmem>>, vector<1x512xbf16>,
    %c35_18 = arith.constant 35 : index
    %c0_19 = arith.constant 0 : index
    %14 = vector.load %arg16[%c35_18, %c0_19] : memref<36x512xbf16, #tpu.memory_space<vmem>>, vector<1x512xbf16>
    tpu.vector_store %arg16[%c35_18, %c0_19], %10 {strides = array<i32>} : memref<36x512xbf16, #tpu.memory_space<vmem>>, vector<1x512xbf16>,
    %c0_20 = arith.constant 0 : index
    %c0_21 = arith.constant 0 : index
    %c0_22 = arith.constant 0 : index
    %15 = vector.load %arg1[%c0_20, %c0_21, %c0_22] : memref<2x16x64xf32, #tpu.memory_space<vmem>>, vector<1x16x64xf32>
    %16 = vector.shape_cast %15 : vector<1x16x64xf32> to vector<16x64xf32>
    %c0_23 = arith.constant 0 : index
    %c0_24 = arith.constant 0 : index
    %c0_25 = arith.constant 0 : index
    %17 = vector.load %arg2[%c0_23, %c0_24, %c0_25] : memref<2x16x64xf32, #tpu.memory_space<vmem>>, vector<1x16x64xf32>
    %18 = vector.shape_cast %17 : vector<1x16x64xf32> to vector<16x64xf32>
    %19 = arith.addf %16, %18 : vector<16x64xf32>
    %20 = arith.truncf %19 : vector<16x64xf32> to vector<16x64xbf16>
    %c2 = arith.constant 2 : index
    %c0_26 = arith.constant 0 : index
    %21 = vector.load %arg14[%c2, %c0_26] : memref<40x64xbf16, #tpu.memory_space<vmem>>, vector<16x64xbf16>
    tpu.vector_store %arg14[%c2, %c0_26], %20 {strides = array<i32>} : memref<40x64xbf16, #tpu.memory_space<vmem>>, vector<16x64xbf16>,
    %c1 = arith.constant 1 : index
    %c0_27 = arith.constant 0 : index
    %c0_28 = arith.constant 0 : index
    %22 = vector.load %arg1[%c1, %c0_27, %c0_28] : memref<2x16x64xf32, #tpu.memory_space<vmem>>, vector<1x16x64xf32>
    %23 = vector.shape_cast %22 : vector<1x16x64xf32> to vector<16x64xf32>
    %c1_29 = arith.constant 1 : index
    %c0_30 = arith.constant 0 : index
    %c0_31 = arith.constant 0 : index
    %24 = vector.load %arg2[%c1_29, %c0_30, %c0_31] : memref<2x16x64xf32, #tpu.memory_space<vmem>>, vector<1x16x64xf32>
    %25 = vector.shape_cast %24 : vector<1x16x64xf32> to vector<16x64xf32>
    %26 = arith.addf %23, %25 : vector<16x64xf32>
    %27 = arith.truncf %26 : vector<16x64xf32> to vector<16x64xbf16>
    %c22 = arith.constant 22 : index
    %c0_32 = arith.constant 0 : index
    %28 = vector.load %arg14[%c22, %c0_32] : memref<40x64xbf16, #tpu.memory_space<vmem>>, vector<16x64xbf16>
    tpu.vector_store %arg14[%c22, %c0_32], %27 {strides = array<i32>} : memref<40x64xbf16, #tpu.memory_space<vmem>>, vector<16x64xbf16>,
    %c0_33 = arith.constant 0 : index
    %c0_34 = arith.constant 0 : index
    %29 = vector.load %arg6[%c0_33, %c0_34] : memref<1x256xf32, #tpu.memory_space<vmem>>, vector<1x256xf32>
    %c0_35 = arith.constant 0 : index
    %c0_36 = arith.constant 0 : index
    %30 = vector.load %arg14[%c0_35, %c0_36] : memref<40x64xbf16, #tpu.memory_space<vmem>>, vector<36x64xbf16>
    %c0_37 = arith.constant 0 : index
    %c0_38 = arith.constant 0 : index
    %c0_39 = arith.constant 0 : index
    %31 = vector.load %arg5[%c0_37, %c0_38, %c0_39] : memref<5x64x256xbf16, #tpu.memory_space<vmem>>, vector<1x64x256xbf16>
    %32 = vector.shape_cast %31 : vector<1x64x256xbf16> to vector<64x256xbf16>
    %cst_40 = arith.constant dense<0.000000e+00> : vector<36x256xf32>
    %33 = tpu.matmul %30, %32, %cst_40 {dimension_numbers = #tpu.dot_dimension_numbers<[1], [0], [0], [1], [0, 0, 1, 1], [], []>} : vector<36x64xbf16>, vector<64x256xbf16>, vector<36x256xf32> -> vector<36x256xf32>
    %c1_41 = arith.constant 1 : index
    %c0_42 = arith.constant 0 : index
    %34 = vector.load %arg14[%c1_41, %c0_42] : memref<40x64xbf16, #tpu.memory_space<vmem>>, vector<36x64xbf16>
    %c1_43 = arith.constant 1 : index
    %c0_44 = arith.constant 0 : index
    %c0_45 = arith.constant 0 : index
    %35 = vector.load %arg5[%c1_43, %c0_44, %c0_45] : memref<5x64x256xbf16, #tpu.memory_space<vmem>>, vector<1x64x256xbf16>
    %36 = vector.shape_cast %35 : vector<1x64x256xbf16> to vector<64x256xbf16>
    %cst_46 = arith.constant dense<0.000000e+00> : vector<36x256xf32>
    %37 = tpu.matmul %34, %36, %cst_46 {dimension_numbers = #tpu.dot_dimension_numbers<[1], [0], [0], [1], [0, 0, 1, 1], [], []>} : vector<36x64xbf16>, vector<64x256xbf16>, vector<36x256xf32> -> vector<36x256xf32>
    %38 = arith.addf %33, %37 : vector<36x256xf32>
    %c2_47 = arith.constant 2 : index
    %c0_48 = arith.constant 0 : index
    %39 = vector.load %arg14[%c2_47, %c0_48] : memref<40x64xbf16, #tpu.memory_space<vmem>>, vector<36x64xbf16>
    %c2_49 = arith.constant 2 : index
    %c0_50 = arith.constant 0 : index
    %c0_51 = arith.constant 0 : index
    %40 = vector.load %arg5[%c2_49, %c0_50, %c0_51] : memref<5x64x256xbf16, #tpu.memory_space<vmem>>, vector<1x64x256xbf16>
    %41 = vector.shape_cast %40 : vector<1x64x256xbf16> to vector<64x256xbf16>
    %cst_52 = arith.constant dense<0.000000e+00> : vector<36x256xf32>
    %42 = tpu.matmul %39, %41, %cst_52 {dimension_numbers = #tpu.dot_dimension_numbers<[1], [0], [0], [1], [0, 0, 1, 1], [], []>} : vector<36x64xbf16>, vector<64x256xbf16>, vector<36x256xf32> -> vector<36x256xf32>
    %43 = arith.addf %38, %42 : vector<36x256xf32>
    %c3 = arith.constant 3 : index
    %c0_53 = arith.constant 0 : index
    %44 = vector.load %arg14[%c3, %c0_53] : memref<40x64xbf16, #tpu.memory_space<vmem>>, vector<36x64xbf16>
    %c3_54 = arith.constant 3 : index
    %c0_55 = arith.constant 0 : index
    %c0_56 = arith.constant 0 : index
    %45 = vector.load %arg5[%c3_54, %c0_55, %c0_56] : memref<5x64x256xbf16, #tpu.memory_space<vmem>>, vector<1x64x256xbf16>
    %46 = vector.shape_cast %45 : vector<1x64x256xbf16> to vector<64x256xbf16>
    %cst_57 = arith.constant dense<0.000000e+00> : vector<36x256xf32>
    %47 = tpu.matmul %44, %46, %cst_57 {dimension_numbers = #tpu.dot_dimension_numbers<[1], [0], [0], [1], [0, 0, 1, 1], [], []>} : vector<36x64xbf16>, vector<64x256xbf16>, vector<36x256xf32> -> vector<36x256xf32>
    %48 = arith.addf %43, %47 : vector<36x256xf32>
    %c4 = arith.constant 4 : index
    %c0_58 = arith.constant 0 : index
    %49 = vector.load %arg14[%c4, %c0_58] : memref<40x64xbf16, #tpu.memory_space<vmem>>, vector<36x64xbf16>
    %c4_59 = arith.constant 4 : index
    %c0_60 = arith.constant 0 : index
    %c0_61 = arith.constant 0 : index
    %50 = vector.load %arg5[%c4_59, %c0_60, %c0_61] : memref<5x64x256xbf16, #tpu.memory_space<vmem>>, vector<1x64x256xbf16>
    %51 = vector.shape_cast %50 : vector<1x64x256xbf16> to vector<64x256xbf16>
    %cst_62 = arith.constant dense<0.000000e+00> : vector<36x256xf32>
    %52 = tpu.matmul %49, %51, %cst_62 {dimension_numbers = #tpu.dot_dimension_numbers<[1], [0], [0], [1], [0, 0, 1, 1], [], []>} : vector<36x64xbf16>, vector<64x256xbf16>, vector<36x256xf32> -> vector<36x256xf32>
    %53 = arith.addf %48, %52 : vector<36x256xf32>
    %54 = vector.broadcast %29 : vector<1x256xf32> to vector<36x256xf32>
    %55 = arith.addf %53, %54 : vector<36x256xf32>
    %cst_63 = arith.constant 0.000000e+00 : f32
    %56 = vector.broadcast %cst_63 : f32 to vector<36x256xf32>
    %57 = arith.maximumf %55, %56 : vector<36x256xf32>
    %58 = vector.extract_strided_slice %57 {offsets = [0, 0], sizes = [16, 256], strides = [1, 1]} : vector<36x256xf32> to vector<16x256xf32>
    %c0_64 = arith.constant 0 : index
    %c0_65 = arith.constant 0 : index
    %c0_66 = arith.constant 0 : index
    %59 = vector.load %arg3[%c0_64, %c0_65, %c0_66] : memref<2x16x256xf32, #tpu.memory_space<vmem>>, vector<1x16x256xf32>
    %60 = vector.shape_cast %59 : vector<1x16x256xf32> to vector<16x256xf32>
    %61 = arith.addf %58, %60 : vector<16x256xf32>
    %62 = arith.truncf %61 : vector<16x256xf32> to vector<16x256xbf16>
    %c1_67 = arith.constant 1 : index
    %c0_68 = arith.constant 0 : index
    %63 = vector.load %arg15[%c1_67, %c0_68] : memref<36x256xbf16, #tpu.memory_space<vmem>>, vector<16x256xbf16>
    tpu.vector_store %arg15[%c1_67, %c0_68], %62 {strides = array<i32>} : memref<36x256xbf16, #tpu.memory_space<vmem>>, vector<16x256xbf16>,
    %64 = vector.extract_strided_slice %57 {offsets = [20, 0], sizes = [16, 256], strides = [1, 1]} : vector<36x256xf32> to vector<16x256xf32>
    %c1_69 = arith.constant 1 : index
    %c0_70 = arith.constant 0 : index
    %c0_71 = arith.constant 0 : index
    %65 = vector.load %arg3[%c1_69, %c0_70, %c0_71] : memref<2x16x256xf32, #tpu.memory_space<vmem>>, vector<1x16x256xf32>
    %66 = vector.shape_cast %65 : vector<1x16x256xf32> to vector<16x256xf32>
    %67 = arith.addf %64, %66 : vector<16x256xf32>
    %68 = arith.truncf %67 : vector<16x256xf32> to vector<16x256xbf16>
    %c19 = arith.constant 19 : index
    %c0_72 = arith.constant 0 : index
    %69 = vector.load %arg15[%c19, %c0_72] : memref<36x256xbf16, #tpu.memory_space<vmem>>, vector<16x256xbf16>
    tpu.vector_store %arg15[%c19, %c0_72], %68 {strides = array<i32>} : memref<36x256xbf16, #tpu.memory_space<vmem>>, vector<16x256xbf16>,
    %c0_73 = arith.constant 0 : index
    %c0_74 = arith.constant 0 : index
    %70 = vector.load %arg8[%c0_73, %c0_74] : memref<1x512xf32, #tpu.memory_space<vmem>>, vector<1x512xf32>
    %c0_75 = arith.constant 0 : index
    %c0_76 = arith.constant 0 : index
    %71 = vector.load %arg15[%c0_75, %c0_76] : memref<36x256xbf16, #tpu.memory_space<vmem>>, vector<34x256xbf16>
    %c0_77 = arith.constant 0 : index
    %c0_78 = arith.constant 0 : index
    %c0_79 = arith.constant 0 : index
    %72 = vector.load %arg7[%c0_77, %c0_78, %c0_79] : memref<3x256x512xbf16, #tpu.memory_space<vmem>>, vector<1x256x512xbf16>
    %73 = vector.shape_cast %72 : vector<1x256x512xbf16> to vector<256x512xbf16>
    %cst_80 = arith.constant dense<0.000000e+00> : vector<34x512xf32>
    %74 = tpu.matmul %71, %73, %cst_80 {dimension_numbers = #tpu.dot_dimension_numbers<[1], [0], [0], [1], [0, 0, 1, 1], [], []>} : vector<34x256xbf16>, vector<256x512xbf16>, vector<34x512xf32> -> vector<34x512xf32>
    %c1_81 = arith.constant 1 : index
    %c0_82 = arith.constant 0 : index
    %75 = vector.load %arg15[%c1_81, %c0_82] : memref<36x256xbf16, #tpu.memory_space<vmem>>, vector<34x256xbf16>
    %c1_83 = arith.constant 1 : index
    %c0_84 = arith.constant 0 : index
    %c0_85 = arith.constant 0 : index
    %76 = vector.load %arg7[%c1_83, %c0_84, %c0_85] : memref<3x256x512xbf16, #tpu.memory_space<vmem>>, vector<1x256x512xbf16>
    %77 = vector.shape_cast %76 : vector<1x256x512xbf16> to vector<256x512xbf16>
    %cst_86 = arith.constant dense<0.000000e+00> : vector<34x512xf32>
    %78 = tpu.matmul %75, %77, %cst_86 {dimension_numbers = #tpu.dot_dimension_numbers<[1], [0], [0], [1], [0, 0, 1, 1], [], []>} : vector<34x256xbf16>, vector<256x512xbf16>, vector<34x512xf32> -> vector<34x512xf32>
    %79 = arith.addf %74, %78 : vector<34x512xf32>
    %c2_87 = arith.constant 2 : index
    %c0_88 = arith.constant 0 : index
    %80 = vector.load %arg15[%c2_87, %c0_88] : memref<36x256xbf16, #tpu.memory_space<vmem>>, vector<34x256xbf16>
    %c2_89 = arith.constant 2 : index
    %c0_90 = arith.constant 0 : index
    %c0_91 = arith.constant 0 : index
    %81 = vector.load %arg7[%c2_89, %c0_90, %c0_91] : memref<3x256x512xbf16, #tpu.memory_space<vmem>>, vector<1x256x512xbf16>
    %82 = vector.shape_cast %81 : vector<1x256x512xbf16> to vector<256x512xbf16>
    %cst_92 = arith.constant dense<0.000000e+00> : vector<34x512xf32>
    %83 = tpu.matmul %80, %82, %cst_92 {dimension_numbers = #tpu.dot_dimension_numbers<[1], [0], [0], [1], [0, 0, 1, 1], [], []>} : vector<34x256xbf16>, vector<256x512xbf16>, vector<34x512xf32> -> vector<34x512xf32>
    %84 = arith.addf %79, %83 : vector<34x512xf32>
    %85 = vector.broadcast %70 : vector<1x512xf32> to vector<34x512xf32>
    %86 = arith.addf %84, %85 : vector<34x512xf32>
    %cst_93 = arith.constant 0.000000e+00 : f32
    %87 = vector.broadcast %cst_93 : f32 to vector<34x512xf32>
    %88 = arith.maximumf %86, %87 : vector<34x512xf32>
    %89 = vector.extract_strided_slice %88 {offsets = [0, 0], sizes = [16, 512], strides = [1, 1]} : vector<34x512xf32> to vector<16x512xf32>
    %c0_94 = arith.constant 0 : index
    %c0_95 = arith.constant 0 : index
    %c0_96 = arith.constant 0 : index
    %90 = vector.load %arg4[%c0_94, %c0_95, %c0_96] : memref<2x16x512xf32, #tpu.memory_space<vmem>>, vector<1x16x512xf32>
    %91 = vector.shape_cast %90 : vector<1x16x512xf32> to vector<16x512xf32>
    %92 = arith.addf %89, %91 : vector<16x512xf32>
    %93 = arith.truncf %92 : vector<16x512xf32> to vector<16x512xbf16>
    %c1_97 = arith.constant 1 : index
    %c0_98 = arith.constant 0 : index
    %94 = vector.load %arg16[%c1_97, %c0_98] : memref<36x512xbf16, #tpu.memory_space<vmem>>, vector<16x512xbf16>
    tpu.vector_store %arg16[%c1_97, %c0_98], %93 {strides = array<i32>} : memref<36x512xbf16, #tpu.memory_space<vmem>>, vector<16x512xbf16>,
    %95 = vector.extract_strided_slice %88 {offsets = [18, 0], sizes = [16, 512], strides = [1, 1]} : vector<34x512xf32> to vector<16x512xf32>
    %c1_99 = arith.constant 1 : index
    %c0_100 = arith.constant 0 : index
    %c0_101 = arith.constant 0 : index
    %96 = vector.load %arg4[%c1_99, %c0_100, %c0_101] : memref<2x16x512xf32, #tpu.memory_space<vmem>>, vector<1x16x512xf32>
    %97 = vector.shape_cast %96 : vector<1x16x512xf32> to vector<16x512xf32>
    %98 = arith.addf %95, %97 : vector<16x512xf32>
    %99 = arith.truncf %98 : vector<16x512xf32> to vector<16x512xbf16>
    %c19_102 = arith.constant 19 : index
    %c0_103 = arith.constant 0 : index
    %100 = vector.load %arg16[%c19_102, %c0_103] : memref<36x512xbf16, #tpu.memory_space<vmem>>, vector<16x512xbf16>
    tpu.vector_store %arg16[%c19_102, %c0_103], %99 {strides = array<i32>} : memref<36x512xbf16, #tpu.memory_space<vmem>>, vector<16x512xbf16>,
    %c0_104 = arith.constant 0 : index
    %c0_105 = arith.constant 0 : index
    %101 = vector.load %arg10[%c0_104, %c0_105] : memref<1x512xf32, #tpu.memory_space<vmem>>, vector<1x512xf32>
    %c0_106 = arith.constant 0 : index
    %c0_107 = arith.constant 0 : index
    %102 = vector.load %arg16[%c0_106, %c0_107] : memref<36x512xbf16, #tpu.memory_space<vmem>>, vector<34x512xbf16>
    %c0_108 = arith.constant 0 : index
    %c0_109 = arith.constant 0 : index
    %c0_110 = arith.constant 0 : index
    %103 = vector.load %arg9[%c0_108, %c0_109, %c0_110] : memref<3x512x512xbf16, #tpu.memory_space<vmem>>, vector<1x512x512xbf16>
    %104 = vector.shape_cast %103 : vector<1x512x512xbf16> to vector<512x512xbf16>
    %cst_111 = arith.constant dense<0.000000e+00> : vector<34x512xf32>
    %105 = tpu.matmul %102, %104, %cst_111 {dimension_numbers = #tpu.dot_dimension_numbers<[1], [0], [0], [1], [0, 0, 1, 1], [], []>} : vector<34x512xbf16>, vector<512x512xbf16>, vector<34x512xf32> -> vector<34x512xf32>
    %c1_112 = arith.constant 1 : index
    %c0_113 = arith.constant 0 : index
    %106 = vector.load %arg16[%c1_112, %c0_113] : memref<36x512xbf16, #tpu.memory_space<vmem>>, vector<34x512xbf16>
    %c1_114 = arith.constant 1 : index
    %c0_115 = arith.constant 0 : index
    %c0_116 = arith.constant 0 : index
    %107 = vector.load %arg9[%c1_114, %c0_115, %c0_116] : memref<3x512x512xbf16, #tpu.memory_space<vmem>>, vector<1x512x512xbf16>
    %108 = vector.shape_cast %107 : vector<1x512x512xbf16> to vector<512x512xbf16>
    %cst_117 = arith.constant dense<0.000000e+00> : vector<34x512xf32>
    %109 = tpu.matmul %106, %108, %cst_117 {dimension_numbers = #tpu.dot_dimension_numbers<[1], [0], [0], [1], [0, 0, 1, 1], [], []>} : vector<34x512xbf16>, vector<512x512xbf16>, vector<34x512xf32> -> vector<34x512xf32>
    %110 = arith.addf %105, %109 : vector<34x512xf32>
    %c2_118 = arith.constant 2 : index
    %c0_119 = arith.constant 0 : index
    %111 = vector.load %arg16[%c2_118, %c0_119] : memref<36x512xbf16, #tpu.memory_space<vmem>>, vector<34x512xbf16>
    %c2_120 = arith.constant 2 : index
    %c0_121 = arith.constant 0 : index
    %c0_122 = arith.constant 0 : index
    %112 = vector.load %arg9[%c2_120, %c0_121, %c0_122] : memref<3x512x512xbf16, #tpu.memory_space<vmem>>, vector<1x512x512xbf16>
    %113 = vector.shape_cast %112 : vector<1x512x512xbf16> to vector<512x512xbf16>
    %cst_123 = arith.constant dense<0.000000e+00> : vector<34x512xf32>
    %114 = tpu.matmul %111, %113, %cst_123 {dimension_numbers = #tpu.dot_dimension_numbers<[1], [0], [0], [1], [0, 0, 1, 1], [], []>} : vector<34x512xbf16>, vector<512x512xbf16>, vector<34x512xf32> -> vector<34x512xf32>
    %115 = arith.addf %110, %114 : vector<34x512xf32>
    %116 = vector.broadcast %101 : vector<1x512xf32> to vector<34x512xf32>
    %117 = arith.addf %115, %116 : vector<34x512xf32>
    %cst_124 = arith.constant 0.000000e+00 : f32
    %118 = vector.broadcast %cst_124 : f32 to vector<34x512xf32>
    %119 = arith.maximumf %117, %118 : vector<34x512xf32>
    %120 = arith.truncf %119 : vector<34x512xf32> to vector<34x512xbf16>
    %c0_125 = arith.constant 0 : index
    %c0_126 = arith.constant 0 : index
    %121 = vector.load %arg11[%c0_125, %c0_126] : memref<512x64xbf16, #tpu.memory_space<vmem>>, vector<512x64xbf16>
    %cst_127 = arith.constant dense<0.000000e+00> : vector<34x64xf32>
    %122 = tpu.matmul %120, %121, %cst_127 {dimension_numbers = #tpu.dot_dimension_numbers<[1], [0], [0], [1], [0, 0, 1, 1], [], []>} : vector<34x512xbf16>, vector<512x64xbf16>, vector<34x64xf32> -> vector<34x64xf32>
    %c0_128 = arith.constant 0 : index
    %c0_129 = arith.constant 0 : index
    %123 = vector.load %arg12[%c0_128, %c0_129] : memref<1x64xf32, #tpu.memory_space<vmem>>, vector<1x64xf32>
    %124 = vector.broadcast %123 : vector<1x64xf32> to vector<34x64xf32>
    %125 = arith.addf %122, %124 : vector<34x64xf32>
    %126 = vector.extract_strided_slice %125 {offsets = [0, 0], sizes = [16, 64], strides = [1, 1]} : vector<34x64xf32> to vector<16x64xf32>
    %c0_130 = arith.constant 0 : index
    %c0_131 = arith.constant 0 : index
    %c0_132 = arith.constant 0 : index
    %127 = vector.load %arg13[%c0_130, %c0_131, %c0_132] : memref<2x16x64xf32, #tpu.memory_space<vmem>>, vector<1x16x64xf32>
    %128 = vector.shape_cast %127 : vector<1x16x64xf32> to vector<16x64xf32>
    %129 = vector.shape_cast %126 : vector<16x64xf32> to vector<1x16x64xf32>
    tpu.vector_store %arg13[%c0_130, %c0_131, %c0_132], %129 {strides = array<i32>} : memref<2x16x64xf32, #tpu.memory_space<vmem>>, vector<1x16x64xf32>,
    %130 = vector.extract_strided_slice %125 {offsets = [18, 0], sizes = [16, 64], strides = [1, 1]} : vector<34x64xf32> to vector<16x64xf32>
    %c1_133 = arith.constant 1 : index
    %c0_134 = arith.constant 0 : index
    %c0_135 = arith.constant 0 : index
    %131 = vector.load %arg13[%c1_133, %c0_134, %c0_135] : memref<2x16x64xf32, #tpu.memory_space<vmem>>, vector<1x16x64xf32>
    %132 = vector.shape_cast %131 : vector<1x16x64xf32> to vector<16x64xf32>
    %133 = vector.shape_cast %130 : vector<16x64xf32> to vector<1x16x64xf32>
    tpu.vector_store %arg13[%c1_133, %c0_134, %c0_135], %133 {strides = array<i32>} : memref<2x16x64xf32, #tpu.memory_space<vmem>>, vector<1x16x64xf32>,
    return
  }
  func.func @transform_0(%arg0: i32) -> (i32, i32, i32) {
    %c0_i32 = arith.constant 0 : i32
    %c0_i32_0 = arith.constant 0 : i32
    %c0_i32_1 = arith.constant 0 : i32
    return %arg0, %c0_i32, %c0_i32_0 : i32, i32, i32
  }
  func.func @transform_1(%arg0: i32) -> (i32, i32, i32) {
    %c0_i32 = arith.constant 0 : i32
    %c0_i32_0 = arith.constant 0 : i32
    %c0_i32_1 = arith.constant 0 : i32
    return %arg0, %c0_i32, %c0_i32_0 : i32, i32, i32
  }
  func.func @transform_2(%arg0: i32) -> (i32, i32, i32) {
    %c0_i32 = arith.constant 0 : i32
    %c0_i32_0 = arith.constant 0 : i32
    %c0_i32_1 = arith.constant 0 : i32
    return %arg0, %c0_i32, %c0_i32_0 : i32, i32, i32
  }
  func.func @transform_3(%arg0: i32) -> (i32, i32, i32) {
    %c0_i32 = arith.constant 0 : i32
    %c0_i32_0 = arith.constant 0 : i32
    %c0_i32_1 = arith.constant 0 : i32
    return %arg0, %c0_i32, %c0_i32_0 : i32, i32, i32
  }
  func.func @transform_4(%arg0: i32) -> (i32, i32, i32) {
    %c0_i32 = arith.constant 0 : i32
    %c0_i32_0 = arith.constant 0 : i32
    %c0_i32_1 = arith.constant 0 : i32
    %c0_i32_2 = arith.constant 0 : i32
    return %c0_i32, %c0_i32_0, %c0_i32_1 : i32, i32, i32
  }
  func.func @transform_5(%arg0: i32) -> (i32, i32) {
    %c0_i32 = arith.constant 0 : i32
    %c0_i32_0 = arith.constant 0 : i32
    %c0_i32_1 = arith.constant 0 : i32
    return %c0_i32, %c0_i32_0 : i32, i32
  }
  func.func @transform_6(%arg0: i32) -> (i32, i32, i32) {
    %c0_i32 = arith.constant 0 : i32
    %c0_i32_0 = arith.constant 0 : i32
    %c0_i32_1 = arith.constant 0 : i32
    %c0_i32_2 = arith.constant 0 : i32
    return %c0_i32, %c0_i32_0, %c0_i32_1 : i32, i32, i32
  }
  func.func @transform_7(%arg0: i32) -> (i32, i32) {
    %c0_i32 = arith.constant 0 : i32
    %c0_i32_0 = arith.constant 0 : i32
    %c0_i32_1 = arith.constant 0 : i32
    return %c0_i32, %c0_i32_0 : i32, i32
  }
  func.func @transform_8(%arg0: i32) -> (i32, i32, i32) {
    %c0_i32 = arith.constant 0 : i32
    %c0_i32_0 = arith.constant 0 : i32
    %c0_i32_1 = arith.constant 0 : i32
    %c0_i32_2 = arith.constant 0 : i32
    return %c0_i32, %c0_i32_0, %c0_i32_1 : i32, i32, i32
  }
  func.func @transform_9(%arg0: i32) -> (i32, i32) {
    %c0_i32 = arith.constant 0 : i32
    %c0_i32_0 = arith.constant 0 : i32
    %c0_i32_1 = arith.constant 0 : i32
    return %c0_i32, %c0_i32_0 : i32, i32
  }
  func.func @transform_10(%arg0: i32) -> (i32, i32) {
    %c0_i32 = arith.constant 0 : i32
    %c0_i32_0 = arith.constant 0 : i32
    %c0_i32_1 = arith.constant 0 : i32
    return %c0_i32, %c0_i32_0 : i32, i32
  }
  func.func @transform_11(%arg0: i32) -> (i32, i32) {
    %c0_i32 = arith.constant 0 : i32
    %c0_i32_0 = arith.constant 0 : i32
    %c0_i32_1 = arith.constant 0 : i32
    return %c0_i32, %c0_i32_0 : i32, i32
  }
  func.func @transform_12(%arg0: i32) -> (i32, i32, i32) {
    %c0_i32 = arith.constant 0 : i32
    %c0_i32_0 = arith.constant 0 : i32
    %c0_i32_1 = arith.constant 0 : i32
    return %arg0, %c0_i32, %c0_i32_0 : i32, i32, i32
  }
}

</mosaic_0001>

<llo_original>
// kernel: extractor_forward.1
$region0: #{extractor_forward.1}
  #allocation0 [shape = 'u32[]', space=smem, size = 0x4, offset = 0x4, fixed_abs, tag = 'smem constant byte address 0x4 - core index']
  #allocation1 [shape = 'u32[144,128]{1,0:T(1,128)}', space=vmem, size = 0x12000, scoped, tag = 'internal scratch']
  #allocation2 [shape = 'bf16[40,64]{1,0:T(8,128)(2,1)}', space=vmem, size = 0x2800, scoped, tag = 'scratch operand']
  #allocation3 [shape = 'bf16[36,256]{1,0:T(8,128)(2,1)}', space=vmem, size = 0x5000, scoped, tag = 'scratch operand']
  #allocation4 [shape = 'bf16[36,512]{1,0:T(8,128)(2,1)}', space=vmem, size = 0xa000, scoped, tag = 'scratch operand']
  %s0 = inlined_call_operand.vmem [shape: f32[2,16,64], index: 0, kind: input, shape index: {}]
  %s1 = inlined_call_operand.vmem [shape: f32[2,16,64], index: 1, kind: input, shape index: {}]
  %s2 = inlined_call_operand.vmem [shape: f32[2,16,256], index: 2, kind: input, shape index: {}]
  %s3 = inlined_call_operand.vmem [shape: f32[2,16,512], index: 3, kind: input, shape index: {}]
  %s4 = inlined_call_operand.vmem [shape: bf16[5,64,256], index: 4, kind: input, shape index: {}]
  %s5 = inlined_call_operand.vmem [shape: f32[1,256], index: 5, kind: input, shape index: {}]
  %s6 = inlined_call_operand.hbm [shape: bf16[3,256,512], index: 6, kind: input, shape index: {}]
  %s7 = inlined_call_operand.vmem [shape: f32[1,512], index: 7, kind: input, shape index: {}]
  %s8 = inlined_call_operand.vmem [shape: bf16[3,512,512], index: 8, kind: input, shape index: {}]
  %s9 = inlined_call_operand.vmem [shape: f32[1,512], index: 9, kind: input, shape index: {}]
  %s10 = inlined_call_operand.vmem [shape: bf16[512,64], index: 10, kind: input, shape index: {}]
  %s11 = inlined_call_operand.vmem [shape: f32[1,64], index: 11, kind: input, shape index: {}]
  %s12 = inlined_call_operand.vmem [shape: f32[2,16,64], index: 12, kind: output, shape index: {}]
  %s13 = sld [smem:[#allocation0]]
  $region62: #{extractor_forward.1} parent=0
    _
  %s15 = ssub.s32 1, %s13
  %s16 = scalar_select 0, %s15, %s13
  $region1: #{extractor_forward.1} parent=0
    #allocation5 [shape = 'u8[786432]{0}', space=vmem, size = 0xc0000, scoped, tag = 'input window, operand 6, single buffered']
    #allocation6 [shape = 's32[1]{0}', space=sflag, size = 0x4, scoped, tag = 'scoped memory for extractor_forward.1']
    %17 = vsyncpa [#allocation6], 0
    // Predicated region
    $region2: #{extractor_forward.1} parent=1 // pred_check
      _
    $region3: #{extractor_forward.1} parent=1 // pred_check_branch
      %19 = sbr.rel (0) target = $region5
    $region4: #{extractor_forward.1} parent=1 // pred_region
      _
    $region5: #{extractor_forward.1} parent=1 // pred_fallthru
      _
    // Predicated region
    $region6: #{extractor_forward.1} parent=1 // pred_check
      _
    $region7: #{extractor_forward.1} parent=1 // pred_check_branch
      %21 = sbr.rel (0) target = $region9
    $region8: #{extractor_forward.1} parent=1 // pred_region
      _
    $region9: #{extractor_forward.1} parent=1 // pred_fallthru
      _
    // Predicated region
    $region10: #{extractor_forward.1} parent=1 // pred_check
      _
    $region11: #{extractor_forward.1} parent=1 // pred_check_branch
      %23 = sbr.rel (0) target = $region13
    $region12: #{extractor_forward.1} parent=1 // pred_region
      _
    $region13: #{extractor_forward.1} parent=1 // pred_fallthru
      _
    // Predicated region
    $region14: #{extractor_forward.1} parent=1 // pred_check
      _
    $region15: #{extractor_forward.1} parent=1 // pred_check_branch
      %25 = sbr.rel (0) target = $region17
    $region16: #{extractor_forward.1} parent=1 // pred_region
      _
    $region17: #{extractor_forward.1} parent=1 // pred_fallthru
      _
    // Predicated region
    $region18: #{extractor_forward.1} parent=1 // pred_check
      _
    $region19: #{extractor_forward.1} parent=1 // pred_check_branch
      %27 = sbr.rel (0) target = $region21
    $region20: #{extractor_forward.1} parent=1 // pred_region
      _
    $region21: #{extractor_forward.1} parent=1 // pred_fallthru
      _
    // Predicated region
    $region22: #{extractor_forward.1} parent=1 // pred_check
      _
    $region23: #{extractor_forward.1} parent=1 // pred_check_branch
      %29 = sbr.rel (0) target = $region25
    $region24: #{extractor_forward.1} parent=1 // pred_region
      _
    $region25: #{extractor_forward.1} parent=1 // pred_fallthru
      _
    // Predicated region
    $region26: #{extractor_forward.1} parent=1 // pred_check
      _
    $region27: #{extractor_forward.1} parent=1 // pred_check_branch
      %31 = sbr.rel (0) target = $region29
    $region28: #{extractor_forward.1} parent=1 // pred_region
      %s33 = ssub.s32 24576, 24576
      %34 = vsyncadd [#allocation6], %s33
      %s35 = sshll.u32 [#allocation5], 4
      %s36 = int_to_ptr.vmem [resolvable:$true] %s35
      %41 = dma.hbm_to_vmem [thread:$0]  %s6, 24576, %s36, [#allocation6], 256, 256, 16
    $region29: #{extractor_forward.1} parent=1 // pred_fallthru
      _
    // Predicated region
    $region30: #{extractor_forward.1} parent=1 // pred_check
      _
    $region31: #{extractor_forward.1} parent=1 // pred_check_branch
      %43 = sbr.rel (0) target = $region33
    $region32: #{extractor_forward.1} parent=1 // pred_region
      _
    $region33: #{extractor_forward.1} parent=1 // pred_fallthru
      _
    // Predicated region
    $region34: #{extractor_forward.1} parent=1 // pred_check
      _
    $region35: #{extractor_forward.1} parent=1 // pred_check_branch
      %45 = sbr.rel (0) target = $region37
    $region36: #{extractor_forward.1} parent=1 // pred_region
      _
    $region37: #{extractor_forward.1} parent=1 // pred_fallthru
      _
    // Predicated region
    $region38: #{extractor_forward.1} parent=1 // pred_check
      _
    $region39: #{extractor_forward.1} parent=1 // pred_check_branch
      %47 = sbr.rel (0) target = $region41
    $region40: #{extractor_forward.1} parent=1 // pred_region
      _
    $region41: #{extractor_forward.1} parent=1 // pred_fallthru
      _
    // Predicated region
    $region42: #{extractor_forward.1} parent=1 // pred_check
      _
    $region43: #{extractor_forward.1} parent=1 // pred_check_branch
      %49 = sbr.rel (0) target = $region45
    $region44: #{extractor_forward.1} parent=1 // pred_region
      _
    $region45: #{extractor_forward.1} parent=1 // pred_fallthru
      _
    // Predicated region
    $region46: #{extractor_forward.1} parent=1 // pred_check
      _
    $region47: #{extractor_forward.1} parent=1 // pred_check_branch
      %51 = sbr.rel (0) target = $region49
    $region48: #{extractor_forward.1} parent=1 // pred_region
      _
    $region49: #{extractor_forward.1} parent=1 // pred_fallthru
      _
    // Predicated region
    $region50: #{extractor_forward.1} parent=1 // pred_check
      _
    $region51: #{extractor_forward.1} parent=1 // pred_check_branch
      %53 = sbr.rel (0) target = $region53
    $region52: #{extractor_forward.1} parent=1 // pred_region
      %54 = dma.done [#allocation6], 24576
    $region53: #{extractor_forward.1} parent=1 // pred_fallthru
      _
    %vm56 = vcmask 516096
    %57 = vst.msk [vmem:[#allocation2] sm:$0x1] %vm56, 0
    %vm58 = vcmask 517121
    %59 = vst.msk [vmem:[#allocation2 + $0x8] sm:$0x2] %vm58, 0
    %vm60 = vcmask 518146
    %61 = vst.msk [vmem:[#allocation2 + $0x8] sm:$0x4] %vm60, 0
    %vm62 = vcmask 519171
    %63 = vst.msk [vmem:[#allocation2 + $0x10] sm:$0x8] %vm62, 0
    %vm64 = vcmask 1040384
    %vm65 = vsmask.f32 256
    %vm66 = vmand %vm64, %vm65
    %vm67 = vcmask 1044484
    %vm68 = vsmask.f32 4352
    %vm69 = vmand %vm67, %vm68
    %vm70 = vmor %vm69, %vm66
    %v71 = vld [vmem:[#allocation3] sm:$0x11]
    %v72 = vsel %vm70, 0, %v71
    %73 = vst [vmem:[#allocation3] sm:$0x11] %v72
    %vm74 = vsmask.f32 7938
    %vm75 = vmand %vm64, %vm74
    %vm76 = vsmask.f32 7954
    %vm77 = vmand %vm67, %vm76
    %vm78 = vmor %vm77, %vm75
    %v79 = vld [vmem:[#allocation3 + $0x10] sm:$0x11]
    %v80 = vsel %vm78, 0, %v79
    %81 = vst [vmem:[#allocation3 + $0x10] sm:$0x11] %v80
    %vm82 = vcmask 1041409
    %vm83 = vsmask.f32 1280
    %vm84 = vmand %vm82, %vm83
    %vm85 = vcmask 1045509
    %vm86 = vsmask.f32 5376
    %vm87 = vmand %vm85, %vm86
    %vm88 = vmor %vm87, %vm84
    %v89 = vld [vmem:[#allocation3 + $0x10] sm:$0x22]
    %v90 = vsel %vm88, 0, %v89
    %91 = vst [vmem:[#allocation3 + $0x10] sm:$0x22] %v90
    %vm92 = vsmask.f32 7942
    %vm93 = vmand %vm82, %vm92
    %vm94 = vsmask.f32 7958
    %vm95 = vmand %vm85, %vm94
    %vm96 = vmor %vm95, %vm93
    %v97 = vld [vmem:[#allocation3 + $0x20] sm:$0x22]
    %v98 = vsel %vm96, 0, %v97
    %99 = vst [vmem:[#allocation3 + $0x20] sm:$0x22] %v98
    %v100 = vld [vmem:[#allocation4] sm:$0x11]
    %v101 = vsel %vm70, 0, %v100
    %102 = vst [vmem:[#allocation4] sm:$0x11] %v101
    %v103 = vld [vmem:[#allocation4 + $0x8] sm:$0x11]
    %v104 = vsel %vm70, 0, %v103
    %105 = vst [vmem:[#allocation4 + $0x8] sm:$0x11] %v104
    %v106 = vld [vmem:[#allocation4 + $0x20] sm:$0x11]
    %v107 = vsel %vm78, 0, %v106
    %108 = vst [vmem:[#allocation4 + $0x20] sm:$0x11] %v107
    %v109 = vld [vmem:[#allocation4 + $0x28] sm:$0x11]
    %v110 = vsel %vm78, 0, %v109
    %111 = vst [vmem:[#allocation4 + $0x28] sm:$0x11] %v110
    %v112 = vld [vmem:[#allocation4 + $0x20] sm:$0x22]
    %v113 = vsel %vm88, 0, %v112
    %114 = vst [vmem:[#allocation4 + $0x20] sm:$0x22] %v113
    %v115 = vld [vmem:[#allocation4 + $0x28] sm:$0x22]
    %v116 = vsel %vm88, 0, %v115
    %117 = vst [vmem:[#allocation4 + $0x28] sm:$0x22] %v116
    %v118 = vld [vmem:[#allocation4 + $0x40] sm:$0x22]
    %v119 = vsel %vm96, 0, %v118
    %120 = vst [vmem:[#allocation4 + $0x40] sm:$0x22] %v119
    %v121 = vld [vmem:[#allocation4 + $0x48] sm:$0x22]
    %v122 = vsel %vm96, 0, %v121
    %123 = vst [vmem:[#allocation4 + $0x48] sm:$0x22] %v122
    %v124 = vld [vmem:[%s0] sm:$0xff]
    %v125 = vld [vmem:[%s0 + $0x8] sm:$0xff]
    %v126 = vld [vmem:[%s1] sm:$0xff]
    %v127 = vld [vmem:[%s1 + $0x8] sm:$0xff]
    %v128 = vadd.f32 %v124, %v126
    %v129 = vadd.f32 %v125, %v127
    %v130 = vpack.c.bf16 %v129, %v128
    %v132 = vunpack.c.l.b16 %v130
    %v133 = vunpack.c.h.b16 %v130
    %v134 = vpack.c.b16 %v132, %v132
    %v135 = vpack.c.b16 %v133, %v133
    %vm136 = vmor %vm64, %vm67
    %v137 = vrot.slane %v134, 7
    %v138 = vrot.slane %v137, 4
    %v139 = vrot.slane %v135, 7
    %v140 = vsel %vm136, %v138, %v139
    %v141 = vrot.slane %v139, 4
    %vm145 = vcmask 519169
    %146 = vst.msk [vmem:[#allocation2] sm:$0xe] %vm145, %v137
    %vm147 = vcmask 519168
    %148 = vst.msk [vmem:[#allocation2 + $0x4] sm:$0xf] %vm147, %v140
    %149 = vst.msk [vmem:[#allocation2 + $0x8] sm:$0x1] %vm56, %v141
    %s150 = scalar_lea.vmem %s0, 16
    %v151 = vld [vmem:[%s150] sm:$0xff]
    %v152 = vld [vmem:[%s150 + $0x8] sm:$0xff]
    %s153 = scalar_lea.vmem %s1, 16
    %v154 = vld [vmem:[%s153] sm:$0xff]
    %v155 = vld [vmem:[%s153 + $0x8] sm:$0xff]
    %v156 = vadd.f32 %v151, %v154
    %v157 = vadd.f32 %v152, %v155
    %v158 = vpack.c.bf16 %v157, %v156
    %v160 = vunpack.c.l.b16 %v158
    %v161 = vunpack.c.h.b16 %v158
    %v162 = vpack.c.b16 %v160, %v160
    %v163 = vpack.c.b16 %v161, %v161
    %vm164 = vcmask 1042432
    %vm165 = vcmask 1046532
    %vm166 = vmor %vm164, %vm165
    %v167 = vrot.slane %v162, 5
    %v168 = vrot.slane %v167, 4
    %v169 = vrot.slane %v163, 5
    %v170 = vsel %vm166, %v168, %v169
    %v171 = vrot.slane %v169, 4
    %175 = vst.msk [vmem:[#allocation2 + $0x8] sm:$0x8] %vm62, %v167
    %176 = vst.msk [vmem:[#allocation2 + $0xc] sm:$0xf] %vm147, %v170
    %vm177 = vcmask 518144
    %178 = vst.msk [vmem:[#allocation2 + $0x10] sm:$0x7] %vm177, %v171
    %v179 = vld [vmem:[%s5] sm:$0x3]
    %v180 = vld [vmem:[#allocation2] sm:$0xf]
    %v181 = vld [vmem:[#allocation2 + $0x4] sm:$0xf]
    %v182 = vld [vmem:[#allocation2 + $0x8] sm:$0xf]
    %v183 = vld [vmem:[#allocation2 + $0xc] sm:$0xf]
    %v184 = vld [vmem:[#allocation2 + $0x10] sm:$0x3]
    %v185 = vld [vmem:[%s4] sm:$0xff]
    %v186 = vld [vmem:[%s4 + $0x8] sm:$0xff]
    %v187 = vld [vmem:[%s4 + $0x10] sm:$0xff]
    %v188 = vld [vmem:[%s4 + $0x18] sm:$0xff]
    %v189 = vld [vmem:[%s4 + $0x20] sm:$0xff]
    %v190 = vld [vmem:[%s4 + $0x28] sm:$0xff]
    %v191 = vld [vmem:[%s4 + $0x30] sm:$0xff]
    %v192 = vld [vmem:[%s4 + $0x38] sm:$0xff]
    %v193 = vld [vmem:[#allocation2 + $0x10] sm:$0x7]
    %s194 = scalar_lea.vmem %s4, 64
    %v195 = vld [vmem:[%s194] sm:$0xff]
    %v196 = vld [vmem:[%s194 + $0x8] sm:$0xff]
    %v197 = vld [vmem:[%s194 + $0x10] sm:$0xff]
    %v198 = vld [vmem:[%s194 + $0x18] sm:$0xff]
    %v199 = vld [vmem:[%s194 + $0x20] sm:$0xff]
    %v200 = vld [vmem:[%s194 + $0x28] sm:$0xff]
    %v201 = vld [vmem:[%s194 + $0x30] sm:$0xff]
    %v202 = vld [vmem:[%s194 + $0x38] sm:$0xff]
    %v208 = vunpack.c.l.b16 %v180
    %v209 = vunpack.c.l.b16 %v181
    %v210 = vunpack.c.l.b16 %v182
    %v211 = vunpack.c.l.b16 %v183
    %v212 = vunpack.c.l.b16 %v193
    %v213 = vpack.c.b16 %v209, %v208
    %v214 = vpack.c.b16 %v211, %v210
    %v215 = vpack.c.b16 %v212, %v212
    %vm216 = vsmask.f32 7424
    %v218 = vshrl.u32 %v213, 16
    %v220 = vshll.u32 %v213, 16
    %v222 = vrot.slane %v220, 1
    %v223 = vor.u32 %v218, %v222
    %v225 = vshll.u32 %v214, 16
    %v227 = vrot.slane %v225, 1
    %v228 = vsel %vm216, %v223, %v227
    %v229 = vshrl.u32 %v214, 16
    %v231 = vor.u32 %v229, %v227
    %v233 = vshll.u32 %v215, 16
    %v235 = vrot.slane %v233, 1
    %v236 = vsel %vm216, %v231, %v235
    %v237 = vshrl.u32 %v215, 16
    %v239 = vor.u32 %v237, %v235
    %v248 = vunpack.c.l.b16 %v195
    %v249 = vunpack.c.h.b16 %v195
    %v250 = vunpack.c.l.b16 %v196
    %v251 = vunpack.c.h.b16 %v196
    %v252 = vunpack.c.l.b16 %v197
    %v253 = vunpack.c.h.b16 %v197
    %v254 = vunpack.c.l.b16 %v198
    %v255 = vunpack.c.h.b16 %v198
    %v256 = vunpack.c.l.b16 %v199
    %v257 = vunpack.c.h.b16 %v199
    %v258 = vunpack.c.l.b16 %v200
    %v259 = vunpack.c.h.b16 %v200
    %v260 = vunpack.c.l.b16 %v201
    %v261 = vunpack.c.h.b16 %v201
    %v262 = vunpack.c.l.b16 %v202
    %v263 = vunpack.c.h.b16 %v202
    %v264 = vpack.c.b16 %v250, %v248
    %v265 = vpack.c.b16 %v251, %v249
    %v266 = vpack.c.b16 %v254, %v252
    %v267 = vpack.c.b16 %v255, %v253
    %v268 = vpack.c.b16 %v258, %v256
    %v269 = vpack.c.b16 %v259, %v257
    %v270 = vpack.c.b16 %v262, %v260
    %v271 = vpack.c.b16 %v263, %v261
    %vm280 = vcmask 523264
    %v282 = vsel %vm280, %v228, 0
    %v285 = vsel %vm280, %v236, 0
    %v288 = vsel %vm280, %v239, 0
    %290 = vmatprep.subr.bf16.mxu0 0
    %291 = vmatpush1.bf16.msra.mxu0 0
    %292 = vmatprep.subr.bf16.mxu0 0
    %293 = vmatpush1.bf16.msra.mxu0 0
    %294 = vmatprep.subr.bf16.mxu0 0
    %295 = vmatpush1.bf16.msra.mxu0 0
    %296 = vmatprep.subr.bf16.mxu0 0
    %297 = vmatpush1.bf16.msra.mxu0 0
    %298 = vmatprep.subr.bf16.mxu0 %v271
    %299 = vmatpush1.bf16.msra.mxu0 %v270
    %300 = vmatprep.subr.bf16.mxu0 %v269
    %301 = vmatpush1.bf16.msra.mxu0 %v268
    %302 = vmatprep.subr.bf16.mxu0 %v267
    %303 = vmatpush1.bf16.msra.mxu0 %v266
    %304 = vmatprep.subr.bf16.mxu0 %v265
    %305 = vmatpush1.bf16.msra.mxu0 %v264
    %306 = vmatprep.subr.bf16.mxu0 0
    %307 = vmatpush2.bf16.msra.mxu0 0
    %308 = vmatprep.subr.bf16.mxu0 0
    %309 = vmatpush2.bf16.msra.mxu0 0
    %310 = vmatprep.subr.bf16.mxu0 0
    %311 = vmatpush2.bf16.msra.mxu0 0
    %312 = vmatprep.subr.bf16.mxu0 0
    %313 = vmatpush2.bf16.msra.mxu0 0
    %314 = vmatprep.subr.bf16.mxu0 0
    %315 = vmatpush2.bf16.msra.mxu0 0
    %316 = vmatprep.subr.bf16.mxu0 0
    %317 = vmatpush2.bf16.msra.mxu0 0
    %318 = vmatprep.subr.bf16.mxu0 0
    %319 = vmatpush2.bf16.msra.mxu0 0
    %320 = vmatprep.subr.bf16.mxu0 0
    %321 = vmatpush2.bf16.msra.mxu0 0
    %322 = vmatprep.mubr.bf16.mxu0 0
    %323 = vmatmul.mubr.bf16.gmra.mxu0 %v282
    %v324 = vpop.f32.mrf.mxu0
    %v325 = vadd.f32 0.0, %v324
    %v326 = vpop.f32.mrf.mxu0
    %v327 = vadd.f32 0.0, %v326
    %v328 = vpop.f32.mrf.mxu0
    %v329 = vadd.f32 0.0, %v328
    %v330 = vpop.f32.mrf.mxu0
    %v331 = vadd.f32 0.0, %v330
    %332 = vmatprep.mubr.bf16.mxu0 0
    %333 = vmatmul.mubr.bf16.gmra.mxu0 %v285
    %v334 = vpop.f32.mrf.mxu0
    %v335 = vadd.f32 0.0, %v334
    %v336 = vpop.f32.mrf.mxu0
    %v337 = vadd.f32 0.0, %v336
    %v338 = vpop.f32.mrf.mxu0
    %v339 = vadd.f32 0.0, %v338
    %v340 = vpop.f32.mrf.mxu0
    %v341 = vadd.f32 0.0, %v340
    %342 = vmatprep.mubr.bf16.mxu0 0
    %343 = vmatmul.mubr.bf16.gmra.mxu0 %v288
    %v344 = vpop.f32.mrf.mxu0
    %v345 = vadd.f32 0.0, %v344
    %v346 = vpop.f32.mrf.mxu0
    %v347 = vadd.f32 0.0, %v346
    %v348 = vpop.f32.mrf.mxu0
    %v349 = vpop.f32.mrf.mxu0
    %350 = vdwg.mxu0
    %v352 = vunpack.c.l.b16 %v184
    %v353 = vpack.c.b16 %v352, %v352
    %v362 = vunpack.c.l.b16 %v185
    %v363 = vunpack.c.h.b16 %v185
    %v364 = vunpack.c.l.b16 %v186
    %v365 = vunpack.c.h.b16 %v186
    %v366 = vunpack.c.l.b16 %v187
    %v367 = vunpack.c.h.b16 %v187
    %v368 = vunpack.c.l.b16 %v188
    %v369 = vunpack.c.h.b16 %v188
    %v370 = vunpack.c.l.b16 %v189
    %v371 = vunpack.c.h.b16 %v189
    %v372 = vunpack.c.l.b16 %v190
    %v373 = vunpack.c.h.b16 %v190
    %v374 = vunpack.c.l.b16 %v191
    %v375 = vunpack.c.h.b16 %v191
    %v376 = vunpack.c.l.b16 %v192
    %v377 = vunpack.c.h.b16 %v192
    %v378 = vpack.c.b16 %v364, %v362
    %v379 = vpack.c.b16 %v365, %v363
    %v380 = vpack.c.b16 %v368, %v366
    %v381 = vpack.c.b16 %v369, %v367
    %v382 = vpack.c.b16 %v372, %v370
    %v383 = vpack.c.b16 %v373, %v371
    %v384 = vpack.c.b16 %v376, %v374
    %v385 = vpack.c.b16 %v377, %v375
    %v394 = vsel %vm280, %v213, 0
    %v396 = vsel %vm280, %v214, 0
    %v399 = vsel %vm280, %v353, 0
    %401 = vmatprep.subr.bf16.mxu0 0
    %402 = vmatpush1.bf16.msra.mxu0 0
    %403 = vmatprep.subr.bf16.mxu0 0
    %404 = vmatpush1.bf16.msra.mxu0 0
    %405 = vmatprep.subr.bf16.mxu0 0
    %406 = vmatpush1.bf16.msra.mxu0 0
    %407 = vmatprep.subr.bf16.mxu0 0
    %408 = vmatpush1.bf16.msra.mxu0 0
    %409 = vmatprep.subr.bf16.mxu0 %v385
    %410 = vmatpush1.bf16.msra.mxu0 %v384
    %411 = vmatprep.subr.bf16.mxu0 %v383
    %412 = vmatpush1.bf16.msra.mxu0 %v382
    %413 = vmatprep.subr.bf16.mxu0 %v381
    %414 = vmatpush1.bf16.msra.mxu0 %v380
    %415 = vmatprep.subr.bf16.mxu0 %v379
    %416 = vmatpush1.bf16.msra.mxu0 %v378
    %417 = vmatprep.subr.bf16.mxu0 0
    %418 = vmatpush2.bf16.msra.mxu0 0
    %419 = vmatprep.subr.bf16.mxu0 0
    %420 = vmatpush2.bf16.msra.mxu0 0
    %421 = vmatprep.subr.bf16.mxu0 0
    %422 = vmatpush2.bf16.msra.mxu0 0
    %423 = vmatprep.subr.bf16.mxu0 0
    %424 = vmatpush2.bf16.msra.mxu0 0
    %425 = vmatprep.subr.bf16.mxu0 0
    %426 = vmatpush2.bf16.msra.mxu0 0
    %427 = vmatprep.subr.bf16.mxu0 0
    %428 = vmatpush2.bf16.msra.mxu0 0
    %429 = vmatprep.subr.bf16.mxu0 0
    %430 = vmatpush2.bf16.msra.mxu0 0
    %431 = vmatprep.subr.bf16.mxu0 0
    %432 = vmatpush2.bf16.msra.mxu0 0
    %433 = vmatprep.mubr.bf16.mxu0 0
    %434 = vmatmul.mubr.bf16.gmra.mxu0 %v394
    %v435 = vpop.f32.mrf.mxu0
    %v436 = vadd.f32 %v325, %v435
    %v437 = vpop.f32.mrf.mxu0
    %v438 = vadd.f32 %v327, %v437
    %v439 = vpop.f32.mrf.mxu0
    %v440 = vadd.f32 %v329, %v439
    %v441 = vpop.f32.mrf.mxu0
    %v442 = vadd.f32 %v331, %v441
    %443 = vmatprep.mubr.bf16.mxu0 0
    %444 = vmatmul.mubr.bf16.gmra.mxu0 %v396
    %v445 = vpop.f32.mrf.mxu0
    %v446 = vadd.f32 %v335, %v445
    %v447 = vpop.f32.mrf.mxu0
    %v448 = vadd.f32 %v337, %v447
    %v449 = vpop.f32.mrf.mxu0
    %v450 = vadd.f32 %v339, %v449
    %v451 = vpop.f32.mrf.mxu0
    %v452 = vadd.f32 %v341, %v451
    %453 = vmatprep.mubr.bf16.mxu0 0
    %454 = vmatmul.mubr.bf16.gmra.mxu0 %v399
    %v455 = vpop.f32.mrf.mxu0
    %v456 = vadd.f32 %v345, %v455
    %v457 = vpop.f32.mrf.mxu0
    %v458 = vadd.f32 %v347, %v457
    %v459 = vpop.f32.mrf.mxu0
    %v460 = vpop.f32.mrf.mxu0
    %461 = vdwg.mxu0
    %v462 = vld [vmem:[#allocation2] sm:$0xe]
    %s463 = scalar_lea.vmem %s4, 128
    %v464 = vld [vmem:[%s463] sm:$0xff]
    %v465 = vld [vmem:[%s463 + $0x8] sm:$0xff]
    %v466 = vld [vmem:[%s463 + $0x10] sm:$0xff]
    %v467 = vld [vmem:[%s463 + $0x18] sm:$0xff]
    %v468 = vld [vmem:[%s463 + $0x20] sm:$0xff]
    %v469 = vld [vmem:[%s463 + $0x28] sm:$0xff]
    %v470 = vld [vmem:[%s463 + $0x30] sm:$0xff]
    %v471 = vld [vmem:[%s463 + $0x38] sm:$0xff]
    %v473 = vunpack.c.l.b16 %v462
    %v474 = vpack.c.b16 %v209, %v473
    %vm475 = vcmask 1046528
    %v476 = vrot.slane %v474, 1
    %v477 = vrot.slane %v214, 1
    %v478 = vsel %vm475, %v476, %v477
    %v479 = vrot.slane %v215, 1
    %v480 = vsel %vm475, %v477, %v479
    %v489 = vunpack.c.l.b16 %v464
    %v490 = vunpack.c.h.b16 %v464
    %v491 = vunpack.c.l.b16 %v465
    %v492 = vunpack.c.h.b16 %v465
    %v493 = vunpack.c.l.b16 %v466
    %v494 = vunpack.c.h.b16 %v466
    %v495 = vunpack.c.l.b16 %v467
    %v496 = vunpack.c.h.b16 %v467
    %v497 = vunpack.c.l.b16 %v468
    %v498 = vunpack.c.h.b16 %v468
    %v499 = vunpack.c.l.b16 %v469
    %v500 = vunpack.c.h.b16 %v469
    %v501 = vunpack.c.l.b16 %v470
    %v502 = vunpack.c.h.b16 %v470
    %v503 = vunpack.c.l.b16 %v471
    %v504 = vunpack.c.h.b16 %v471
    %v505 = vpack.c.b16 %v491, %v489
    %v506 = vpack.c.b16 %v492, %v490
    %v507 = vpack.c.b16 %v495, %v493
    %v508 = vpack.c.b16 %v496, %v494
    %v509 = vpack.c.b16 %v499, %v497
    %v510 = vpack.c.b16 %v500, %v498
    %v511 = vpack.c.b16 %v503, %v501
    %v512 = vpack.c.b16 %v504, %v502
    %v522 = vsel %vm280, %v478, 0
    %v525 = vsel %vm280, %v480, 0
    %v528 = vsel %vm280, %v479, 0
    %530 = vmatprep.subr.bf16.mxu0 0
    %531 = vmatpush1.bf16.msra.mxu0 0
    %532 = vmatprep.subr.bf16.mxu0 0
    %533 = vmatpush1.bf16.msra.mxu0 0
    %534 = vmatprep.subr.bf16.mxu0 0
    %535 = vmatpush1.bf16.msra.mxu0 0
    %536 = vmatprep.subr.bf16.mxu0 0
    %537 = vmatpush1.bf16.msra.mxu0 0
    %538 = vmatprep.subr.bf16.mxu0 %v512
    %539 = vmatpush1.bf16.msra.mxu0 %v511
    %540 = vmatprep.subr.bf16.mxu0 %v510
    %541 = vmatpush1.bf16.msra.mxu0 %v509
    %542 = vmatprep.subr.bf16.mxu0 %v508
    %543 = vmatpush1.bf16.msra.mxu0 %v507
    %544 = vmatprep.subr.bf16.mxu0 %v506
    %545 = vmatpush1.bf16.msra.mxu0 %v505
    %546 = vmatprep.subr.bf16.mxu0 0
    %547 = vmatpush2.bf16.msra.mxu0 0
    %548 = vmatprep.subr.bf16.mxu0 0
    %549 = vmatpush2.bf16.msra.mxu0 0
    %550 = vmatprep.subr.bf16.mxu0 0
    %551 = vmatpush2.bf16.msra.mxu0 0
    %552 = vmatprep.subr.bf16.mxu0 0
    %553 = vmatpush2.bf16.msra.mxu0 0
    %554 = vmatprep.subr.bf16.mxu0 0
    %555 = vmatpush2.bf16.msra.mxu0 0
    %556 = vmatprep.subr.bf16.mxu0 0
    %557 = vmatpush2.bf16.msra.mxu0 0
    %558 = vmatprep.subr.bf16.mxu0 0
    %559 = vmatpush2.bf16.msra.mxu0 0
    %560 = vmatprep.subr.bf16.mxu0 0
    %561 = vmatpush2.bf16.msra.mxu0 0
    %562 = vmatprep.mubr.bf16.mxu0 0
    %563 = vmatmul.mubr.bf16.gmra.mxu0 %v522
    %v564 = vpop.f32.mrf.mxu0
    %v565 = vadd.f32 0.0, %v564
    %v566 = vpop.f32.mrf.mxu0
    %v567 = vadd.f32 0.0, %v566
    %v568 = vpop.f32.mrf.mxu0
    %v569 = vadd.f32 0.0, %v568
    %v570 = vpop.f32.mrf.mxu0
    %v571 = vadd.f32 0.0, %v570
    %572 = vmatprep.mubr.bf16.mxu0 0
    %573 = vmatmul.mubr.bf16.gmra.mxu0 %v525
    %v574 = vpop.f32.mrf.mxu0
    %v575 = vadd.f32 0.0, %v574
    %v576 = vpop.f32.mrf.mxu0
    %v577 = vadd.f32 0.0, %v576
    %v578 = vpop.f32.mrf.mxu0
    %v579 = vadd.f32 0.0, %v578
    %v580 = vpop.f32.mrf.mxu0
    %v581 = vadd.f32 0.0, %v580
    %582 = vmatprep.mubr.bf16.mxu0 0
    %583 = vmatmul.mubr.bf16.gmra.mxu0 %v528
    %v584 = vpop.f32.mrf.mxu0
    %v585 = vadd.f32 0.0, %v584
    %v586 = vpop.f32.mrf.mxu0
    %v587 = vadd.f32 0.0, %v586
    %v588 = vpop.f32.mrf.mxu0
    %v589 = vpop.f32.mrf.mxu0
    %590 = vdwg.mxu0
    %v591 = vadd.f32 %v436, %v565
    %v592 = vadd.f32 %v438, %v567
    %v593 = vadd.f32 %v440, %v569
    %v594 = vadd.f32 %v442, %v571
    %v595 = vadd.f32 %v446, %v575
    %v596 = vadd.f32 %v448, %v577
    %v597 = vadd.f32 %v450, %v579
    %v598 = vadd.f32 %v452, %v581
    %v599 = vadd.f32 %v456, %v585
    %v600 = vadd.f32 %v458, %v587
    %v601 = vld [vmem:[#allocation2 + $0x10] sm:$0xf]
    %s602 = scalar_lea.vmem %s4, 192
    %v603 = vld [vmem:[%s602] sm:$0xff]
    %v604 = vld [vmem:[%s602 + $0x8] sm:$0xff]
    %v605 = vld [vmem:[%s602 + $0x10] sm:$0xff]
    %v606 = vld [vmem:[%s602 + $0x18] sm:$0xff]
    %v607 = vld [vmem:[%s602 + $0x20] sm:$0xff]
    %v608 = vld [vmem:[%s602 + $0x28] sm:$0xff]
    %v609 = vld [vmem:[%s602 + $0x30] sm:$0xff]
    %v610 = vld [vmem:[%s602 + $0x38] sm:$0xff]
    %v612 = vunpack.c.l.b16 %v601
    %v613 = vpack.c.b16 %v612, %v612
    %vm614 = vsmask.f32 6400
    %v616 = vshrl.u32 %v474, 16
    %v618 = vrot.slane %v616, 1
    %v619 = vshll.u32 %v474, 16
    %v621 = vrot.slane %v619, 2
    %v622 = vor.u32 %v618, %v621
    %v623 = vrot.slane %v229, 1
    %v624 = vrot.slane %v225, 2
    %v625 = vor.u32 %v623, %v624
    %v626 = vsel %vm614, %v622, %v625
    %v628 = vshrl.u32 %v613, 16
    %v630 = vrot.slane %v628, 1
    %v631 = vshll.u32 %v613, 16
    %v633 = vrot.slane %v631, 2
    %v634 = vor.u32 %v630, %v633
    %v635 = vsel %vm614, %v625, %v634
    %v644 = vunpack.c.l.b16 %v603
    %v645 = vunpack.c.h.b16 %v603
    %v646 = vunpack.c.l.b16 %v604
    %v647 = vunpack.c.h.b16 %v604
    %v648 = vunpack.c.l.b16 %v605
    %v649 = vunpack.c.h.b16 %v605
    %v650 = vunpack.c.l.b16 %v606
    %v651 = vunpack.c.h.b16 %v606
    %v652 = vunpack.c.l.b16 %v607
    %v653 = vunpack.c.h.b16 %v607
    %v654 = vunpack.c.l.b16 %v608
    %v655 = vunpack.c.h.b16 %v608
    %v656 = vunpack.c.l.b16 %v609
    %v657 = vunpack.c.h.b16 %v609
    %v658 = vunpack.c.l.b16 %v610
    %v659 = vunpack.c.h.b16 %v610
    %v660 = vpack.c.b16 %v646, %v644
    %v661 = vpack.c.b16 %v647, %v645
    %v662 = vpack.c.b16 %v650, %v648
    %v663 = vpack.c.b16 %v651, %v649
    %v664 = vpack.c.b16 %v654, %v652
    %v665 = vpack.c.b16 %v655, %v653
    %v666 = vpack.c.b16 %v658, %v656
    %v667 = vpack.c.b16 %v659, %v657
    %v677 = vsel %vm280, %v626, 0
    %v680 = vsel %vm280, %v635, 0
    %v683 = vsel %vm280, %v634, 0
    %685 = vmatprep.subr.bf16.mxu0 0
    %686 = vmatpush1.bf16.msra.mxu0 0
    %687 = vmatprep.subr.bf16.mxu0 0
    %688 = vmatpush1.bf16.msra.mxu0 0
    %689 = vmatprep.subr.bf16.mxu0 0
    %690 = vmatpush1.bf16.msra.mxu0 0
    %691 = vmatprep.subr.bf16.mxu0 0
    %692 = vmatpush1.bf16.msra.mxu0 0
    %693 = vmatprep.subr.bf16.mxu0 %v667
    %694 = vmatpush1.bf16.msra.mxu0 %v666
    %695 = vmatprep.subr.bf16.mxu0 %v665
    %696 = vmatpush1.bf16.msra.mxu0 %v664
    %697 = vmatprep.subr.bf16.mxu0 %v663
    %698 = vmatpush1.bf16.msra.mxu0 %v662
    %699 = vmatprep.subr.bf16.mxu0 %v661
    %700 = vmatpush1.bf16.msra.mxu0 %v660
    %701 = vmatprep.subr.bf16.mxu0 0
    %702 = vmatpush2.bf16.msra.mxu0 0
    %703 = vmatprep.subr.bf16.mxu0 0
    %704 = vmatpush2.bf16.msra.mxu0 0
    %705 = vmatprep.subr.bf16.mxu0 0
    %706 = vmatpush2.bf16.msra.mxu0 0
    %707 = vmatprep.subr.bf16.mxu0 0
    %708 = vmatpush2.bf16.msra.mxu0 0
    %709 = vmatprep.subr.bf16.mxu0 0
    %710 = vmatpush2.bf16.msra.mxu0 0
    %711 = vmatprep.subr.bf16.mxu0 0
    %712 = vmatpush2.bf16.msra.mxu0 0
    %713 = vmatprep.subr.bf16.mxu0 0
    %714 = vmatpush2.bf16.msra.mxu0 0
    %715 = vmatprep.subr.bf16.mxu0 0
    %716 = vmatpush2.bf16.msra.mxu0 0
    %717 = vmatprep.mubr.bf16.mxu0 0
    %718 = vmatmul.mubr.bf16.gmra.mxu0 %v677
    %v719 = vpop.f32.mrf.mxu0
    %v720 = vadd.f32 0.0, %v719
    %v721 = vpop.f32.mrf.mxu0
    %v722 = vadd.f32 0.0, %v721
    %v723 = vpop.f32.mrf.mxu0
    %v724 = vadd.f32 0.0, %v723
    %v725 = vpop.f32.mrf.mxu0
    %v726 = vadd.f32 0.0, %v725
    %727 = vmatprep.mubr.bf16.mxu0 0
    %728 = vmatmul.mubr.bf16.gmra.mxu0 %v680
    %v729 = vpop.f32.mrf.mxu0
    %v730 = vadd.f32 0.0, %v729
    %v731 = vpop.f32.mrf.mxu0
    %v732 = vadd.f32 0.0, %v731
    %v733 = vpop.f32.mrf.mxu0
    %v734 = vadd.f32 0.0, %v733
    %v735 = vpop.f32.mrf.mxu0
    %v736 = vadd.f32 0.0, %v735
    %737 = vmatprep.mubr.bf16.mxu0 0
    %738 = vmatmul.mubr.bf16.gmra.mxu0 %v683
    %v739 = vpop.f32.mrf.mxu0
    %v740 = vadd.f32 0.0, %v739
    %v741 = vpop.f32.mrf.mxu0
    %v742 = vadd.f32 0.0, %v741
    %v743 = vpop.f32.mrf.mxu0
    %v744 = vpop.f32.mrf.mxu0
    %745 = vdwg.mxu0
    %v746 = vadd.f32 %v591, %v720
    %v747 = vadd.f32 %v592, %v722
    %v748 = vadd.f32 %v593, %v724
    %v749 = vadd.f32 %v594, %v726
    %v750 = vadd.f32 %v595, %v730
    %v751 = vadd.f32 %v596, %v732
    %v752 = vadd.f32 %v597, %v734
    %v753 = vadd.f32 %v598, %v736
    %v754 = vadd.f32 %v599, %v740
    %v755 = vadd.f32 %v600, %v742
    %v756 = vld [vmem:[#allocation2] sm:$0xc]
    %s757 = scalar_lea.vmem %s4, 256
    %v758 = vld [vmem:[%s757] sm:$0xff]
    %v759 = vld [vmem:[%s757 + $0x8] sm:$0xff]
    %v760 = vld [vmem:[%s757 + $0x10] sm:$0xff]
    %v761 = vld [vmem:[%s757 + $0x18] sm:$0xff]
    %v762 = vld [vmem:[%s757 + $0x20] sm:$0xff]
    %v763 = vld [vmem:[%s757 + $0x28] sm:$0xff]
    %v764 = vld [vmem:[%s757 + $0x30] sm:$0xff]
    %v765 = vld [vmem:[%s757 + $0x38] sm:$0xff]
    %v767 = vunpack.c.l.b16 %v756
    %v768 = vpack.c.b16 %v209, %v767
    %vm769 = vcmask 1045504
    %v770 = vrot.slane %v768, 2
    %v771 = vrot.slane %v214, 2
    %v772 = vsel %vm769, %v770, %v771
    %v773 = vrot.slane %v613, 2
    %v774 = vsel %vm769, %v771, %v773
    %v783 = vunpack.c.l.b16 %v758
    %v784 = vunpack.c.h.b16 %v758
    %v785 = vunpack.c.l.b16 %v759
    %v786 = vunpack.c.h.b16 %v759
    %v787 = vunpack.c.l.b16 %v760
    %v788 = vunpack.c.h.b16 %v760
    %v789 = vunpack.c.l.b16 %v761
    %v790 = vunpack.c.h.b16 %v761
    %v791 = vunpack.c.l.b16 %v762
    %v792 = vunpack.c.h.b16 %v762
    %v793 = vunpack.c.l.b16 %v763
    %v794 = vunpack.c.h.b16 %v763
    %v795 = vunpack.c.l.b16 %v764
    %v796 = vunpack.c.h.b16 %v764
    %v797 = vunpack.c.l.b16 %v765
    %v798 = vunpack.c.h.b16 %v765
    %v799 = vpack.c.b16 %v785, %v783
    %v800 = vpack.c.b16 %v786, %v784
    %v801 = vpack.c.b16 %v789, %v787
    %v802 = vpack.c.b16 %v790, %v788
    %v803 = vpack.c.b16 %v793, %v791
    %v804 = vpack.c.b16 %v794, %v792
    %v805 = vpack.c.b16 %v797, %v795
    %v806 = vpack.c.b16 %v798, %v796
    %v816 = vsel %vm280, %v772, 0
    %v819 = vsel %vm280, %v774, 0
    %v822 = vsel %vm280, %v773, 0
    %824 = vmatprep.subr.bf16.mxu0 0
    %825 = vmatpush1.bf16.msra.mxu0 0
    %826 = vmatprep.subr.bf16.mxu0 0
    %827 = vmatpush1.bf16.msra.mxu0 0
    %828 = vmatprep.subr.bf16.mxu0 0
    %829 = vmatpush1.bf16.msra.mxu0 0
    %830 = vmatprep.subr.bf16.mxu0 0
    %831 = vmatpush1.bf16.msra.mxu0 0
    %832 = vmatprep.subr.bf16.mxu0 %v806
    %833 = vmatpush1.bf16.msra.mxu0 %v805
    %834 = vmatprep.subr.bf16.mxu0 %v804
    %835 = vmatpush1.bf16.msra.mxu0 %v803
    %836 = vmatprep.subr.bf16.mxu0 %v802
    %837 = vmatpush1.bf16.msra.mxu0 %v801
    %838 = vmatprep.subr.bf16.mxu0 %v800
    %839 = vmatpush1.bf16.msra.mxu0 %v799
    %840 = vmatprep.subr.bf16.mxu0 0
    %841 = vmatpush2.bf16.msra.mxu0 0
    %842 = vmatprep.subr.bf16.mxu0 0
    %843 = vmatpush2.bf16.msra.mxu0 0
    %844 = vmatprep.subr.bf16.mxu0 0
    %845 = vmatpush2.bf16.msra.mxu0 0
    %846 = vmatprep.subr.bf16.mxu0 0
    %847 = vmatpush2.bf16.msra.mxu0 0
    %848 = vmatprep.subr.bf16.mxu0 0
    %849 = vmatpush2.bf16.msra.mxu0 0
    %850 = vmatprep.subr.bf16.mxu0 0
    %851 = vmatpush2.bf16.msra.mxu0 0
    %852 = vmatprep.subr.bf16.mxu0 0
    %853 = vmatpush2.bf16.msra.mxu0 0
    %854 = vmatprep.subr.bf16.mxu0 0
    %855 = vmatpush2.bf16.msra.mxu0 0
    %856 = vmatprep.mubr.bf16.mxu0 0
    %857 = vmatmul.mubr.bf16.gmra.mxu0 %v816
    %v858 = vpop.f32.mrf.mxu0
    %v859 = vadd.f32 0.0, %v858
    %v860 = vpop.f32.mrf.mxu0
    %v861 = vadd.f32 0.0, %v860
    %v862 = vpop.f32.mrf.mxu0
    %v863 = vadd.f32 0.0, %v862
    %v864 = vpop.f32.mrf.mxu0
    %v865 = vadd.f32 0.0, %v864
    %866 = vmatprep.mubr.bf16.mxu0 0
    %867 = vmatmul.mubr.bf16.gmra.mxu0 %v819
    %v868 = vpop.f32.mrf.mxu0
    %v869 = vadd.f32 0.0, %v868
    %v870 = vpop.f32.mrf.mxu0
    %v871 = vadd.f32 0.0, %v870
    %v872 = vpop.f32.mrf.mxu0
    %v873 = vadd.f32 0.0, %v872
    %v874 = vpop.f32.mrf.mxu0
    %v875 = vadd.f32 0.0, %v874
    %876 = vmatprep.mubr.bf16.mxu0 0
    %877 = vmatmul.mubr.bf16.gmra.mxu0 %v822
    %v878 = vpop.f32.mrf.mxu0
    %v879 = vadd.f32 0.0, %v878
    %v880 = vpop.f32.mrf.mxu0
    %v881 = vadd.f32 0.0, %v880
    %v882 = vpop.f32.mrf.mxu0
    %v883 = vpop.f32.mrf.mxu0
    %884 = vdwg.mxu0
    %v885 = vadd.f32 %v746, %v859
    %v886 = vadd.f32 %v747, %v861
    %v887 = vadd.f32 %v748, %v863
    %v888 = vadd.f32 %v749, %v865
    %v889 = vadd.f32 %v750, %v869
    %v890 = vadd.f32 %v751, %v871
    %v891 = vadd.f32 %v752, %v873
    %v892 = vadd.f32 %v753, %v875
    %v893 = vadd.f32 %v754, %v879
    %v894 = vadd.f32 %v755, %v881
    %v896 = vlaneseq
    %v897 = vshrl.u32 %v896, 7
    %v898 = vsub.s32 0, %v897
    %v899 = vrot.slane %v179, %v898
    %v900 = vlaneseq
    %v901 = vshrl.u32 %v900, 7
    %v902 = vsub.s32 1, %v901
    %v903 = vrot.slane %v179, %v902
    %v906 = vadd.f32 %v885, %v899
    %v907 = vadd.f32 %v886, %v903
    %v908 = vadd.f32 %v887, %v899
    %v909 = vadd.f32 %v888, %v903
    %v910 = vadd.f32 %v889, %v899
    %v911 = vadd.f32 %v890, %v903
    %v912 = vadd.f32 %v891, %v899
    %v913 = vadd.f32 %v892, %v903
    %v914 = vadd.f32 %v893, %v899
    %v915 = vadd.f32 %v894, %v903
    %v916 = vmax.f32 %v906, 0.0
    %v917 = vmax.f32 %v907, 0.0
    %v918 = vmax.f32 %v908, 0.0
    %v919 = vmax.f32 %v909, 0.0
    %v920 = vmax.f32 %v910, 0.0
    %v921 = vmax.f32 %v911, 0.0
    %v922 = vmax.f32 %v912, 0.0
    %v923 = vmax.f32 %v913, 0.0
    %v924 = vmax.f32 %v914, 0.0
    %v925 = vmax.f32 %v915, 0.0
    %v926 = vld [vmem:[%s2] sm:$0xff]
    %v927 = vld [vmem:[%s2 + $0x8] sm:$0xff]
    %v928 = vld [vmem:[%s2 + $0x10] sm:$0xff]
    %v929 = vld [vmem:[%s2 + $0x18] sm:$0xff]
    %v930 = vadd.f32 %v916, %v926
    %v931 = vadd.f32 %v917, %v927
    %v932 = vadd.f32 %v918, %v928
    %v933 = vadd.f32 %v919, %v929
    %v934 = vpack.c.bf16 %v932, %v930
    %v935 = vpack.c.bf16 %v933, %v931
    %v938 = vunpack.c.l.b16 %v934
    %v939 = vunpack.c.l.b16 %v935
    %v940 = vunpack.c.h.b16 %v934
    %v941 = vunpack.c.h.b16 %v935
    %v942 = vpack.c.b16 %v939, %v938
    %v943 = vpack.c.b16 %v941, %v940
    %vm944 = vsmask.f32 4368
    %vm945 = vmor %vm65, %vm944
    %v947 = vshrl.u32 %v942, 16
    %v949 = vrot.slane %v947, 7
    %v950 = vshll.u32 %v942, 16
    %v952 = vor.u32 %v949, %v950
    %v953 = vrot.slane %v949, 4
    %v955 = vshrl.u32 %v943, 16
    %v957 = vrot.slane %v955, 7
    %v958 = vshll.u32 %v943, 16
    %v960 = vor.u32 %v957, %v958
    %v961 = vsel %vm945, %v953, %v960
    %v962 = vrot.slane %v957, 4
    %vm966 = vcmask 1043456
    %vm967 = vmand %vm966, %vm74
    %vm968 = vcmask 1047556
    %vm969 = vmand %vm968, %vm76
    %vm970 = vmor %vm969, %vm967
    %v971 = vld [vmem:[#allocation3] sm:$0xff]
    %v972 = vsel %vm970, %v952, %v971
    %973 = vst [vmem:[#allocation3] sm:$0xff] %v972
    %974 = vst [vmem:[#allocation3 + $0x8] sm:$0xff] %v961
    %v975 = vld [vmem:[#allocation3 + $0x10] sm:$0x11]
    %v976 = vsel %vm70, %v962, %v975
    %977 = vst [vmem:[#allocation3 + $0x10] sm:$0x11] %v976
    %s978 = scalar_lea.vmem %s2, 32
    %v979 = vld [vmem:[%s978] sm:$0xff]
    %v980 = vld [vmem:[%s978 + $0x8] sm:$0xff]
    %v981 = vld [vmem:[%s978 + $0x10] sm:$0xff]
    %v982 = vld [vmem:[%s978 + $0x18] sm:$0xff]
    %vm987 = vcmask 1043456
    %v988 = vrot.slane %v979, 4
    %v989 = vrot.slane %v980, 4
    %v990 = vrot.slane %v981, 4
    %v991 = vsel %vm987, %v988, %v990
    %v992 = vrot.slane %v982, 4
    %v993 = vsel %vm987, %v989, %v992
    %v1000 = vadd.f32 %v920, %v988
    %v1001 = vadd.f32 %v921, %v989
    %v1002 = vadd.f32 %v922, %v991
    %v1003 = vadd.f32 %v923, %v993
    %v1004 = vadd.f32 %v924, %v990
    %v1005 = vadd.f32 %v925, %v992
    %v1006 = vpack.c.bf16 %v1002, %v1000
    %v1007 = vpack.c.bf16 %v1003, %v1001
    %v1008 = vpack.c.bf16 %v1004, %v1004
    %v1009 = vpack.c.bf16 %v1005, %v1005
    %v1014 = vunpack.c.l.b16 %v1006
    %v1015 = vunpack.c.l.b16 %v1007
    %v1016 = vunpack.c.h.b16 %v1006
    %v1017 = vunpack.c.h.b16 %v1007
    %v1018 = vunpack.c.l.b16 %v1008
    %v1019 = vunpack.c.l.b16 %v1009
    %v1020 = vpack.c.b16 %v1015, %v1014
    %v1021 = vpack.c.b16 %v1017, %v1016
    %v1022 = vpack.c.b16 %v1019, %v1018
    %vm1023 = vsmask.f32 3328
    %vm1024 = vsmask.f32 7440
    %vm1025 = vmor %vm1023, %vm1024
    %v1027 = vshrl.u32 %v1020, 16
    %v1029 = vrot.slane %v1027, 4
    %v1030 = vshll.u32 %v1020, 16
    %v1032 = vrot.slane %v1030, 5
    %v1033 = vor.u32 %v1029, %v1032
    %v1034 = vrot.slane %v1033, 4
    %v1036 = vshll.u32 %v1021, 16
    %v1038 = vrot.slane %v1036, 5
    %v1039 = vsel %vm1025, %v1034, %v1038
    %v1040 = vshrl.u32 %v1021, 16
    %v1042 = vrot.slane %v1040, 4
    %v1043 = vor.u32 %v1042, %v1038
    %v1044 = vrot.slane %v1043, 4
    %v1046 = vshll.u32 %v1022, 16
    %v1048 = vrot.slane %v1046, 5
    %v1049 = vsel %vm1025, %v1044, %v1048
    %v1050 = vshrl.u32 %v1022, 16
    %v1052 = vrot.slane %v1050, 4
    %v1053 = vor.u32 %v1052, %v1048
    %v1054 = vrot.slane %v1053, 4
    %vm1058 = vcmask 1043457
    %vm1059 = vmand %vm1058, %vm92
    %vm1060 = vcmask 1047557
    %vm1061 = vmand %vm1060, %vm94
    %vm1062 = vmor %vm1061, %vm1059
    %v1063 = vld [vmem:[#allocation3 + $0x10] sm:$0xee]
    %v1064 = vsel %vm1062, %v1039, %v1063
    %1065 = vst [vmem:[#allocation3 + $0x10] sm:$0xee] %v1064
    %1066 = vst [vmem:[#allocation3 + $0x18] sm:$0xff] %v1049
    %vm1067 = vcmask 1041408
    %vm1068 = vmand %vm1067, %vm83
    %vm1069 = vcmask 1045508
    %vm1070 = vmand %vm1069, %vm86
    %vm1071 = vmor %vm1070, %vm1068
    %v1072 = vld [vmem:[#allocation3 + $0x20] sm:$0x33]
    %v1073 = vsel %vm1071, %v1054, %v1072
    %1074 = vst [vmem:[#allocation3 + $0x20] sm:$0x33] %v1073
    %v1075 = vld [vmem:[%s7] sm:$0xf]
    %v1076 = vld [vmem:[#allocation3] sm:$0xff]
    %v1077 = vld [vmem:[#allocation3 + $0x8] sm:$0xff]
    %v1078 = vld [vmem:[#allocation3 + $0x10] sm:$0xff]
    %v1079 = vld [vmem:[#allocation3 + $0x18] sm:$0xff]
    %v1080 = vld [vmem:[#allocation3 + $0x20] sm:$0x11]
    %v1081 = vld [vmem:[#allocation5] sm:$0xff]
    %v1082 = vld [vmem:[#allocation5 + $0x8] sm:$0xff]
    %v1083 = vld [vmem:[#allocation5 + $0x10] sm:$0xff]
    %v1084 = vld [vmem:[#allocation5 + $0x18] sm:$0xff]
    %v1085 = vld [vmem:[#allocation5 + $0x20] sm:$0xff]
    %v1086 = vld [vmem:[#allocation5 + $0x28] sm:$0xff]
    %v1087 = vld [vmem:[#allocation5 + $0x30] sm:$0xff]
    %v1088 = vld [vmem:[#allocation5 + $0x38] sm:$0xff]
    %v1089 = vld [vmem:[#allocation5 + $0x40] sm:$0xff]
    %v1090 = vld [vmem:[#allocation5 + $0x48] sm:$0xff]
    %v1091 = vld [vmem:[#allocation5 + $0x50] sm:$0xff]
    %v1092 = vld [vmem:[#allocation5 + $0x58] sm:$0xff]
    %v1093 = vld [vmem:[#allocation5 + $0x60] sm:$0xff]
    %v1094 = vld [vmem:[#allocation5 + $0x68] sm:$0xff]
    %v1095 = vld [vmem:[#allocation5 + $0x70] sm:$0xff]
    %v1096 = vld [vmem:[#allocation5 + $0x78] sm:$0xff]
    %v1097 = vld [vmem:[#allocation5 + $0x80] sm:$0xff]
    %v1098 = vld [vmem:[#allocation5 + $0x88] sm:$0xff]
    %v1099 = vld [vmem:[#allocation5 + $0x90] sm:$0xff]
    %v1100 = vld [vmem:[#allocation5 + $0x98] sm:$0xff]
    %v1101 = vld [vmem:[#allocation5 + $0xa0] sm:$0xff]
    %v1102 = vld [vmem:[#allocation5 + $0xa8] sm:$0xff]
    %v1103 = vld [vmem:[#allocation5 + $0xb0] sm:$0xff]
    %v1104 = vld [vmem:[#allocation5 + $0xb8] sm:$0xff]
    %v1105 = vld [vmem:[#allocation5 + $0xc0] sm:$0xff]
    %v1106 = vld [vmem:[#allocation5 + $0xc8] sm:$0xff]
    %v1107 = vld [vmem:[#allocation5 + $0xd0] sm:$0xff]
    %v1108 = vld [vmem:[#allocation5 + $0xd8] sm:$0xff]
    %v1109 = vld [vmem:[#allocation5 + $0xe0] sm:$0xff]
    %v1110 = vld [vmem:[#allocation5 + $0xe8] sm:$0xff]
    %v1111 = vld [vmem:[#allocation5 + $0xf0] sm:$0xff]
    %v1112 = vld [vmem:[#allocation5 + $0xf8] sm:$0xff]
    %v1113 = vld [vmem:[#allocation5 + $0x100] sm:$0xff]
    %v1114 = vld [vmem:[#allocation5 + $0x108] sm:$0xff]
    %v1115 = vld [vmem:[#allocation5 + $0x110] sm:$0xff]
    %v1116 = vld [vmem:[#allocation5 + $0x118] sm:$0xff]
    %v1117 = vld [vmem:[#allocation5 + $0x120] sm:$0xff]
    %v1118 = vld [vmem:[#allocation5 + $0x128] sm:$0xff]
    %v1119 = vld [vmem:[#allocation5 + $0x130] sm:$0xff]
    %v1120 = vld [vmem:[#allocation5 + $0x138] sm:$0xff]
    %v1121 = vld [vmem:[#allocation5 + $0x140] sm:$0xff]
    %v1122 = vld [vmem:[#allocation5 + $0x148] sm:$0xff]
    %v1123 = vld [vmem:[#allocation5 + $0x150] sm:$0xff]
    %v1124 = vld [vmem:[#allocation5 + $0x158] sm:$0xff]
    %v1125 = vld [vmem:[#allocation5 + $0x160] sm:$0xff]
    %v1126 = vld [vmem:[#allocation5 + $0x168] sm:$0xff]
    %v1127 = vld [vmem:[#allocation5 + $0x170] sm:$0xff]
    %v1128 = vld [vmem:[#allocation5 + $0x178] sm:$0xff]
    %v1129 = vld [vmem:[#allocation5 + $0x180] sm:$0xff]
    %v1130 = vld [vmem:[#allocation5 + $0x188] sm:$0xff]
    %v1131 = vld [vmem:[#allocation5 + $0x190] sm:$0xff]
    %v1132 = vld [vmem:[#allocation5 + $0x198] sm:$0xff]
    %v1133 = vld [vmem:[#allocation5 + $0x1a0] sm:$0xff]
    %v1134 = vld [vmem:[#allocation5 + $0x1a8] sm:$0xff]
    %v1135 = vld [vmem:[#allocation5 + $0x1b0] sm:$0xff]
    %v1136 = vld [vmem:[#allocation5 + $0x1b8] sm:$0xff]
    %v1137 = vld [vmem:[#allocation5 + $0x1c0] sm:$0xff]
    %v1138 = vld [vmem:[#allocation5 + $0x1c8] sm:$0xff]
    %v1139 = vld [vmem:[#allocation5 + $0x1d0] sm:$0xff]
    %v1140 = vld [vmem:[#allocation5 + $0x1d8] sm:$0xff]
    %v1141 = vld [vmem:[#allocation5 + $0x1e0] sm:$0xff]
    %v1142 = vld [vmem:[#allocation5 + $0x1e8] sm:$0xff]
    %v1143 = vld [vmem:[#allocation5 + $0x1f0] sm:$0xff]
    %v1144 = vld [vmem:[#allocation5 + $0x1f8] sm:$0xff]
    %v1145 = vld [vmem:[#allocation3 + $0x20] sm:$0x33]
    %s1146 = scalar_lea.vmem [#allocation5], 512
    %v1147 = vld [vmem:[%s1146] sm:$0xff]
    %v1148 = vld [vmem:[%s1146 + $0x8] sm:$0xff]
    %v1149 = vld [vmem:[%s1146 + $0x10] sm:$0xff]
    %v1150 = vld [vmem:[%s1146 + $0x18] sm:$0xff]
    %v1151 = vld [vmem:[%s1146 + $0x20] sm:$0xff]
    %v1152 = vld [vmem:[%s1146 + $0x28] sm:$0xff]
    %v1153 = vld [vmem:[%s1146 + $0x30] sm:$0xff]
    %v1154 = vld [vmem:[%s1146 + $0x38] sm:$0xff]
    %v1155 = vld [vmem:[%s1146 + $0x40] sm:$0xff]
    %v1156 = vld [vmem:[%s1146 + $0x48] sm:$0xff]
    %v1157 = vld [vmem:[%s1146 + $0x50] sm:$0xff]
    %v1158 = vld [vmem:[%s1146 + $0x58] sm:$0xff]
    %v1159 = vld [vmem:[%s1146 + $0x60] sm:$0xff]
    %v1160 = vld [vmem:[%s1146 + $0x68] sm:$0xff]
    %v1161 = vld [vmem:[%s1146 + $0x70] sm:$0xff]
    %v1162 = vld [vmem:[%s1146 + $0x78] sm:$0xff]
    %v1163 = vld [vmem:[%s1146 + $0x80] sm:$0xff]
    %v1164 = vld [vmem:[%s1146 + $0x88] sm:$0xff]
    %v1165 = vld [vmem:[%s1146 + $0x90] sm:$0xff]
    %v1166 = vld [vmem:[%s1146 + $0x98] sm:$0xff]
    %v1167 = vld [vmem:[%s1146 + $0xa0] sm:$0xff]
    %v1168 = vld [vmem:[%s1146 + $0xa8] sm:$0xff]
    %v1169 = vld [vmem:[%s1146 + $0xb0] sm:$0xff]
    %v1170 = vld [vmem:[%s1146 + $0xb8] sm:$0xff]
    %v1171 = vld [vmem:[%s1146 + $0xc0] sm:$0xff]
    %v1172 = vld [vmem:[%s1146 + $0xc8] sm:$0xff]
    %v1173 = vld [vmem:[%s1146 + $0xd0] sm:$0xff]
    %v1174 = vld [vmem:[%s1146 + $0xd8] sm:$0xff]
    %v1175 = vld [vmem:[%s1146 + $0xe0] sm:$0xff]
    %v1176 = vld [vmem:[%s1146 + $0xe8] sm:$0xff]
    %v1177 = vld [vmem:[%s1146 + $0xf0] sm:$0xff]
    %v1178 = vld [vmem:[%s1146 + $0xf8] sm:$0xff]
    %v1179 = vld [vmem:[%s1146 + $0x100] sm:$0xff]
    %v1180 = vld [vmem:[%s1146 + $0x108] sm:$0xff]
    %v1181 = vld [vmem:[%s1146 + $0x110] sm:$0xff]
    %v1182 = vld [vmem:[%s1146 + $0x118] sm:$0xff]
    %v1183 = vld [vmem:[%s1146 + $0x120] sm:$0xff]
    %v1184 = vld [vmem:[%s1146 + $0x128] sm:$0xff]
    %v1185 = vld [vmem:[%s1146 + $0x130] sm:$0xff]
    %v1186 = vld [vmem:[%s1146 + $0x138] sm:$0xff]
    %v1187 = vld [vmem:[%s1146 + $0x140] sm:$0xff]
    %v1188 = vld [vmem:[%s1146 + $0x148] sm:$0xff]
    %v1189 = vld [vmem:[%s1146 + $0x150] sm:$0xff]
    %v1190 = vld [vmem:[%s1146 + $0x158] sm:$0xff]
    %v1191 = vld [vmem:[%s1146 + $0x160] sm:$0xff]
    %v1192 = vld [vmem:[%s1146 + $0x168] sm:$0xff]
    %v1193 = vld [vmem:[%s1146 + $0x170] sm:$0xff]
    %v1194 = vld [vmem:[%s1146 + $0x178] sm:$0xff]
    %v1195 = vld [vmem:[%s1146 + $0x180] sm:$0xff]
    %v1196 = vld [vmem:[%s1146 + $0x188] sm:$0xff]
    %v1197 = vld [vmem:[%s1146 + $0x190] sm:$0xff]
    %v1198 = vld [vmem:[%s1146 + $0x198] sm:$0xff]
    %v1199 = vld [vmem:[%s1146 + $0x1a0] sm:$0xff]
    %v1200 = vld [vmem:[%s1146 + $0x1a8] sm:$0xff]
    %v1201 = vld [vmem:[%s1146 + $0x1b0] sm:$0xff]
    %v1202 = vld [vmem:[%s1146 + $0x1b8] sm:$0xff]
    %v1203 = vld [vmem:[%s1146 + $0x1c0] sm:$0xff]
    %v1204 = vld [vmem:[%s1146 + $0x1c8] sm:$0xff]
    %v1205 = vld [vmem:[%s1146 + $0x1d0] sm:$0xff]
    %v1206 = vld [vmem:[%s1146 + $0x1d8] sm:$0xff]
    %v1207 = vld [vmem:[%s1146 + $0x1e0] sm:$0xff]
    %v1208 = vld [vmem:[%s1146 + $0x1e8] sm:$0xff]
    %v1209 = vld [vmem:[%s1146 + $0x1f0] sm:$0xff]
    %v1210 = vld [vmem:[%s1146 + $0x1f8] sm:$0xff]
    %v1216 = vunpack.c.l.b16 %v1076
    %v1217 = vunpack.c.h.b16 %v1076
    %v1218 = vunpack.c.l.b16 %v1077
    %v1219 = vunpack.c.h.b16 %v1077
    %v1220 = vunpack.c.l.b16 %v1078
    %v1221 = vunpack.c.h.b16 %v1078
    %v1222 = vunpack.c.l.b16 %v1079
    %v1223 = vunpack.c.h.b16 %v1079
    %v1224 = vunpack.c.l.b16 %v1145
    %v1225 = vunpack.c.h.b16 %v1145
    %v1226 = vpack.c.b16 %v1218, %v1216
    %v1227 = vpack.c.b16 %v1219, %v1217
    %v1228 = vpack.c.b16 %v1222, %v1220
    %v1229 = vpack.c.b16 %v1223, %v1221
    %v1230 = vpack.c.b16 %v1224, %v1224
    %v1231 = vpack.c.b16 %v1225, %v1225
    %v1233 = vshrl.u32 %v1226, 16
    %v1235 = vshll.u32 %v1226, 16
    %v1237 = vrot.slane %v1235, 1
    %v1238 = vor.u32 %v1233, %v1237
    %v1240 = vshll.u32 %v1228, 16
    %v1242 = vrot.slane %v1240, 1
    %v1243 = vsel %vm216, %v1238, %v1242
    %v1245 = vshrl.u32 %v1227, 16
    %v1247 = vshll.u32 %v1227, 16
    %v1249 = vrot.slane %v1247, 1
    %v1250 = vor.u32 %v1245, %v1249
    %v1252 = vshll.u32 %v1229, 16
    %v1254 = vrot.slane %v1252, 1
    %v1255 = vsel %vm216, %v1250, %v1254
    %v1256 = vshrl.u32 %v1228, 16
    %v1258 = vor.u32 %v1256, %v1242
    %v1260 = vshll.u32 %v1230, 16
    %v1262 = vrot.slane %v1260, 1
    %v1263 = vsel %vm216, %v1258, %v1262
    %v1264 = vshrl.u32 %v1229, 16
    %v1266 = vor.u32 %v1264, %v1254
    %v1268 = vshll.u32 %v1231, 16
    %v1270 = vrot.slane %v1268, 1
    %v1271 = vsel %vm216, %v1266, %v1270
    %v1272 = vshrl.u32 %v1230, 16
    %v1274 = vor.u32 %v1272, %v1262
    %v1275 = vshrl.u32 %v1231, 16
    %v1277 = vor.u32 %v1275, %v1270
    %v1348 = vunpack.c.l.b16 %v1147
    %v1349 = vunpack.c.h.b16 %v1147
    %v1350 = vunpack.c.l.b16 %v1148
    %v1351 = vunpack.c.h.b16 %v1148
    %v1352 = vunpack.c.l.b16 %v1149
    %v1353 = vunpack.c.h.b16 %v1149
    %v1354 = vunpack.c.l.b16 %v1150
    %v1355 = vunpack.c.h.b16 %v1150
    %v1356 = vunpack.c.l.b16 %v1151
    %v1357 = vunpack.c.h.b16 %v1151
    %v1358 = vunpack.c.l.b16 %v1152
    %v1359 = vunpack.c.h.b16 %v1152
    %v1360 = vunpack.c.l.b16 %v1153
    %v1361 = vunpack.c.h.b16 %v1153
    %v1362 = vunpack.c.l.b16 %v1154
    %v1363 = vunpack.c.h.b16 %v1154
    %v1364 = vunpack.c.l.b16 %v1155
    %v1365 = vunpack.c.h.b16 %v1155
    %v1366 = vunpack.c.l.b16 %v1156
    %v1367 = vunpack.c.h.b16 %v1156
    %v1368 = vunpack.c.l.b16 %v1157
    %v1369 = vunpack.c.h.b16 %v1157
    %v1370 = vunpack.c.l.b16 %v1158
    %v1371 = vunpack.c.h.b16 %v1158
    %v1372 = vunpack.c.l.b16 %v1159
    %v1373 = vunpack.c.h.b16 %v1159
    %v1374 = vunpack.c.l.b16 %v1160
    %v1375 = vunpack.c.h.b16 %v1160
    %v1376 = vunpack.c.l.b16 %v1161
    %v1377 = vunpack.c.h.b16 %v1161
    %v1378 = vunpack.c.l.b16 %v1162
    %v1379 = vunpack.c.h.b16 %v1162
    %v1380 = vunpack.c.l.b16 %v1163
    %v1381 = vunpack.c.h.b16 %v1163
    %v1382 = vunpack.c.l.b16 %v1164
    %v1383 = vunpack.c.h.b16 %v1164
    %v1384 = vunpack.c.l.b16 %v1165
    %v1385 = vunpack.c.h.b16 %v1165
    %v1386 = vunpack.c.l.b16 %v1166
    %v1387 = vunpack.c.h.b16 %v1166
    %v1388 = vunpack.c.l.b16 %v1167
    %v1389 = vunpack.c.h.b16 %v1167
    %v1390 = vunpack.c.l.b16 %v1168
    %v1391 = vunpack.c.h.b16 %v1168
    %v1392 = vunpack.c.l.b16 %v1169
    %v1393 = vunpack.c.h.b16 %v1169
    %v1394 = vunpack.c.l.b16 %v1170
    %v1395 = vunpack.c.h.b16 %v1170
    %v1396 = vunpack.c.l.b16 %v1171
    %v1397 = vunpack.c.h.b16 %v1171
    %v1398 = vunpack.c.l.b16 %v1172
    %v1399 = vunpack.c.h.b16 %v1172
    %v1400 = vunpack.c.l.b16 %v1173
    %v1401 = vunpack.c.h.b16 %v1173
    %v1402 = vunpack.c.l.b16 %v1174
    %v1403 = vunpack.c.h.b16 %v1174
    %v1404 = vunpack.c.l.b16 %v1175
    %v1405 = vunpack.c.h.b16 %v1175
    %v1406 = vunpack.c.l.b16 %v1176
    %v1407 = vunpack.c.h.b16 %v1176
    %v1408 = vunpack.c.l.b16 %v1177
    %v1409 = vunpack.c.h.b16 %v1177
    %v1410 = vunpack.c.l.b16 %v1178
    %v1411 = vunpack.c.h.b16 %v1178
    %v1412 = vunpack.c.l.b16 %v1179
    %v1413 = vunpack.c.h.b16 %v1179
    %v1414 = vunpack.c.l.b16 %v1180
    %v1415 = vunpack.c.h.b16 %v1180
    %v1416 = vunpack.c.l.b16 %v1181
    %v1417 = vunpack.c.h.b16 %v1181
    %v1418 = vunpack.c.l.b16 %v1182
    %v1419 = vunpack.c.h.b16 %v1182
    %v1420 = vunpack.c.l.b16 %v1183
    %v1421 = vunpack.c.h.b16 %v1183
    %v1422 = vunpack.c.l.b16 %v1184
    %v1423 = vunpack.c.h.b16 %v1184
    %v1424 = vunpack.c.l.b16 %v1185
    %v1425 = vunpack.c.h.b16 %v1185
    %v1426 = vunpack.c.l.b16 %v1186
    %v1427 = vunpack.c.h.b16 %v1186
    %v1428 = vunpack.c.l.b16 %v1187
    %v1429 = vunpack.c.h.b16 %v1187
    %v1430 = vunpack.c.l.b16 %v1188
    %v1431 = vunpack.c.h.b16 %v1188
    %v1432 = vunpack.c.l.b16 %v1189
    %v1433 = vunpack.c.h.b16 %v1189
    %v1434 = vunpack.c.l.b16 %v1190
    %v1435 = vunpack.c.h.b16 %v1190
    %v1436 = vunpack.c.l.b16 %v1191
    %v1437 = vunpack.c.h.b16 %v1191
    %v1438 = vunpack.c.l.b16 %v1192
    %v1439 = vunpack.c.h.b16 %v1192
    %v1440 = vunpack.c.l.b16 %v1193
    %v1441 = vunpack.c.h.b16 %v1193
    %v1442 = vunpack.c.l.b16 %v1194
    %v1443 = vunpack.c.h.b16 %v1194
    %v1444 = vunpack.c.l.b16 %v1195
    %v1445 = vunpack.c.h.b16 %v1195
    %v1446 = vunpack.c.l.b16 %v1196
    %v1447 = vunpack.c.h.b16 %v1196
    %v1448 = vunpack.c.l.b16 %v1197
    %v1449 = vunpack.c.h.b16 %v1197
    %v1450 = vunpack.c.l.b16 %v1198
    %v1451 = vunpack.c.h.b16 %v1198
    %v1452 = vunpack.c.l.b16 %v1199
    %v1453 = vunpack.c.h.b16 %v1199
    %v1454 = vunpack.c.l.b16 %v1200
    %v1455 = vunpack.c.h.b16 %v1200
    %v1456 = vunpack.c.l.b16 %v1201
    %v1457 = vunpack.c.h.b16 %v1201
    %v1458 = vunpack.c.l.b16 %v1202
    %v1459 = vunpack.c.h.b16 %v1202
    %v1460 = vunpack.c.l.b16 %v1203
    %v1461 = vunpack.c.h.b16 %v1203
    %v1462 = vunpack.c.l.b16 %v1204
    %v1463 = vunpack.c.h.b16 %v1204
    %v1464 = vunpack.c.l.b16 %v1205
    %v1465 = vunpack.c.h.b16 %v1205
    %v1466 = vunpack.c.l.b16 %v1206
    %v1467 = vunpack.c.h.b16 %v1206
    %v1468 = vunpack.c.l.b16 %v1207
    %v1469 = vunpack.c.h.b16 %v1207
    %v1470 = vunpack.c.l.b16 %v1208
    %v1471 = vunpack.c.h.b16 %v1208
    %v1472 = vunpack.c.l.b16 %v1209
    %v1473 = vunpack.c.h.b16 %v1209
    %v1474 = vunpack.c.l.b16 %v1210
    %v1475 = vunpack.c.h.b16 %v1210
    %v1476 = vpack.c.b16 %v1352, %v1348
    %v1477 = vpack.c.b16 %v1353, %v1349
    %v1478 = vpack.c.b16 %v1354, %v1350
    %v1479 = vpack.c.b16 %v1355, %v1351
    %v1480 = vpack.c.b16 %v1360, %v1356
    %v1481 = vpack.c.b16 %v1361, %v1357
    %v1482 = vpack.c.b16 %v1362, %v1358
    %v1483 = vpack.c.b16 %v1363, %v1359
    %v1484 = vpack.c.b16 %v1368, %v1364
    %v1485 = vpack.c.b16 %v1369, %v1365
    %v1486 = vpack.c.b16 %v1370, %v1366
    %v1487 = vpack.c.b16 %v1371, %v1367
    %v1488 = vpack.c.b16 %v1376, %v1372
    %v1489 = vpack.c.b16 %v1377, %v1373
    %v1490 = vpack.c.b16 %v1378, %v1374
    %v1491 = vpack.c.b16 %v1379, %v1375
    %v1492 = vpack.c.b16 %v1384, %v1380
    %v1493 = vpack.c.b16 %v1385, %v1381
    %v1494 = vpack.c.b16 %v1386, %v1382
    %v1495 = vpack.c.b16 %v1387, %v1383
    %v1496 = vpack.c.b16 %v1392, %v1388
    %v1497 = vpack.c.b16 %v1393, %v1389
    %v1498 = vpack.c.b16 %v1394, %v1390
    %v1499 = vpack.c.b16 %v1395, %v1391
    %v1500 = vpack.c.b16 %v1400, %v1396
    %v1501 = vpack.c.b16 %v1401, %v1397
    %v1502 = vpack.c.b16 %v1402, %v1398
    %v1503 = vpack.c.b16 %v1403, %v1399
    %v1504 = vpack.c.b16 %v1408, %v1404
    %v1505 = vpack.c.b16 %v1409, %v1405
    %v1506 = vpack.c.b16 %v1410, %v1406
    %v1507 = vpack.c.b16 %v1411, %v1407
    %v1508 = vpack.c.b16 %v1416, %v1412
    %v1509 = vpack.c.b16 %v1417, %v1413
    %v1510 = vpack.c.b16 %v1418, %v1414
    %v1511 = vpack.c.b16 %v1419, %v1415
    %v1512 = vpack.c.b16 %v1424, %v1420
    %v1513 = vpack.c.b16 %v1425, %v1421
    %v1514 = vpack.c.b16 %v1426, %v1422
    %v1515 = vpack.c.b16 %v1427, %v1423
    %v1516 = vpack.c.b16 %v1432, %v1428
    %v1517 = vpack.c.b16 %v1433, %v1429
    %v1518 = vpack.c.b16 %v1434, %v1430
    %v1519 = vpack.c.b16 %v1435, %v1431
    %v1520 = vpack.c.b16 %v1440, %v1436
    %v1521 = vpack.c.b16 %v1441, %v1437
    %v1522 = vpack.c.b16 %v1442, %v1438
    %v1523 = vpack.c.b16 %v1443, %v1439
    %v1524 = vpack.c.b16 %v1448, %v1444
    %v1525 = vpack.c.b16 %v1449, %v1445
    %v1526 = vpack.c.b16 %v1450, %v1446
    %v1527 = vpack.c.b16 %v1451, %v1447
    %v1528 = vpack.c.b16 %v1456, %v1452
    %v1529 = vpack.c.b16 %v1457, %v1453
    %v1530 = vpack.c.b16 %v1458, %v1454
    %v1531 = vpack.c.b16 %v1459, %v1455
    %v1532 = vpack.c.b16 %v1464, %v1460
    %v1533 = vpack.c.b16 %v1465, %v1461
    %v1534 = vpack.c.b16 %v1466, %v1462
    %v1535 = vpack.c.b16 %v1467, %v1463
    %v1536 = vpack.c.b16 %v1472, %v1468
    %v1537 = vpack.c.b16 %v1473, %v1469
    %v1538 = vpack.c.b16 %v1474, %v1470
    %v1539 = vpack.c.b16 %v1475, %v1471
    %1604 = vmatprep.subr.bf16.mxu0 %v1505
    %1605 = vmatpush1.bf16.msra.mxu0 %v1504
    %1606 = vmatprep.subr.bf16.mxu0 %v1501
    %1607 = vmatpush1.bf16.msra.mxu0 %v1500
    %1608 = vmatprep.subr.bf16.mxu0 %v1497
    %1609 = vmatpush1.bf16.msra.mxu0 %v1496
    %1610 = vmatprep.subr.bf16.mxu0 %v1493
    %1611 = vmatpush1.bf16.msra.mxu0 %v1492
    %1612 = vmatprep.subr.bf16.mxu0 %v1489
    %1613 = vmatpush1.bf16.msra.mxu0 %v1488
    %1614 = vmatprep.subr.bf16.mxu0 %v1485
    %1615 = vmatpush1.bf16.msra.mxu0 %v1484
    %1616 = vmatprep.subr.bf16.mxu0 %v1481
    %1617 = vmatpush1.bf16.msra.mxu0 %v1480
    %1618 = vmatprep.subr.bf16.mxu0 %v1477
    %1619 = vmatpush1.bf16.msra.mxu0 %v1476
    %1620 = vmatprep.subr.bf16.mxu0 %v1537
    %1621 = vmatpush2.bf16.msra.mxu0 %v1536
    %1622 = vmatprep.subr.bf16.mxu0 %v1533
    %1623 = vmatpush2.bf16.msra.mxu0 %v1532
    %1624 = vmatprep.subr.bf16.mxu0 %v1529
    %1625 = vmatpush2.bf16.msra.mxu0 %v1528
    %1626 = vmatprep.subr.bf16.mxu0 %v1525
    %1627 = vmatpush2.bf16.msra.mxu0 %v1524
    %1628 = vmatprep.subr.bf16.mxu0 %v1521
    %1629 = vmatpush2.bf16.msra.mxu0 %v1520
    %1630 = vmatprep.subr.bf16.mxu0 %v1517
    %1631 = vmatpush2.bf16.msra.mxu0 %v1516
    %1632 = vmatprep.subr.bf16.mxu0 %v1513
    %1633 = vmatpush2.bf16.msra.mxu0 %v1512
    %1634 = vmatprep.subr.bf16.mxu0 %v1509
    %1635 = vmatpush2.bf16.msra.mxu0 %v1508
    %1636 = vmatprep.mubr.bf16.mxu0 %v1255
    %1637 = vmatmul.mubr.bf16.gmra.mxu0 %v1243
    %v1638 = vpop.f32.mrf.mxu0
    %v1639 = vadd.f32 0.0, %v1638
    %v1640 = vpop.f32.mrf.mxu0
    %v1641 = vadd.f32 0.0, %v1640
    %v1642 = vpop.f32.mrf.mxu0
    %v1643 = vadd.f32 0.0, %v1642
    %v1644 = vpop.f32.mrf.mxu0
    %v1645 = vadd.f32 0.0, %v1644
    %1646 = vmatprep.mubr.bf16.mxu0 %v1271
    %1647 = vmatmul.mubr.bf16.gmra.mxu0 %v1263
    %v1648 = vpop.f32.mrf.mxu0
    %v1649 = vadd.f32 0.0, %v1648
    %v1650 = vpop.f32.mrf.mxu0
    %v1651 = vadd.f32 0.0, %v1650
    %v1652 = vpop.f32.mrf.mxu0
    %v1653 = vadd.f32 0.0, %v1652
    %v1654 = vpop.f32.mrf.mxu0
    %v1655 = vadd.f32 0.0, %v1654
    %1656 = vmatprep.mubr.bf16.mxu0 %v1277
    %1657 = vmatmul.mubr.bf16.gmra.mxu0 %v1274
    %v1658 = vpop.f32.mrf.mxu0
    %v1659 = vadd.f32 0.0, %v1658
    %v1660 = vpop.f32.mrf.mxu0
    %v1661 = vadd.f32 0.0, %v1660
    %v1662 = vpop.f32.mrf.mxu0
    %v1663 = vpop.f32.mrf.mxu0
    %1664 = vdwg.mxu0
    %1665 = vmatprep.subr.bf16.mxu0 %v1507
    %1666 = vmatpush1.bf16.msra.mxu0 %v1506
    %1667 = vmatprep.subr.bf16.mxu0 %v1503
    %1668 = vmatpush1.bf16.msra.mxu0 %v1502
    %1669 = vmatprep.subr.bf16.mxu0 %v1499
    %1670 = vmatpush1.bf16.msra.mxu0 %v1498
    %1671 = vmatprep.subr.bf16.mxu0 %v1495
    %1672 = vmatpush1.bf16.msra.mxu0 %v1494
    %1673 = vmatprep.subr.bf16.mxu0 %v1491
    %1674 = vmatpush1.bf16.msra.mxu0 %v1490
    %1675 = vmatprep.subr.bf16.mxu0 %v1487
    %1676 = vmatpush1.bf16.msra.mxu0 %v1486
    %1677 = vmatprep.subr.bf16.mxu0 %v1483
    %1678 = vmatpush1.bf16.msra.mxu0 %v1482
    %1679 = vmatprep.subr.bf16.mxu0 %v1479
    %1680 = vmatpush1.bf16.msra.mxu0 %v1478
    %1681 = vmatprep.subr.bf16.mxu0 %v1539
    %1682 = vmatpush2.bf16.msra.mxu0 %v1538
    %1683 = vmatprep.subr.bf16.mxu0 %v1535
    %1684 = vmatpush2.bf16.msra.mxu0 %v1534
    %1685 = vmatprep.subr.bf16.mxu0 %v1531
    %1686 = vmatpush2.bf16.msra.mxu0 %v1530
    %1687 = vmatprep.subr.bf16.mxu0 %v1527
    %1688 = vmatpush2.bf16.msra.mxu0 %v1526
    %1689 = vmatprep.subr.bf16.mxu0 %v1523
    %1690 = vmatpush2.bf16.msra.mxu0 %v1522
    %1691 = vmatprep.subr.bf16.mxu0 %v1519
    %1692 = vmatpush2.bf16.msra.mxu0 %v1518
    %1693 = vmatprep.subr.bf16.mxu0 %v1515
    %1694 = vmatpush2.bf16.msra.mxu0 %v1514
    %1695 = vmatprep.subr.bf16.mxu0 %v1511
    %1696 = vmatpush2.bf16.msra.mxu0 %v1510
    %1697 = vmatprep.mubr.bf16.mxu0 %v1255
    %1698 = vmatmul.mubr.bf16.gmra.mxu0 %v1243
    %v1699 = vpop.f32.mrf.mxu0
    %v1700 = vadd.f32 0.0, %v1699
    %v1701 = vpop.f32.mrf.mxu0
    %v1702 = vadd.f32 0.0, %v1701
    %v1703 = vpop.f32.mrf.mxu0
    %v1704 = vadd.f32 0.0, %v1703
    %v1705 = vpop.f32.mrf.mxu0
    %v1706 = vadd.f32 0.0, %v1705
    %1707 = vmatprep.mubr.bf16.mxu0 %v1271
    %1708 = vmatmul.mubr.bf16.gmra.mxu0 %v1263
    %v1709 = vpop.f32.mrf.mxu0
    %v1710 = vadd.f32 0.0, %v1709
    %v1711 = vpop.f32.mrf.mxu0
    %v1712 = vadd.f32 0.0, %v1711
    %v1713 = vpop.f32.mrf.mxu0
    %v1714 = vadd.f32 0.0, %v1713
    %v1715 = vpop.f32.mrf.mxu0
    %v1716 = vadd.f32 0.0, %v1715
    %1717 = vmatprep.mubr.bf16.mxu0 %v1277
    %1718 = vmatmul.mubr.bf16.gmra.mxu0 %v1274
    %v1719 = vpop.f32.mrf.mxu0
    %v1720 = vadd.f32 0.0, %v1719
    %v1721 = vpop.f32.mrf.mxu0
    %v1722 = vadd.f32 0.0, %v1721
    %v1723 = vpop.f32.mrf.mxu0
    %v1724 = vpop.f32.mrf.mxu0
    %1725 = vdwg.mxu0
    %v1727 = vunpack.c.l.b16 %v1080
    %v1728 = vunpack.c.h.b16 %v1080
    %v1729 = vpack.c.b16 %v1727, %v1727
    %v1730 = vpack.c.b16 %v1728, %v1728
    %v1801 = vunpack.c.l.b16 %v1081
    %v1802 = vunpack.c.h.b16 %v1081
    %v1803 = vunpack.c.l.b16 %v1082
    %v1804 = vunpack.c.h.b16 %v1082
    %v1805 = vunpack.c.l.b16 %v1083
    %v1806 = vunpack.c.h.b16 %v1083
    %v1807 = vunpack.c.l.b16 %v1084
    %v1808 = vunpack.c.h.b16 %v1084
    %v1809 = vunpack.c.l.b16 %v1085
    %v1810 = vunpack.c.h.b16 %v1085
    %v1811 = vunpack.c.l.b16 %v1086
    %v1812 = vunpack.c.h.b16 %v1086
    %v1813 = vunpack.c.l.b16 %v1087
    %v1814 = vunpack.c.h.b16 %v1087
    %v1815 = vunpack.c.l.b16 %v1088
    %v1816 = vunpack.c.h.b16 %v1088
    %v1817 = vunpack.c.l.b16 %v1089
    %v1818 = vunpack.c.h.b16 %v1089
    %v1819 = vunpack.c.l.b16 %v1090
    %v1820 = vunpack.c.h.b16 %v1090
    %v1821 = vunpack.c.l.b16 %v1091
    %v1822 = vunpack.c.h.b16 %v1091
    %v1823 = vunpack.c.l.b16 %v1092
    %v1824 = vunpack.c.h.b16 %v1092
    %v1825 = vunpack.c.l.b16 %v1093
    %v1826 = vunpack.c.h.b16 %v1093
    %v1827 = vunpack.c.l.b16 %v1094
    %v1828 = vunpack.c.h.b16 %v1094
    %v1829 = vunpack.c.l.b16 %v1095
    %v1830 = vunpack.c.h.b16 %v1095
    %v1831 = vunpack.c.l.b16 %v1096
    %v1832 = vunpack.c.h.b16 %v1096
    %v1833 = vunpack.c.l.b16 %v1097
    %v1834 = vunpack.c.h.b16 %v1097
    %v1835 = vunpack.c.l.b16 %v1098
    %v1836 = vunpack.c.h.b16 %v1098
    %v1837 = vunpack.c.l.b16 %v1099
    %v1838 = vunpack.c.h.b16 %v1099
    %v1839 = vunpack.c.l.b16 %v1100
    %v1840 = vunpack.c.h.b16 %v1100
    %v1841 = vunpack.c.l.b16 %v1101
    %v1842 = vunpack.c.h.b16 %v1101
    %v1843 = vunpack.c.l.b16 %v1102
    %v1844 = vunpack.c.h.b16 %v1102
    %v1845 = vunpack.c.l.b16 %v1103
    %v1846 = vunpack.c.h.b16 %v1103
    %v1847 = vunpack.c.l.b16 %v1104
    %v1848 = vunpack.c.h.b16 %v1104
    %v1849 = vunpack.c.l.b16 %v1105
    %v1850 = vunpack.c.h.b16 %v1105
    %v1851 = vunpack.c.l.b16 %v1106
    %v1852 = vunpack.c.h.b16 %v1106
    %v1853 = vunpack.c.l.b16 %v1107
    %v1854 = vunpack.c.h.b16 %v1107
    %v1855 = vunpack.c.l.b16 %v1108
    %v1856 = vunpack.c.h.b16 %v1108
    %v1857 = vunpack.c.l.b16 %v1109
    %v1858 = vunpack.c.h.b16 %v1109
    %v1859 = vunpack.c.l.b16 %v1110
    %v1860 = vunpack.c.h.b16 %v1110
    %v1861 = vunpack.c.l.b16 %v1111
    %v1862 = vunpack.c.h.b16 %v1111
    %v1863 = vunpack.c.l.b16 %v1112
    %v1864 = vunpack.c.h.b16 %v1112
    %v1865 = vunpack.c.l.b16 %v1113
    %v1866 = vunpack.c.h.b16 %v1113
    %v1867 = vunpack.c.l.b16 %v1114
    %v1868 = vunpack.c.h.b16 %v1114
    %v1869 = vunpack.c.l.b16 %v1115
    %v1870 = vunpack.c.h.b16 %v1115
    %v1871 = vunpack.c.l.b16 %v1116
    %v1872 = vunpack.c.h.b16 %v1116
    %v1873 = vunpack.c.l.b16 %v1117
    %v1874 = vunpack.c.h.b16 %v1117
    %v1875 = vunpack.c.l.b16 %v1118
    %v1876 = vunpack.c.h.b16 %v1118
    %v1877 = vunpack.c.l.b16 %v1119
    %v1878 = vunpack.c.h.b16 %v1119
    %v1879 = vunpack.c.l.b16 %v1120
    %v1880 = vunpack.c.h.b16 %v1120
    %v1881 = vunpack.c.l.b16 %v1121
    %v1882 = vunpack.c.h.b16 %v1121
    %v1883 = vunpack.c.l.b16 %v1122
    %v1884 = vunpack.c.h.b16 %v1122
    %v1885 = vunpack.c.l.b16 %v1123
    %v1886 = vunpack.c.h.b16 %v1123
    %v1887 = vunpack.c.l.b16 %v1124
    %v1888 = vunpack.c.h.b16 %v1124
    %v1889 = vunpack.c.l.b16 %v1125
    %v1890 = vunpack.c.h.b16 %v1125
    %v1891 = vunpack.c.l.b16 %v1126
    %v1892 = vunpack.c.h.b16 %v1126
    %v1893 = vunpack.c.l.b16 %v1127
    %v1894 = vunpack.c.h.b16 %v1127
    %v1895 = vunpack.c.l.b16 %v1128
    %v1896 = vunpack.c.h.b16 %v1128
    %v1897 = vunpack.c.l.b16 %v1129
    %v1898 = vunpack.c.h.b16 %v1129
    %v1899 = vunpack.c.l.b16 %v1130
    %v1900 = vunpack.c.h.b16 %v1130
    %v1901 = vunpack.c.l.b16 %v1131
    %v1902 = vunpack.c.h.b16 %v1131
    %v1903 = vunpack.c.l.b16 %v1132
    %v1904 = vunpack.c.h.b16 %v1132
    %v1905 = vunpack.c.l.b16 %v1133
    %v1906 = vunpack.c.h.b16 %v1133
    %v1907 = vunpack.c.l.b16 %v1134
    %v1908 = vunpack.c.h.b16 %v1134
    %v1909 = vunpack.c.l.b16 %v1135
    %v1910 = vunpack.c.h.b16 %v1135
    %v1911 = vunpack.c.l.b16 %v1136
    %v1912 = vunpack.c.h.b16 %v1136
    %v1913 = vunpack.c.l.b16 %v1137
    %v1914 = vunpack.c.h.b16 %v1137
    %v1915 = vunpack.c.l.b16 %v1138
    %v1916 = vunpack.c.h.b16 %v1138
    %v1917 = vunpack.c.l.b16 %v1139
    %v1918 = vunpack.c.h.b16 %v1139
    %v1919 = vunpack.c.l.b16 %v1140
    %v1920 = vunpack.c.h.b16 %v1140
    %v1921 = vunpack.c.l.b16 %v1141
    %v1922 = vunpack.c.h.b16 %v1141
    %v1923 = vunpack.c.l.b16 %v1142
    %v1924 = vunpack.c.h.b16 %v1142
    %v1925 = vunpack.c.l.b16 %v1143
    %v1926 = vunpack.c.h.b16 %v1143
    %v1927 = vunpack.c.l.b16 %v1144
    %v1928 = vunpack.c.h.b16 %v1144
    %v1929 = vpack.c.b16 %v1805, %v1801
    %v1930 = vpack.c.b16 %v1806, %v1802
    %v1931 = vpack.c.b16 %v1807, %v1803
    %v1932 = vpack.c.b16 %v1808, %v1804
    %v1933 = vpack.c.b16 %v1813, %v1809
    %v1934 = vpack.c.b16 %v1814, %v1810
    %v1935 = vpack.c.b16 %v1815, %v1811
    %v1936 = vpack.c.b16 %v1816, %v1812
    %v1937 = vpack.c.b16 %v1821, %v1817
    %v1938 = vpack.c.b16 %v1822, %v1818
    %v1939 = vpack.c.b16 %v1823, %v1819
    %v1940 = vpack.c.b16 %v1824, %v1820
    %v1941 = vpack.c.b16 %v1829, %v1825
    %v1942 = vpack.c.b16 %v1830, %v1826
    %v1943 = vpack.c.b16 %v1831, %v1827
    %v1944 = vpack.c.b16 %v1832, %v1828
    %v1945 = vpack.c.b16 %v1837, %v1833
    %v1946 = vpack.c.b16 %v1838, %v1834
    %v1947 = vpack.c.b16 %v1839, %v1835
    %v1948 = vpack.c.b16 %v1840, %v1836
    %v1949 = vpack.c.b16 %v1845, %v1841
    %v1950 = vpack.c.b16 %v1846, %v1842
    %v1951 = vpack.c.b16 %v1847, %v1843
    %v1952 = vpack.c.b16 %v1848, %v1844
    %v1953 = vpack.c.b16 %v1853, %v1849
    %v1954 = vpack.c.b16 %v1854, %v1850
    %v1955 = vpack.c.b16 %v1855, %v1851
    %v1956 = vpack.c.b16 %v1856, %v1852
    %v1957 = vpack.c.b16 %v1861, %v1857
    %v1958 = vpack.c.b16 %v1862, %v1858
    %v1959 = vpack.c.b16 %v1863, %v1859
    %v1960 = vpack.c.b16 %v1864, %v1860
    %v1961 = vpack.c.b16 %v1869, %v1865
    %v1962 = vpack.c.b16 %v1870, %v1866
    %v1963 = vpack.c.b16 %v1871, %v1867
    %v1964 = vpack.c.b16 %v1872, %v1868
    %v1965 = vpack.c.b16 %v1877, %v1873
    %v1966 = vpack.c.b16 %v1878, %v1874
    %v1967 = vpack.c.b16 %v1879, %v1875
    %v1968 = vpack.c.b16 %v1880, %v1876
    %v1969 = vpack.c.b16 %v1885, %v1881
    %v1970 = vpack.c.b16 %v1886, %v1882
    %v1971 = vpack.c.b16 %v1887, %v1883
    %v1972 = vpack.c.b16 %v1888, %v1884
    %v1973 = vpack.c.b16 %v1893, %v1889
    %v1974 = vpack.c.b16 %v1894, %v1890
    %v1975 = vpack.c.b16 %v1895, %v1891
    %v1976 = vpack.c.b16 %v1896, %v1892
    %v1977 = vpack.c.b16 %v1901, %v1897
    %v1978 = vpack.c.b16 %v1902, %v1898
    %v1979 = vpack.c.b16 %v1903, %v1899
    %v1980 = vpack.c.b16 %v1904, %v1900
    %v1981 = vpack.c.b16 %v1909, %v1905
    %v1982 = vpack.c.b16 %v1910, %v1906
    %v1983 = vpack.c.b16 %v1911, %v1907
    %v1984 = vpack.c.b16 %v1912, %v1908
    %v1985 = vpack.c.b16 %v1917, %v1913
    %v1986 = vpack.c.b16 %v1918, %v1914
    %v1987 = vpack.c.b16 %v1919, %v1915
    %v1988 = vpack.c.b16 %v1920, %v1916
    %v1989 = vpack.c.b16 %v1925, %v1921
    %v1990 = vpack.c.b16 %v1926, %v1922
    %v1991 = vpack.c.b16 %v1927, %v1923
    %v1992 = vpack.c.b16 %v1928, %v1924
    %2057 = vmatprep.subr.bf16.mxu0 %v1958
    %2058 = vmatpush1.bf16.msra.mxu0 %v1957
    %2059 = vmatprep.subr.bf16.mxu0 %v1954
    %2060 = vmatpush1.bf16.msra.mxu0 %v1953
    %2061 = vmatprep.subr.bf16.mxu0 %v1950
    %2062 = vmatpush1.bf16.msra.mxu0 %v1949
    %2063 = vmatprep.subr.bf16.mxu0 %v1946
    %2064 = vmatpush1.bf16.msra.mxu0 %v1945
    %2065 = vmatprep.subr.bf16.mxu0 %v1942
    %2066 = vmatpush1.bf16.msra.mxu0 %v1941
    %2067 = vmatprep.subr.bf16.mxu0 %v1938
    %2068 = vmatpush1.bf16.msra.mxu0 %v1937
    %2069 = vmatprep.subr.bf16.mxu0 %v1934
    %2070 = vmatpush1.bf16.msra.mxu0 %v1933
    %2071 = vmatprep.subr.bf16.mxu0 %v1930
    %2072 = vmatpush1.bf16.msra.mxu0 %v1929
    %2073 = vmatprep.subr.bf16.mxu0 %v1990
    %2074 = vmatpush2.bf16.msra.mxu0 %v1989
    %2075 = vmatprep.subr.bf16.mxu0 %v1986
    %2076 = vmatpush2.bf16.msra.mxu0 %v1985
    %2077 = vmatprep.subr.bf16.mxu0 %v1982
    %2078 = vmatpush2.bf16.msra.mxu0 %v1981
    %2079 = vmatprep.subr.bf16.mxu0 %v1978
    %2080 = vmatpush2.bf16.msra.mxu0 %v1977
    %2081 = vmatprep.subr.bf16.mxu0 %v1974
    %2082 = vmatpush2.bf16.msra.mxu0 %v1973
    %2083 = vmatprep.subr.bf16.mxu0 %v1970
    %2084 = vmatpush2.bf16.msra.mxu0 %v1969
    %2085 = vmatprep.subr.bf16.mxu0 %v1966
    %2086 = vmatpush2.bf16.msra.mxu0 %v1965
    %2087 = vmatprep.subr.bf16.mxu0 %v1962
    %2088 = vmatpush2.bf16.msra.mxu0 %v1961
    %2089 = vmatprep.mubr.bf16.mxu0 %v1227
    %2090 = vmatmul.mubr.bf16.gmra.mxu0 %v1226
    %v2091 = vpop.f32.mrf.mxu0
    %v2092 = vadd.f32 %v1639, %v2091
    %v2093 = vpop.f32.mrf.mxu0
    %v2094 = vadd.f32 %v1641, %v2093
    %v2095 = vpop.f32.mrf.mxu0
    %v2096 = vadd.f32 %v1643, %v2095
    %v2097 = vpop.f32.mrf.mxu0
    %v2098 = vadd.f32 %v1645, %v2097
    %2099 = vmatprep.mubr.bf16.mxu0 %v1229
    %2100 = vmatmul.mubr.bf16.gmra.mxu0 %v1228
    %v2101 = vpop.f32.mrf.mxu0
    %v2102 = vadd.f32 %v1649, %v2101
    %v2103 = vpop.f32.mrf.mxu0
    %v2104 = vadd.f32 %v1651, %v2103
    %v2105 = vpop.f32.mrf.mxu0
    %v2106 = vadd.f32 %v1653, %v2105
    %v2107 = vpop.f32.mrf.mxu0
    %v2108 = vadd.f32 %v1655, %v2107
    %2109 = vmatprep.mubr.bf16.mxu0 %v1730
    %2110 = vmatmul.mubr.bf16.gmra.mxu0 %v1729
    %v2111 = vpop.f32.mrf.mxu0
    %v2112 = vadd.f32 %v1659, %v2111
    %v2113 = vpop.f32.mrf.mxu0
    %v2114 = vadd.f32 %v1661, %v2113
    %v2115 = vpop.f32.mrf.mxu0
    %v2116 = vpop.f32.mrf.mxu0
    %2117 = vdwg.mxu0
    %2118 = vmatprep.subr.bf16.mxu0 %v1960
    %2119 = vmatpush1.bf16.msra.mxu0 %v1959
    %2120 = vmatprep.subr.bf16.mxu0 %v1956
    %2121 = vmatpush1.bf16.msra.mxu0 %v1955
    %2122 = vmatprep.subr.bf16.mxu0 %v1952
    %2123 = vmatpush1.bf16.msra.mxu0 %v1951
    %2124 = vmatprep.subr.bf16.mxu0 %v1948
    %2125 = vmatpush1.bf16.msra.mxu0 %v1947
    %2126 = vmatprep.subr.bf16.mxu0 %v1944
    %2127 = vmatpush1.bf16.msra.mxu0 %v1943
    %2128 = vmatprep.subr.bf16.mxu0 %v1940
    %2129 = vmatpush1.bf16.msra.mxu0 %v1939
    %2130 = vmatprep.subr.bf16.mxu0 %v1936
    %2131 = vmatpush1.bf16.msra.mxu0 %v1935
    %2132 = vmatprep.subr.bf16.mxu0 %v1932
    %2133 = vmatpush1.bf16.msra.mxu0 %v1931
    %2134 = vmatprep.subr.bf16.mxu0 %v1992
    %2135 = vmatpush2.bf16.msra.mxu0 %v1991
    %2136 = vmatprep.subr.bf16.mxu0 %v1988
    %2137 = vmatpush2.bf16.msra.mxu0 %v1987
    %2138 = vmatprep.subr.bf16.mxu0 %v1984
    %2139 = vmatpush2.bf16.msra.mxu0 %v1983
    %2140 = vmatprep.subr.bf16.mxu0 %v1980
    %2141 = vmatpush2.bf16.msra.mxu0 %v1979
    %2142 = vmatprep.subr.bf16.mxu0 %v1976
    %2143 = vmatpush2.bf16.msra.mxu0 %v1975
    %2144 = vmatprep.subr.bf16.mxu0 %v1972
    %2145 = vmatpush2.bf16.msra.mxu0 %v1971
    %2146 = vmatprep.subr.bf16.mxu0 %v1968
    %2147 = vmatpush2.bf16.msra.mxu0 %v1967
    %2148 = vmatprep.subr.bf16.mxu0 %v1964
    %2149 = vmatpush2.bf16.msra.mxu0 %v1963
    %2150 = vmatprep.mubr.bf16.mxu0 %v1227
    %2151 = vmatmul.mubr.bf16.gmra.mxu0 %v1226
    %v2152 = vpop.f32.mrf.mxu0
    %v2153 = vadd.f32 %v1700, %v2152
    %v2154 = vpop.f32.mrf.mxu0
    %v2155 = vadd.f32 %v1702, %v2154
    %v2156 = vpop.f32.mrf.mxu0
    %v2157 = vadd.f32 %v1704, %v2156
    %v2158 = vpop.f32.mrf.mxu0
    %v2159 = vadd.f32 %v1706, %v2158
    %2160 = vmatprep.mubr.bf16.mxu0 %v1229
    %2161 = vmatmul.mubr.bf16.gmra.mxu0 %v1228
    %v2162 = vpop.f32.mrf.mxu0
    %v2163 = vadd.f32 %v1710, %v2162
    %v2164 = vpop.f32.mrf.mxu0
    %v2165 = vadd.f32 %v1712, %v2164
    %v2166 = vpop.f32.mrf.mxu0
    %v2167 = vadd.f32 %v1714, %v2166
    %v2168 = vpop.f32.mrf.mxu0
    %v2169 = vadd.f32 %v1716, %v2168
    %2170 = vmatprep.mubr.bf16.mxu0 %v1730
    %2171 = vmatmul.mubr.bf16.gmra.mxu0 %v1729
    %v2172 = vpop.f32.mrf.mxu0
    %v2173 = vadd.f32 %v1720, %v2172
    %v2174 = vpop.f32.mrf.mxu0
    %v2175 = vadd.f32 %v1722, %v2174
    %v2176 = vpop.f32.mrf.mxu0
    %v2177 = vpop.f32.mrf.mxu0
    %2178 = vdwg.mxu0
    %v2179 = vld [vmem:[#allocation3] sm:$0xee]
    %s2180 = scalar_lea.vmem [#allocation5], 1024
    %v2181 = vld [vmem:[%s2180] sm:$0xff]
    %v2182 = vld [vmem:[%s2180 + $0x8] sm:$0xff]
    %v2183 = vld [vmem:[%s2180 + $0x10] sm:$0xff]
    %v2184 = vld [vmem:[%s2180 + $0x18] sm:$0xff]
    %v2185 = vld [vmem:[%s2180 + $0x20] sm:$0xff]
    %v2186 = vld [vmem:[%s2180 + $0x28] sm:$0xff]
    %v2187 = vld [vmem:[%s2180 + $0x30] sm:$0xff]
    %v2188 = vld [vmem:[%s2180 + $0x38] sm:$0xff]
    %v2189 = vld [vmem:[%s2180 + $0x40] sm:$0xff]
    %v2190 = vld [vmem:[%s2180 + $0x48] sm:$0xff]
    %v2191 = vld [vmem:[%s2180 + $0x50] sm:$0xff]
    %v2192 = vld [vmem:[%s2180 + $0x58] sm:$0xff]
    %v2193 = vld [vmem:[%s2180 + $0x60] sm:$0xff]
    %v2194 = vld [vmem:[%s2180 + $0x68] sm:$0xff]
    %v2195 = vld [vmem:[%s2180 + $0x70] sm:$0xff]
    %v2196 = vld [vmem:[%s2180 + $0x78] sm:$0xff]
    %v2197 = vld [vmem:[%s2180 + $0x80] sm:$0xff]
    %v2198 = vld [vmem:[%s2180 + $0x88] sm:$0xff]
    %v2199 = vld [vmem:[%s2180 + $0x90] sm:$0xff]
    %v2200 = vld [vmem:[%s2180 + $0x98] sm:$0xff]
    %v2201 = vld [vmem:[%s2180 + $0xa0] sm:$0xff]
    %v2202 = vld [vmem:[%s2180 + $0xa8] sm:$0xff]
    %v2203 = vld [vmem:[%s2180 + $0xb0] sm:$0xff]
    %v2204 = vld [vmem:[%s2180 + $0xb8] sm:$0xff]
    %v2205 = vld [vmem:[%s2180 + $0xc0] sm:$0xff]
    %v2206 = vld [vmem:[%s2180 + $0xc8] sm:$0xff]
    %v2207 = vld [vmem:[%s2180 + $0xd0] sm:$0xff]
    %v2208 = vld [vmem:[%s2180 + $0xd8] sm:$0xff]
    %v2209 = vld [vmem:[%s2180 + $0xe0] sm:$0xff]
    %v2210 = vld [vmem:[%s2180 + $0xe8] sm:$0xff]
    %v2211 = vld [vmem:[%s2180 + $0xf0] sm:$0xff]
    %v2212 = vld [vmem:[%s2180 + $0xf8] sm:$0xff]
    %v2213 = vld [vmem:[%s2180 + $0x100] sm:$0xff]
    %v2214 = vld [vmem:[%s2180 + $0x108] sm:$0xff]
    %v2215 = vld [vmem:[%s2180 + $0x110] sm:$0xff]
    %v2216 = vld [vmem:[%s2180 + $0x118] sm:$0xff]
    %v2217 = vld [vmem:[%s2180 + $0x120] sm:$0xff]
    %v2218 = vld [vmem:[%s2180 + $0x128] sm:$0xff]
    %v2219 = vld [vmem:[%s2180 + $0x130] sm:$0xff]
    %v2220 = vld [vmem:[%s2180 + $0x138] sm:$0xff]
    %v2221 = vld [vmem:[%s2180 + $0x140] sm:$0xff]
    %v2222 = vld [vmem:[%s2180 + $0x148] sm:$0xff]
    %v2223 = vld [vmem:[%s2180 + $0x150] sm:$0xff]
    %v2224 = vld [vmem:[%s2180 + $0x158] sm:$0xff]
    %v2225 = vld [vmem:[%s2180 + $0x160] sm:$0xff]
    %v2226 = vld [vmem:[%s2180 + $0x168] sm:$0xff]
    %v2227 = vld [vmem:[%s2180 + $0x170] sm:$0xff]
    %v2228 = vld [vmem:[%s2180 + $0x178] sm:$0xff]
    %v2229 = vld [vmem:[%s2180 + $0x180] sm:$0xff]
    %v2230 = vld [vmem:[%s2180 + $0x188] sm:$0xff]
    %v2231 = vld [vmem:[%s2180 + $0x190] sm:$0xff]
    %v2232 = vld [vmem:[%s2180 + $0x198] sm:$0xff]
    %v2233 = vld [vmem:[%s2180 + $0x1a0] sm:$0xff]
    %v2234 = vld [vmem:[%s2180 + $0x1a8] sm:$0xff]
    %v2235 = vld [vmem:[%s2180 + $0x1b0] sm:$0xff]
    %v2236 = vld [vmem:[%s2180 + $0x1b8] sm:$0xff]
    %v2237 = vld [vmem:[%s2180 + $0x1c0] sm:$0xff]
    %v2238 = vld [vmem:[%s2180 + $0x1c8] sm:$0xff]
    %v2239 = vld [vmem:[%s2180 + $0x1d0] sm:$0xff]
    %v2240 = vld [vmem:[%s2180 + $0x1d8] sm:$0xff]
    %v2241 = vld [vmem:[%s2180 + $0x1e0] sm:$0xff]
    %v2242 = vld [vmem:[%s2180 + $0x1e8] sm:$0xff]
    %v2243 = vld [vmem:[%s2180 + $0x1f0] sm:$0xff]
    %v2244 = vld [vmem:[%s2180 + $0x1f8] sm:$0xff]
    %v2246 = vunpack.c.l.b16 %v2179
    %v2247 = vunpack.c.h.b16 %v2179
    %v2248 = vpack.c.b16 %v1218, %v2246
    %v2249 = vpack.c.b16 %v1219, %v2247
    %v2250 = vrot.slane %v2248, 1
    %v2251 = vrot.slane %v1228, 1
    %v2252 = vsel %vm475, %v2250, %v2251
    %v2253 = vrot.slane %v2249, 1
    %v2254 = vrot.slane %v1229, 1
    %v2255 = vsel %vm475, %v2253, %v2254
    %v2256 = vrot.slane %v1230, 1
    %v2257 = vsel %vm475, %v2251, %v2256
    %v2258 = vrot.slane %v1231, 1
    %v2259 = vsel %vm475, %v2254, %v2258
    %v2330 = vunpack.c.l.b16 %v2181
    %v2331 = vunpack.c.h.b16 %v2181
    %v2332 = vunpack.c.l.b16 %v2182
    %v2333 = vunpack.c.h.b16 %v2182
    %v2334 = vunpack.c.l.b16 %v2183
    %v2335 = vunpack.c.h.b16 %v2183
    %v2336 = vunpack.c.l.b16 %v2184
    %v2337 = vunpack.c.h.b16 %v2184
    %v2338 = vunpack.c.l.b16 %v2185
    %v2339 = vunpack.c.h.b16 %v2185
    %v2340 = vunpack.c.l.b16 %v2186
    %v2341 = vunpack.c.h.b16 %v2186
    %v2342 = vunpack.c.l.b16 %v2187
    %v2343 = vunpack.c.h.b16 %v2187
    %v2344 = vunpack.c.l.b16 %v2188
    %v2345 = vunpack.c.h.b16 %v2188
    %v2346 = vunpack.c.l.b16 %v2189
    %v2347 = vunpack.c.h.b16 %v2189
    %v2348 = vunpack.c.l.b16 %v2190
    %v2349 = vunpack.c.h.b16 %v2190
    %v2350 = vunpack.c.l.b16 %v2191
    %v2351 = vunpack.c.h.b16 %v2191
    %v2352 = vunpack.c.l.b16 %v2192
    %v2353 = vunpack.c.h.b16 %v2192
    %v2354 = vunpack.c.l.b16 %v2193
    %v2355 = vunpack.c.h.b16 %v2193
    %v2356 = vunpack.c.l.b16 %v2194
    %v2357 = vunpack.c.h.b16 %v2194
    %v2358 = vunpack.c.l.b16 %v2195
    %v2359 = vunpack.c.h.b16 %v2195
    %v2360 = vunpack.c.l.b16 %v2196
    %v2361 = vunpack.c.h.b16 %v2196
    %v2362 = vunpack.c.l.b16 %v2197
    %v2363 = vunpack.c.h.b16 %v2197
    %v2364 = vunpack.c.l.b16 %v2198
    %v2365 = vunpack.c.h.b16 %v2198
    %v2366 = vunpack.c.l.b16 %v2199
    %v2367 = vunpack.c.h.b16 %v2199
    %v2368 = vunpack.c.l.b16 %v2200
    %v2369 = vunpack.c.h.b16 %v2200
    %v2370 = vunpack.c.l.b16 %v2201
    %v2371 = vunpack.c.h.b16 %v2201
    %v2372 = vunpack.c.l.b16 %v2202
    %v2373 = vunpack.c.h.b16 %v2202
    %v2374 = vunpack.c.l.b16 %v2203
    %v2375 = vunpack.c.h.b16 %v2203
    %v2376 = vunpack.c.l.b16 %v2204
    %v2377 = vunpack.c.h.b16 %v2204
    %v2378 = vunpack.c.l.b16 %v2205
    %v2379 = vunpack.c.h.b16 %v2205
    %v2380 = vunpack.c.l.b16 %v2206
    %v2381 = vunpack.c.h.b16 %v2206
    %v2382 = vunpack.c.l.b16 %v2207
    %v2383 = vunpack.c.h.b16 %v2207
    %v2384 = vunpack.c.l.b16 %v2208
    %v2385 = vunpack.c.h.b16 %v2208
    %v2386 = vunpack.c.l.b16 %v2209
    %v2387 = vunpack.c.h.b16 %v2209
    %v2388 = vunpack.c.l.b16 %v2210
    %v2389 = vunpack.c.h.b16 %v2210
    %v2390 = vunpack.c.l.b16 %v2211
    %v2391 = vunpack.c.h.b16 %v2211
    %v2392 = vunpack.c.l.b16 %v2212
    %v2393 = vunpack.c.h.b16 %v2212
    %v2394 = vunpack.c.l.b16 %v2213
    %v2395 = vunpack.c.h.b16 %v2213
    %v2396 = vunpack.c.l.b16 %v2214
    %v2397 = vunpack.c.h.b16 %v2214
    %v2398 = vunpack.c.l.b16 %v2215
    %v2399 = vunpack.c.h.b16 %v2215
    %v2400 = vunpack.c.l.b16 %v2216
    %v2401 = vunpack.c.h.b16 %v2216
    %v2402 = vunpack.c.l.b16 %v2217
    %v2403 = vunpack.c.h.b16 %v2217
    %v2404 = vunpack.c.l.b16 %v2218
    %v2405 = vunpack.c.h.b16 %v2218
    %v2406 = vunpack.c.l.b16 %v2219
    %v2407 = vunpack.c.h.b16 %v2219
    %v2408 = vunpack.c.l.b16 %v2220
    %v2409 = vunpack.c.h.b16 %v2220
    %v2410 = vunpack.c.l.b16 %v2221
    %v2411 = vunpack.c.h.b16 %v2221
    %v2412 = vunpack.c.l.b16 %v2222
    %v2413 = vunpack.c.h.b16 %v2222
    %v2414 = vunpack.c.l.b16 %v2223
    %v2415 = vunpack.c.h.b16 %v2223
    %v2416 = vunpack.c.l.b16 %v2224
    %v2417 = vunpack.c.h.b16 %v2224
    %v2418 = vunpack.c.l.b16 %v2225
    %v2419 = vunpack.c.h.b16 %v2225
    %v2420 = vunpack.c.l.b16 %v2226
    %v2421 = vunpack.c.h.b16 %v2226
    %v2422 = vunpack.c.l.b16 %v2227
    %v2423 = vunpack.c.h.b16 %v2227
    %v2424 = vunpack.c.l.b16 %v2228
    %v2425 = vunpack.c.h.b16 %v2228
    %v2426 = vunpack.c.l.b16 %v2229
    %v2427 = vunpack.c.h.b16 %v2229
    %v2428 = vunpack.c.l.b16 %v2230
    %v2429 = vunpack.c.h.b16 %v2230
    %v2430 = vunpack.c.l.b16 %v2231
    %v2431 = vunpack.c.h.b16 %v2231
    %v2432 = vunpack.c.l.b16 %v2232
    %v2433 = vunpack.c.h.b16 %v2232
    %v2434 = vunpack.c.l.b16 %v2233
    %v2435 = vunpack.c.h.b16 %v2233
    %v2436 = vunpack.c.l.b16 %v2234
    %v2437 = vunpack.c.h.b16 %v2234
    %v2438 = vunpack.c.l.b16 %v2235
    %v2439 = vunpack.c.h.b16 %v2235
    %v2440 = vunpack.c.l.b16 %v2236
    %v2441 = vunpack.c.h.b16 %v2236
    %v2442 = vunpack.c.l.b16 %v2237
    %v2443 = vunpack.c.h.b16 %v2237
    %v2444 = vunpack.c.l.b16 %v2238
    %v2445 = vunpack.c.h.b16 %v2238
    %v2446 = vunpack.c.l.b16 %v2239
    %v2447 = vunpack.c.h.b16 %v2239
    %v2448 = vunpack.c.l.b16 %v2240
    %v2449 = vunpack.c.h.b16 %v2240
    %v2450 = vunpack.c.l.b16 %v2241
    %v2451 = vunpack.c.h.b16 %v2241
    %v2452 = vunpack.c.l.b16 %v2242
    %v2453 = vunpack.c.h.b16 %v2242
    %v2454 = vunpack.c.l.b16 %v2243
    %v2455 = vunpack.c.h.b16 %v2243
    %v2456 = vunpack.c.l.b16 %v2244
    %v2457 = vunpack.c.h.b16 %v2244
    %v2458 = vpack.c.b16 %v2334, %v2330
    %v2459 = vpack.c.b16 %v2335, %v2331
    %v2460 = vpack.c.b16 %v2336, %v2332
    %v2461 = vpack.c.b16 %v2337, %v2333
    %v2462 = vpack.c.b16 %v2342, %v2338
    %v2463 = vpack.c.b16 %v2343, %v2339
    %v2464 = vpack.c.b16 %v2344, %v2340
    %v2465 = vpack.c.b16 %v2345, %v2341
    %v2466 = vpack.c.b16 %v2350, %v2346
    %v2467 = vpack.c.b16 %v2351, %v2347
    %v2468 = vpack.c.b16 %v2352, %v2348
    %v2469 = vpack.c.b16 %v2353, %v2349
    %v2470 = vpack.c.b16 %v2358, %v2354
    %v2471 = vpack.c.b16 %v2359, %v2355
    %v2472 = vpack.c.b16 %v2360, %v2356
    %v2473 = vpack.c.b16 %v2361, %v2357
    %v2474 = vpack.c.b16 %v2366, %v2362
    %v2475 = vpack.c.b16 %v2367, %v2363
    %v2476 = vpack.c.b16 %v2368, %v2364
    %v2477 = vpack.c.b16 %v2369, %v2365
    %v2478 = vpack.c.b16 %v2374, %v2370
    %v2479 = vpack.c.b16 %v2375, %v2371
    %v2480 = vpack.c.b16 %v2376, %v2372
    %v2481 = vpack.c.b16 %v2377, %v2373
    %v2482 = vpack.c.b16 %v2382, %v2378
    %v2483 = vpack.c.b16 %v2383, %v2379
    %v2484 = vpack.c.b16 %v2384, %v2380
    %v2485 = vpack.c.b16 %v2385, %v2381
    %v2486 = vpack.c.b16 %v2390, %v2386
    %v2487 = vpack.c.b16 %v2391, %v2387
    %v2488 = vpack.c.b16 %v2392, %v2388
    %v2489 = vpack.c.b16 %v2393, %v2389
    %v2490 = vpack.c.b16 %v2398, %v2394
    %v2491 = vpack.c.b16 %v2399, %v2395
    %v2492 = vpack.c.b16 %v2400, %v2396
    %v2493 = vpack.c.b16 %v2401, %v2397
    %v2494 = vpack.c.b16 %v2406, %v2402
    %v2495 = vpack.c.b16 %v2407, %v2403
    %v2496 = vpack.c.b16 %v2408, %v2404
    %v2497 = vpack.c.b16 %v2409, %v2405
    %v2498 = vpack.c.b16 %v2414, %v2410
    %v2499 = vpack.c.b16 %v2415, %v2411
    %v2500 = vpack.c.b16 %v2416, %v2412
    %v2501 = vpack.c.b16 %v2417, %v2413
    %v2502 = vpack.c.b16 %v2422, %v2418
    %v2503 = vpack.c.b16 %v2423, %v2419
    %v2504 = vpack.c.b16 %v2424, %v2420
    %v2505 = vpack.c.b16 %v2425, %v2421
    %v2506 = vpack.c.b16 %v2430, %v2426
    %v2507 = vpack.c.b16 %v2431, %v2427
    %v2508 = vpack.c.b16 %v2432, %v2428
    %v2509 = vpack.c.b16 %v2433, %v2429
    %v2510 = vpack.c.b16 %v2438, %v2434
    %v2511 = vpack.c.b16 %v2439, %v2435
    %v2512 = vpack.c.b16 %v2440, %v2436
    %v2513 = vpack.c.b16 %v2441, %v2437
    %v2514 = vpack.c.b16 %v2446, %v2442
    %v2515 = vpack.c.b16 %v2447, %v2443
    %v2516 = vpack.c.b16 %v2448, %v2444
    %v2517 = vpack.c.b16 %v2449, %v2445
    %v2518 = vpack.c.b16 %v2454, %v2450
    %v2519 = vpack.c.b16 %v2455, %v2451
    %v2520 = vpack.c.b16 %v2456, %v2452
    %v2521 = vpack.c.b16 %v2457, %v2453
    %2586 = vmatprep.subr.bf16.mxu0 %v2487
    %2587 = vmatpush1.bf16.msra.mxu0 %v2486
    %2588 = vmatprep.subr.bf16.mxu0 %v2483
    %2589 = vmatpush1.bf16.msra.mxu0 %v2482
    %2590 = vmatprep.subr.bf16.mxu0 %v2479
    %2591 = vmatpush1.bf16.msra.mxu0 %v2478
    %2592 = vmatprep.subr.bf16.mxu0 %v2475
    %2593 = vmatpush1.bf16.msra.mxu0 %v2474
    %2594 = vmatprep.subr.bf16.mxu0 %v2471
    %2595 = vmatpush1.bf16.msra.mxu0 %v2470
    %2596 = vmatprep.subr.bf16.mxu0 %v2467
    %2597 = vmatpush1.bf16.msra.mxu0 %v2466
    %2598 = vmatprep.subr.bf16.mxu0 %v2463
    %2599 = vmatpush1.bf16.msra.mxu0 %v2462
    %2600 = vmatprep.subr.bf16.mxu0 %v2459
    %2601 = vmatpush1.bf16.msra.mxu0 %v2458
    %2602 = vmatprep.subr.bf16.mxu0 %v2519
    %2603 = vmatpush2.bf16.msra.mxu0 %v2518
    %2604 = vmatprep.subr.bf16.mxu0 %v2515
    %2605 = vmatpush2.bf16.msra.mxu0 %v2514
    %2606 = vmatprep.subr.bf16.mxu0 %v2511
    %2607 = vmatpush2.bf16.msra.mxu0 %v2510
    %2608 = vmatprep.subr.bf16.mxu0 %v2507
    %2609 = vmatpush2.bf16.msra.mxu0 %v2506
    %2610 = vmatprep.subr.bf16.mxu0 %v2503
    %2611 = vmatpush2.bf16.msra.mxu0 %v2502
    %2612 = vmatprep.subr.bf16.mxu0 %v2499
    %2613 = vmatpush2.bf16.msra.mxu0 %v2498
    %2614 = vmatprep.subr.bf16.mxu0 %v2495
    %2615 = vmatpush2.bf16.msra.mxu0 %v2494
    %2616 = vmatprep.subr.bf16.mxu0 %v2491
    %2617 = vmatpush2.bf16.msra.mxu0 %v2490
    %2618 = vmatprep.mubr.bf16.mxu0 %v2255
    %2619 = vmatmul.mubr.bf16.gmra.mxu0 %v2252
    %v2620 = vpop.f32.mrf.mxu0
    %v2621 = vadd.f32 0.0, %v2620
    %v2622 = vpop.f32.mrf.mxu0
    %v2623 = vadd.f32 0.0, %v2622
    %v2624 = vpop.f32.mrf.mxu0
    %v2625 = vadd.f32 0.0, %v2624
    %v2626 = vpop.f32.mrf.mxu0
    %v2627 = vadd.f32 0.0, %v2626
    %2628 = vmatprep.mubr.bf16.mxu0 %v2259
    %2629 = vmatmul.mubr.bf16.gmra.mxu0 %v2257
    %v2630 = vpop.f32.mrf.mxu0
    %v2631 = vadd.f32 0.0, %v2630
    %v2632 = vpop.f32.mrf.mxu0
    %v2633 = vadd.f32 0.0, %v2632
    %v2634 = vpop.f32.mrf.mxu0
    %v2635 = vadd.f32 0.0, %v2634
    %v2636 = vpop.f32.mrf.mxu0
    %v2637 = vadd.f32 0.0, %v2636
    %2638 = vmatprep.mubr.bf16.mxu0 %v2258
    %2639 = vmatmul.mubr.bf16.gmra.mxu0 %v2256
    %v2640 = vpop.f32.mrf.mxu0
    %v2641 = vadd.f32 0.0, %v2640
    %v2642 = vpop.f32.mrf.mxu0
    %v2643 = vadd.f32 0.0, %v2642
    %v2644 = vpop.f32.mrf.mxu0
    %v2645 = vpop.f32.mrf.mxu0
    %2646 = vdwg.mxu0
    %2647 = vmatprep.subr.bf16.mxu0 %v2489
    %2648 = vmatpush1.bf16.msra.mxu0 %v2488
    %2649 = vmatprep.subr.bf16.mxu0 %v2485
    %2650 = vmatpush1.bf16.msra.mxu0 %v2484
    %2651 = vmatprep.subr.bf16.mxu0 %v2481
    %2652 = vmatpush1.bf16.msra.mxu0 %v2480
    %2653 = vmatprep.subr.bf16.mxu0 %v2477
    %2654 = vmatpush1.bf16.msra.mxu0 %v2476
    %2655 = vmatprep.subr.bf16.mxu0 %v2473
    %2656 = vmatpush1.bf16.msra.mxu0 %v2472
    %2657 = vmatprep.subr.bf16.mxu0 %v2469
    %2658 = vmatpush1.bf16.msra.mxu0 %v2468
    %2659 = vmatprep.subr.bf16.mxu0 %v2465
    %2660 = vmatpush1.bf16.msra.mxu0 %v2464
    %2661 = vmatprep.subr.bf16.mxu0 %v2461
    %2662 = vmatpush1.bf16.msra.mxu0 %v2460
    %2663 = vmatprep.subr.bf16.mxu0 %v2521
    %2664 = vmatpush2.bf16.msra.mxu0 %v2520
    %2665 = vmatprep.subr.bf16.mxu0 %v2517
    %2666 = vmatpush2.bf16.msra.mxu0 %v2516
    %2667 = vmatprep.subr.bf16.mxu0 %v2513
    %2668 = vmatpush2.bf16.msra.mxu0 %v2512
    %2669 = vmatprep.subr.bf16.mxu0 %v2509
    %2670 = vmatpush2.bf16.msra.mxu0 %v2508
    %2671 = vmatprep.subr.bf16.mxu0 %v2505
    %2672 = vmatpush2.bf16.msra.mxu0 %v2504
    %2673 = vmatprep.subr.bf16.mxu0 %v2501
    %2674 = vmatpush2.bf16.msra.mxu0 %v2500
    %2675 = vmatprep.subr.bf16.mxu0 %v2497
    %2676 = vmatpush2.bf16.msra.mxu0 %v2496
    %2677 = vmatprep.subr.bf16.mxu0 %v2493
    %2678 = vmatpush2.bf16.msra.mxu0 %v2492
    %2679 = vmatprep.mubr.bf16.mxu0 %v2255
    %2680 = vmatmul.mubr.bf16.gmra.mxu0 %v2252
    %v2681 = vpop.f32.mrf.mxu0
    %v2682 = vadd.f32 0.0, %v2681
    %v2683 = vpop.f32.mrf.mxu0
    %v2684 = vadd.f32 0.0, %v2683
    %v2685 = vpop.f32.mrf.mxu0
    %v2686 = vadd.f32 0.0, %v2685
    %v2687 = vpop.f32.mrf.mxu0
    %v2688 = vadd.f32 0.0, %v2687
    %2689 = vmatprep.mubr.bf16.mxu0 %v2259
    %2690 = vmatmul.mubr.bf16.gmra.mxu0 %v2257
    %v2691 = vpop.f32.mrf.mxu0
    %v2692 = vadd.f32 0.0, %v2691
    %v2693 = vpop.f32.mrf.mxu0
    %v2694 = vadd.f32 0.0, %v2693
    %v2695 = vpop.f32.mrf.mxu0
    %v2696 = vadd.f32 0.0, %v2695
    %v2697 = vpop.f32.mrf.mxu0
    %v2698 = vadd.f32 0.0, %v2697
    %2699 = vmatprep.mubr.bf16.mxu0 %v2258
    %2700 = vmatmul.mubr.bf16.gmra.mxu0 %v2256
    %v2701 = vpop.f32.mrf.mxu0
    %v2702 = vadd.f32 0.0, %v2701
    %v2703 = vpop.f32.mrf.mxu0
    %v2704 = vadd.f32 0.0, %v2703
    %v2705 = vpop.f32.mrf.mxu0
    %v2706 = vpop.f32.mrf.mxu0
    %2707 = vdwg.mxu0
    %v2708 = vadd.f32 %v2092, %v2621
    %v2709 = vadd.f32 %v2094, %v2623
    %v2710 = vadd.f32 %v2153, %v2682
    %v2711 = vadd.f32 %v2155, %v2684
    %v2712 = vadd.f32 %v2096, %v2625
    %v2713 = vadd.f32 %v2098, %v2627
    %v2714 = vadd.f32 %v2157, %v2686
    %v2715 = vadd.f32 %v2159, %v2688
    %v2716 = vadd.f32 %v2102, %v2631
    %v2717 = vadd.f32 %v2104, %v2633
    %v2718 = vadd.f32 %v2163, %v2692
    %v2719 = vadd.f32 %v2165, %v2694
    %v2720 = vadd.f32 %v2106, %v2635
    %v2721 = vadd.f32 %v2108, %v2637
    %v2722 = vadd.f32 %v2167, %v2696
    %v2723 = vadd.f32 %v2169, %v2698
    %v2724 = vadd.f32 %v2112, %v2641
    %v2725 = vadd.f32 %v2114, %v2643
    %v2726 = vadd.f32 %v2173, %v2702
    %v2727 = vadd.f32 %v2175, %v2704
    %v2729 = vlaneseq
    %v2730 = vshrl.u32 %v2729, 7
    %v2731 = vsub.s32 0, %v2730
    %v2732 = vrot.slane %v1075, %v2731
    %v2733 = vlaneseq
    %v2734 = vshrl.u32 %v2733, 7
    %v2735 = vsub.s32 1, %v2734
    %v2736 = vrot.slane %v1075, %v2735
    %v2737 = vlaneseq
    %v2738 = vshrl.u32 %v2737, 7
    %v2739 = vsub.s32 2, %v2738
    %v2740 = vrot.slane %v1075, %v2739
    %v2741 = vlaneseq
    %v2742 = vshrl.u32 %v2741, 7
    %v2743 = vsub.s32 3, %v2742
    %v2744 = vrot.slane %v1075, %v2743
    %v2749 = vadd.f32 %v2708, %v2732
    %v2750 = vadd.f32 %v2709, %v2736
    %v2751 = vadd.f32 %v2710, %v2740
    %v2752 = vadd.f32 %v2711, %v2744
    %v2753 = vadd.f32 %v2712, %v2732
    %v2754 = vadd.f32 %v2713, %v2736
    %v2755 = vadd.f32 %v2714, %v2740
    %v2756 = vadd.f32 %v2715, %v2744
    %v2757 = vadd.f32 %v2716, %v2732
    %v2758 = vadd.f32 %v2717, %v2736
    %v2759 = vadd.f32 %v2718, %v2740
    %v2760 = vadd.f32 %v2719, %v2744
    %v2761 = vadd.f32 %v2720, %v2732
    %v2762 = vadd.f32 %v2721, %v2736
    %v2763 = vadd.f32 %v2722, %v2740
    %v2764 = vadd.f32 %v2723, %v2744
    %v2765 = vadd.f32 %v2724, %v2732
    %v2766 = vadd.f32 %v2725, %v2736
    %v2767 = vadd.f32 %v2726, %v2740
    %v2768 = vadd.f32 %v2727, %v2744
    %v2769 = vmax.f32 %v2749, 0.0
    %v2770 = vmax.f32 %v2750, 0.0
    %v2771 = vmax.f32 %v2751, 0.0
    %v2772 = vmax.f32 %v2752, 0.0
    %v2773 = vmax.f32 %v2753, 0.0
    %v2774 = vmax.f32 %v2754, 0.0
    %v2775 = vmax.f32 %v2755, 0.0
    %v2776 = vmax.f32 %v2756, 0.0
    %v2777 = vmax.f32 %v2757, 0.0
    %v2778 = vmax.f32 %v2758, 0.0
    %v2779 = vmax.f32 %v2759, 0.0
    %v2780 = vmax.f32 %v2760, 0.0
    %v2781 = vmax.f32 %v2761, 0.0
    %v2782 = vmax.f32 %v2762, 0.0
    %v2783 = vmax.f32 %v2763, 0.0
    %v2784 = vmax.f32 %v2764, 0.0
    %v2785 = vmax.f32 %v2765, 0.0
    %v2786 = vmax.f32 %v2766, 0.0
    %v2787 = vmax.f32 %v2767, 0.0
    %v2788 = vmax.f32 %v2768, 0.0
    %v2789 = vld [vmem:[%s3] sm:$0xff]
    %v2790 = vld [vmem:[%s3 + $0x8] sm:$0xff]
    %v2791 = vld [vmem:[%s3 + $0x10] sm:$0xff]
    %v2792 = vld [vmem:[%s3 + $0x18] sm:$0xff]
    %v2793 = vld [vmem:[%s3 + $0x20] sm:$0xff]
    %v2794 = vld [vmem:[%s3 + $0x28] sm:$0xff]
    %v2795 = vld [vmem:[%s3 + $0x30] sm:$0xff]
    %v2796 = vld [vmem:[%s3 + $0x38] sm:$0xff]
    %v2797 = vadd.f32 %v2769, %v2789
    %v2798 = vadd.f32 %v2770, %v2790
    %v2799 = vadd.f32 %v2771, %v2791
    %v2800 = vadd.f32 %v2772, %v2792
    %v2801 = vadd.f32 %v2773, %v2793
    %v2802 = vadd.f32 %v2774, %v2794
    %v2803 = vadd.f32 %v2775, %v2795
    %v2804 = vadd.f32 %v2776, %v2796
    %v2805 = vpack.c.bf16 %v2801, %v2797
    %v2806 = vpack.c.bf16 %v2802, %v2798
    %v2807 = vpack.c.bf16 %v2803, %v2799
    %v2808 = vpack.c.bf16 %v2804, %v2800
    %v2813 = vunpack.c.l.b16 %v2805
    %v2814 = vunpack.c.l.b16 %v2806
    %v2815 = vunpack.c.l.b16 %v2807
    %v2816 = vunpack.c.l.b16 %v2808
    %v2817 = vunpack.c.h.b16 %v2805
    %v2818 = vunpack.c.h.b16 %v2806
    %v2819 = vunpack.c.h.b16 %v2807
    %v2820 = vunpack.c.h.b16 %v2808
    %v2821 = vpack.c.b16 %v2814, %v2813
    %v2822 = vpack.c.b16 %v2816, %v2815
    %v2823 = vpack.c.b16 %v2818, %v2817
    %v2824 = vpack.c.b16 %v2820, %v2819
    %v2826 = vshrl.u32 %v2821, 16
    %v2828 = vrot.slane %v2826, 7
    %v2829 = vshll.u32 %v2821, 16
    %v2831 = vor.u32 %v2828, %v2829
    %v2833 = vshrl.u32 %v2822, 16
    %v2835 = vrot.slane %v2833, 7
    %v2836 = vshll.u32 %v2822, 16
    %v2838 = vor.u32 %v2835, %v2836
    %v2839 = vrot.slane %v2828, 4
    %v2841 = vshrl.u32 %v2823, 16
    %v2843 = vrot.slane %v2841, 7
    %v2844 = vshll.u32 %v2823, 16
    %v2846 = vor.u32 %v2843, %v2844
    %v2847 = vsel %vm945, %v2839, %v2846
    %v2848 = vrot.slane %v2835, 4
    %v2850 = vshrl.u32 %v2824, 16
    %v2852 = vrot.slane %v2850, 7
    %v2853 = vshll.u32 %v2824, 16
    %v2855 = vor.u32 %v2852, %v2853
    %v2856 = vsel %vm945, %v2848, %v2855
    %v2857 = vrot.slane %v2843, 4
    %v2858 = vrot.slane %v2852, 4
    %v2865 = vld [vmem:[#allocation4] sm:$0xff]
    %v2866 = vsel %vm970, %v2831, %v2865
    %2867 = vst [vmem:[#allocation4] sm:$0xff] %v2866
    %v2868 = vld [vmem:[#allocation4 + $0x8] sm:$0xff]
    %v2869 = vsel %vm970, %v2838, %v2868
    %2870 = vst [vmem:[#allocation4 + $0x8] sm:$0xff] %v2869
    %2871 = vst [vmem:[#allocation4 + $0x10] sm:$0xff] %v2847
    %2872 = vst [vmem:[#allocation4 + $0x18] sm:$0xff] %v2856
    %v2873 = vld [vmem:[#allocation4 + $0x20] sm:$0x11]
    %v2874 = vsel %vm70, %v2857, %v2873
    %2875 = vst [vmem:[#allocation4 + $0x20] sm:$0x11] %v2874
    %v2876 = vld [vmem:[#allocation4 + $0x28] sm:$0x11]
    %v2877 = vsel %vm70, %v2858, %v2876
    %2878 = vst [vmem:[#allocation4 + $0x28] sm:$0x11] %v2877
    %s2879 = scalar_lea.vmem %s3, 64
    %v2880 = vld [vmem:[%s2879] sm:$0xff]
    %v2881 = vld [vmem:[%s2879 + $0x8] sm:$0xff]
    %v2882 = vld [vmem:[%s2879 + $0x10] sm:$0xff]
    %v2883 = vld [vmem:[%s2879 + $0x18] sm:$0xff]
    %v2884 = vld [vmem:[%s2879 + $0x20] sm:$0xff]
    %v2885 = vld [vmem:[%s2879 + $0x28] sm:$0xff]
    %v2886 = vld [vmem:[%s2879 + $0x30] sm:$0xff]
    %v2887 = vld [vmem:[%s2879 + $0x38] sm:$0xff]
    %vm2896 = vcmask 1041408
    %v2897 = vrot.slane %v2880, 6
    %v2898 = vrot.slane %v2881, 6
    %v2899 = vrot.slane %v2882, 6
    %v2900 = vrot.slane %v2883, 6
    %v2901 = vrot.slane %v2884, 6
    %v2902 = vsel %vm2896, %v2897, %v2901
    %v2903 = vrot.slane %v2885, 6
    %v2904 = vsel %vm2896, %v2898, %v2903
    %v2905 = vrot.slane %v2886, 6
    %v2906 = vsel %vm2896, %v2899, %v2905
    %v2907 = vrot.slane %v2887, 6
    %v2908 = vsel %vm2896, %v2900, %v2907
    %v2921 = vadd.f32 %v2777, %v2897
    %v2922 = vadd.f32 %v2778, %v2898
    %v2923 = vadd.f32 %v2779, %v2899
    %v2924 = vadd.f32 %v2780, %v2900
    %v2925 = vadd.f32 %v2781, %v2902
    %v2926 = vadd.f32 %v2782, %v2904
    %v2927 = vadd.f32 %v2783, %v2906
    %v2928 = vadd.f32 %v2784, %v2908
    %v2929 = vadd.f32 %v2785, %v2901
    %v2930 = vadd.f32 %v2786, %v2903
    %v2931 = vadd.f32 %v2787, %v2905
    %v2932 = vadd.f32 %v2788, %v2907
    %v2933 = vpack.c.bf16 %v2925, %v2921
    %v2934 = vpack.c.bf16 %v2926, %v2922
    %v2935 = vpack.c.bf16 %v2927, %v2923
    %v2936 = vpack.c.bf16 %v2928, %v2924
    %v2937 = vpack.c.bf16 %v2929, %v2929
    %v2938 = vpack.c.bf16 %v2930, %v2930
    %v2939 = vpack.c.bf16 %v2931, %v2931
    %v2940 = vpack.c.bf16 %v2932, %v2932
    %v2949 = vunpack.c.l.b16 %v2933
    %v2950 = vunpack.c.l.b16 %v2934
    %v2951 = vunpack.c.l.b16 %v2935
    %v2952 = vunpack.c.l.b16 %v2936
    %v2953 = vunpack.c.h.b16 %v2933
    %v2954 = vunpack.c.h.b16 %v2934
    %v2955 = vunpack.c.h.b16 %v2935
    %v2956 = vunpack.c.h.b16 %v2936
    %v2957 = vunpack.c.l.b16 %v2937
    %v2958 = vunpack.c.l.b16 %v2938
    %v2959 = vunpack.c.l.b16 %v2939
    %v2960 = vunpack.c.l.b16 %v2940
    %v2961 = vpack.c.b16 %v2950, %v2949
    %v2962 = vpack.c.b16 %v2952, %v2951
    %v2963 = vpack.c.b16 %v2954, %v2953
    %v2964 = vpack.c.b16 %v2956, %v2955
    %v2965 = vpack.c.b16 %v2958, %v2957
    %v2966 = vpack.c.b16 %v2960, %v2959
    %v2968 = vshrl.u32 %v2961, 16
    %v2970 = vrot.slane %v2968, 7
    %v2971 = vshll.u32 %v2961, 16
    %v2973 = vor.u32 %v2970, %v2971
    %v2975 = vshrl.u32 %v2962, 16
    %v2977 = vrot.slane %v2975, 7
    %v2978 = vshll.u32 %v2962, 16
    %v2980 = vor.u32 %v2977, %v2978
    %v2981 = vrot.slane %v2970, 4
    %v2983 = vshrl.u32 %v2963, 16
    %v2985 = vrot.slane %v2983, 7
    %v2986 = vshll.u32 %v2963, 16
    %v2988 = vor.u32 %v2985, %v2986
    %v2989 = vsel %vm945, %v2981, %v2988
    %v2990 = vrot.slane %v2977, 4
    %v2992 = vshrl.u32 %v2964, 16
    %v2994 = vrot.slane %v2992, 7
    %v2995 = vshll.u32 %v2964, 16
    %v2997 = vor.u32 %v2994, %v2995
    %v2998 = vsel %vm945, %v2990, %v2997
    %v2999 = vrot.slane %v2985, 4
    %v3001 = vshrl.u32 %v2965, 16
    %v3003 = vrot.slane %v3001, 7
    %v3004 = vshll.u32 %v2965, 16
    %v3006 = vor.u32 %v3003, %v3004
    %v3007 = vsel %vm945, %v2999, %v3006
    %v3008 = vrot.slane %v2994, 4
    %v3010 = vshrl.u32 %v2966, 16
    %v3012 = vrot.slane %v3010, 7
    %v3013 = vshll.u32 %v2966, 16
    %v3015 = vor.u32 %v3012, %v3013
    %v3016 = vsel %vm945, %v3008, %v3015
    %v3023 = vld [vmem:[#allocation4 + $0x20] sm:$0xee]
    %v3024 = vsel %vm1062, %v2973, %v3023
    %3025 = vst [vmem:[#allocation4 + $0x20] sm:$0xee] %v3024
    %v3026 = vld [vmem:[#allocation4 + $0x28] sm:$0xee]
    %v3027 = vsel %vm1062, %v2980, %v3026
    %3028 = vst [vmem:[#allocation4 + $0x28] sm:$0xee] %v3027
    %3029 = vst [vmem:[#allocation4 + $0x30] sm:$0xff] %v2989
    %3030 = vst [vmem:[#allocation4 + $0x38] sm:$0xff] %v2998
    %v3031 = vld [vmem:[#allocation4 + $0x40] sm:$0x33]
    %v3032 = vsel %vm1071, %v3007, %v3031
    %3033 = vst [vmem:[#allocation4 + $0x40] sm:$0x33] %v3032
    %v3034 = vld [vmem:[#allocation4 + $0x48] sm:$0x33]
    %v3035 = vsel %vm1071, %v3016, %v3034
    %3036 = vst [vmem:[#allocation4 + $0x48] sm:$0x33] %v3035
    %v3037 = vld [vmem:[%s9] sm:$0xf]
    %v3038 = vld [vmem:[#allocation4] sm:$0xff]
    %v3039 = vld [vmem:[#allocation4 + $0x8] sm:$0xff]
    %v3040 = vld [vmem:[#allocation4 + $0x10] sm:$0xff]
    %v3041 = vld [vmem:[#allocation4 + $0x18] sm:$0xff]
    %v3042 = vld [vmem:[#allocation4 + $0x20] sm:$0xff]
    %v3043 = vld [vmem:[#allocation4 + $0x28] sm:$0xff]
    %v3044 = vld [vmem:[#allocation4 + $0x30] sm:$0xff]
    %v3045 = vld [vmem:[#allocation4 + $0x38] sm:$0xff]
    %v3046 = vld [vmem:[#allocation4 + $0x40] sm:$0x11]
    %v3047 = vld [vmem:[#allocation4 + $0x48] sm:$0x11]
    %v3048 = vld [vmem:[%s8] sm:$0xff]
    %v3049 = vld [vmem:[%s8 + $0x8] sm:$0xff]
    %v3050 = vld [vmem:[%s8 + $0x10] sm:$0xff]
    %v3051 = vld [vmem:[%s8 + $0x18] sm:$0xff]
    %v3052 = vld [vmem:[%s8 + $0x20] sm:$0xff]
    %v3053 = vld [vmem:[%s8 + $0x28] sm:$0xff]
    %v3054 = vld [vmem:[%s8 + $0x30] sm:$0xff]
    %v3055 = vld [vmem:[%s8 + $0x38] sm:$0xff]
    %v3056 = vld [vmem:[%s8 + $0x40] sm:$0xff]
    %v3057 = vld [vmem:[%s8 + $0x48] sm:$0xff]
    %v3058 = vld [vmem:[%s8 + $0x50] sm:$0xff]
    %v3059 = vld [vmem:[%s8 + $0x58] sm:$0xff]
    %v3060 = vld [vmem:[%s8 + $0x60] sm:$0xff]
    %v3061 = vld [vmem:[%s8 + $0x68] sm:$0xff]
    %v3062 = vld [vmem:[%s8 + $0x70] sm:$0xff]
    %v3063 = vld [vmem:[%s8 + $0x78] sm:$0xff]
    %v3064 = vld [vmem:[%s8 + $0x80] sm:$0xff]
    %v3065 = vld [vmem:[%s8 + $0x88] sm:$0xff]
    %v3066 = vld [vmem:[%s8 + $0x90] sm:$0xff]
    %v3067 = vld [vmem:[%s8 + $0x98] sm:$0xff]
    %v3068 = vld [vmem:[%s8 + $0xa0] sm:$0xff]
    %v3069 = vld [vmem:[%s8 + $0xa8] sm:$0xff]
    %v3070 = vld [vmem:[%s8 + $0xb0] sm:$0xff]
    %v3071 = vld [vmem:[%s8 + $0xb8] sm:$0xff]
    %v3072 = vld [vmem:[%s8 + $0xc0] sm:$0xff]
    %v3073 = vld [vmem:[%s8 + $0xc8] sm:$0xff]
    %v3074 = vld [vmem:[%s8 + $0xd0] sm:$0xff]
    %v3075 = vld [vmem:[%s8 + $0xd8] sm:$0xff]
    %v3076 = vld [vmem:[%s8 + $0xe0] sm:$0xff]
    %v3077 = vld [vmem:[%s8 + $0xe8] sm:$0xff]
    %v3078 = vld [vmem:[%s8 + $0xf0] sm:$0xff]
    %v3079 = vld [vmem:[%s8 + $0xf8] sm:$0xff]
    %v3080 = vld [vmem:[%s8 + $0x100] sm:$0xff]
    %v3081 = vld [vmem:[%s8 + $0x108] sm:$0xff]
    %v3082 = vld [vmem:[%s8 + $0x110] sm:$0xff]
    %v3083 = vld [vmem:[%s8 + $0x118] sm:$0xff]
    %v3084 = vld [vmem:[%s8 + $0x120] sm:$0xff]
    %v3085 = vld [vmem:[%s8 + $0x128] sm:$0xff]
    %v3086 = vld [vmem:[%s8 + $0x130] sm:$0xff]
    %v3087 = vld [vmem:[%s8 + $0x138] sm:$0xff]
    %v3088 = vld [vmem:[%s8 + $0x140] sm:$0xff]
    %v3089 = vld [vmem:[%s8 + $0x148] sm:$0xff]
    %v3090 = vld [vmem:[%s8 + $0x150] sm:$0xff]
    %v3091 = vld [vmem:[%s8 + $0x158] sm:$0xff]
    %v3092 = vld [vmem:[%s8 + $0x160] sm:$0xff]
    %v3093 = vld [vmem:[%s8 + $0x168] sm:$0xff]
    %v3094 = vld [vmem:[%s8 + $0x170] sm:$0xff]
    %v3095 = vld [vmem:[%s8 + $0x178] sm:$0xff]
    %v3096 = vld [vmem:[%s8 + $0x180] sm:$0xff]
    %v3097 = vld [vmem:[%s8 + $0x188] sm:$0xff]
    %v3098 = vld [vmem:[%s8 + $0x190] sm:$0xff]
    %v3099 = vld [vmem:[%s8 + $0x198] sm:$0xff]
    %v3100 = vld [vmem:[%s8 + $0x1a0] sm:$0xff]
    %v3101 = vld [vmem:[%s8 + $0x1a8] sm:$0xff]
    %v3102 = vld [vmem:[%s8 + $0x1b0] sm:$0xff]
    %v3103 = vld [vmem:[%s8 + $0x1b8] sm:$0xff]
    %v3104 = vld [vmem:[%s8 + $0x1c0] sm:$0xff]
    %v3105 = vld [vmem:[%s8 + $0x1c8] sm:$0xff]
    %v3106 = vld [vmem:[%s8 + $0x1d0] sm:$0xff]
    %v3107 = vld [vmem:[%s8 + $0x1d8] sm:$0xff]
    %v3108 = vld [vmem:[%s8 + $0x1e0] sm:$0xff]
    %v3109 = vld [vmem:[%s8 + $0x1e8] sm:$0xff]
    %v3110 = vld [vmem:[%s8 + $0x1f0] sm:$0xff]
    %v3111 = vld [vmem:[%s8 + $0x1f8] sm:$0xff]
    %v3112 = vld [vmem:[%s8 + $0x200] sm:$0xff]
    %v3113 = vld [vmem:[%s8 + $0x208] sm:$0xff]
    %v3114 = vld [vmem:[%s8 + $0x210] sm:$0xff]
    %v3115 = vld [vmem:[%s8 + $0x218] sm:$0xff]
    %v3116 = vld [vmem:[%s8 + $0x220] sm:$0xff]
    %v3117 = vld [vmem:[%s8 + $0x228] sm:$0xff]
    %v3118 = vld [vmem:[%s8 + $0x230] sm:$0xff]
    %v3119 = vld [vmem:[%s8 + $0x238] sm:$0xff]
    %v3120 = vld [vmem:[%s8 + $0x240] sm:$0xff]
    %v3121 = vld [vmem:[%s8 + $0x248] sm:$0xff]
    %v3122 = vld [vmem:[%s8 + $0x250] sm:$0xff]
    %v3123 = vld [vmem:[%s8 + $0x258] sm:$0xff]
    %v3124 = vld [vmem:[%s8 + $0x260] sm:$0xff]
    %v3125 = vld [vmem:[%s8 + $0x268] sm:$0xff]
    %v3126 = vld [vmem:[%s8 + $0x270] sm:$0xff]
    %v3127 = vld [vmem:[%s8 + $0x278] sm:$0xff]
    %v3128 = vld [vmem:[%s8 + $0x280] sm:$0xff]
    %v3129 = vld [vmem:[%s8 + $0x288] sm:$0xff]
    %v3130 = vld [vmem:[%s8 + $0x290] sm:$0xff]
    %v3131 = vld [vmem:[%s8 + $0x298] sm:$0xff]
    %v3132 = vld [vmem:[%s8 + $0x2a0] sm:$0xff]
    %v3133 = vld [vmem:[%s8 + $0x2a8] sm:$0xff]
    %v3134 = vld [vmem:[%s8 + $0x2b0] sm:$0xff]
    %v3135 = vld [vmem:[%s8 + $0x2b8] sm:$0xff]
    %v3136 = vld [vmem:[%s8 + $0x2c0] sm:$0xff]
    %v3137 = vld [vmem:[%s8 + $0x2c8] sm:$0xff]
    %v3138 = vld [vmem:[%s8 + $0x2d0] sm:$0xff]
    %v3139 = vld [vmem:[%s8 + $0x2d8] sm:$0xff]
    %v3140 = vld [vmem:[%s8 + $0x2e0] sm:$0xff]
    %v3141 = vld [vmem:[%s8 + $0x2e8] sm:$0xff]
    %v3142 = vld [vmem:[%s8 + $0x2f0] sm:$0xff]
    %v3143 = vld [vmem:[%s8 + $0x2f8] sm:$0xff]
    %v3144 = vld [vmem:[%s8 + $0x300] sm:$0xff]
    %v3145 = vld [vmem:[%s8 + $0x308] sm:$0xff]
    %v3146 = vld [vmem:[%s8 + $0x310] sm:$0xff]
    %v3147 = vld [vmem:[%s8 + $0x318] sm:$0xff]
    %v3148 = vld [vmem:[%s8 + $0x320] sm:$0xff]
    %v3149 = vld [vmem:[%s8 + $0x328] sm:$0xff]
    %v3150 = vld [vmem:[%s8 + $0x330] sm:$0xff]
    %v3151 = vld [vmem:[%s8 + $0x338] sm:$0xff]
    %v3152 = vld [vmem:[%s8 + $0x340] sm:$0xff]
    %v3153 = vld [vmem:[%s8 + $0x348] sm:$0xff]
    %v3154 = vld [vmem:[%s8 + $0x350] sm:$0xff]
    %v3155 = vld [vmem:[%s8 + $0x358] sm:$0xff]
    %v3156 = vld [vmem:[%s8 + $0x360] sm:$0xff]
    %v3157 = vld [vmem:[%s8 + $0x368] sm:$0xff]
    %v3158 = vld [vmem:[%s8 + $0x370] sm:$0xff]
    %v3159 = vld [vmem:[%s8 + $0x378] sm:$0xff]
    %v3160 = vld [vmem:[%s8 + $0x380] sm:$0xff]
    %v3161 = vld [vmem:[%s8 + $0x388] sm:$0xff]
    %v3162 = vld [vmem:[%s8 + $0x390] sm:$0xff]
    %v3163 = vld [vmem:[%s8 + $0x398] sm:$0xff]
    %v3164 = vld [vmem:[%s8 + $0x3a0] sm:$0xff]
    %v3165 = vld [vmem:[%s8 + $0x3a8] sm:$0xff]
    %v3166 = vld [vmem:[%s8 + $0x3b0] sm:$0xff]
    %v3167 = vld [vmem:[%s8 + $0x3b8] sm:$0xff]
    %v3168 = vld [vmem:[%s8 + $0x3c0] sm:$0xff]
    %v3169 = vld [vmem:[%s8 + $0x3c8] sm:$0xff]
    %v3170 = vld [vmem:[%s8 + $0x3d0] sm:$0xff]
    %v3171 = vld [vmem:[%s8 + $0x3d8] sm:$0xff]
    %v3172 = vld [vmem:[%s8 + $0x3e0] sm:$0xff]
    %v3173 = vld [vmem:[%s8 + $0x3e8] sm:$0xff]
    %v3174 = vld [vmem:[%s8 + $0x3f0] sm:$0xff]
    %v3175 = vld [vmem:[%s8 + $0x3f8] sm:$0xff]
    %v3176 = vld [vmem:[#allocation4 + $0x40] sm:$0x33]
    %v3177 = vld [vmem:[#allocation4 + $0x48] sm:$0x33]
    %s3178 = scalar_lea.vmem %s8, 1024
    %v3179 = vld [vmem:[%s3178] sm:$0xff]
    %v3180 = vld [vmem:[%s3178 + $0x8] sm:$0xff]
    %v3181 = vld [vmem:[%s3178 + $0x10] sm:$0xff]
    %v3182 = vld [vmem:[%s3178 + $0x18] sm:$0xff]
    %v3183 = vld [vmem:[%s3178 + $0x20] sm:$0xff]
    %v3184 = vld [vmem:[%s3178 + $0x28] sm:$0xff]
    %v3185 = vld [vmem:[%s3178 + $0x30] sm:$0xff]
    %v3186 = vld [vmem:[%s3178 + $0x38] sm:$0xff]
    %v3187 = vld [vmem:[%s3178 + $0x40] sm:$0xff]
    %v3188 = vld [vmem:[%s3178 + $0x48] sm:$0xff]
    %v3189 = vld [vmem:[%s3178 + $0x50] sm:$0xff]
    %v3190 = vld [vmem:[%s3178 + $0x58] sm:$0xff]
    %v3191 = vld [vmem:[%s3178 + $0x60] sm:$0xff]
    %v3192 = vld [vmem:[%s3178 + $0x68] sm:$0xff]
    %v3193 = vld [vmem:[%s3178 + $0x70] sm:$0xff]
    %v3194 = vld [vmem:[%s3178 + $0x78] sm:$0xff]
    %v3195 = vld [vmem:[%s3178 + $0x80] sm:$0xff]
    %v3196 = vld [vmem:[%s3178 + $0x88] sm:$0xff]
    %v3197 = vld [vmem:[%s3178 + $0x90] sm:$0xff]
    %v3198 = vld [vmem:[%s3178 + $0x98] sm:$0xff]
    %v3199 = vld [vmem:[%s3178 + $0xa0] sm:$0xff]
    %v3200 = vld [vmem:[%s3178 + $0xa8] sm:$0xff]
    %v3201 = vld [vmem:[%s3178 + $0xb0] sm:$0xff]
    %v3202 = vld [vmem:[%s3178 + $0xb8] sm:$0xff]
    %v3203 = vld [vmem:[%s3178 + $0xc0] sm:$0xff]
    %v3204 = vld [vmem:[%s3178 + $0xc8] sm:$0xff]
    %v3205 = vld [vmem:[%s3178 + $0xd0] sm:$0xff]
    %v3206 = vld [vmem:[%s3178 + $0xd8] sm:$0xff]
    %v3207 = vld [vmem:[%s3178 + $0xe0] sm:$0xff]
    %v3208 = vld [vmem:[%s3178 + $0xe8] sm:$0xff]
    %v3209 = vld [vmem:[%s3178 + $0xf0] sm:$0xff]
    %v3210 = vld [vmem:[%s3178 + $0xf8] sm:$0xff]
    %v3211 = vld [vmem:[%s3178 + $0x100] sm:$0xff]
    %v3212 = vld [vmem:[%s3178 + $0x108] sm:$0xff]
    %v3213 = vld [vmem:[%s3178 + $0x110] sm:$0xff]
    %v3214 = vld [vmem:[%s3178 + $0x118] sm:$0xff]
    %v3215 = vld [vmem:[%s3178 + $0x120] sm:$0xff]
    %v3216 = vld [vmem:[%s3178 + $0x128] sm:$0xff]
    %v3217 = vld [vmem:[%s3178 + $0x130] sm:$0xff]
    %v3218 = vld [vmem:[%s3178 + $0x138] sm:$0xff]
    %v3219 = vld [vmem:[%s3178 + $0x140] sm:$0xff]
    %v3220 = vld [vmem:[%s3178 + $0x148] sm:$0xff]
    %v3221 = vld [vmem:[%s3178 + $0x150] sm:$0xff]
    %v3222 = vld [vmem:[%s3178 + $0x158] sm:$0xff]
    %v3223 = vld [vmem:[%s3178 + $0x160] sm:$0xff]
    %v3224 = vld [vmem:[%s3178 + $0x168] sm:$0xff]
    %v3225 = vld [vmem:[%s3178 + $0x170] sm:$0xff]
    %v3226 = vld [vmem:[%s3178 + $0x178] sm:$0xff]
    %v3227 = vld [vmem:[%s3178 + $0x180] sm:$0xff]
    %v3228 = vld [vmem:[%s3178 + $0x188] sm:$0xff]
    %v3229 = vld [vmem:[%s3178 + $0x190] sm:$0xff]
    %v3230 = vld [vmem:[%s3178 + $0x198] sm:$0xff]
    %v3231 = vld [vmem:[%s3178 + $0x1a0] sm:$0xff]
    %v3232 = vld [vmem:[%s3178 + $0x1a8] sm:$0xff]
    %v3233 = vld [vmem:[%s3178 + $0x1b0] sm:$0xff]
    %v3234 = vld [vmem:[%s3178 + $0x1b8] sm:$0xff]
    %v3235 = vld [vmem:[%s3178 + $0x1c0] sm:$0xff]
    %v3236 = vld [vmem:[%s3178 + $0x1c8] sm:$0xff]
    %v3237 = vld [vmem:[%s3178 + $0x1d0] sm:$0xff]
    %v3238 = vld [vmem:[%s3178 + $0x1d8] sm:$0xff]
    %v3239 = vld [vmem:[%s3178 + $0x1e0] sm:$0xff]
    %v3240 = vld [vmem:[%s3178 + $0x1e8] sm:$0xff]
    %v3241 = vld [vmem:[%s3178 + $0x1f0] sm:$0xff]
    %v3242 = vld [vmem:[%s3178 + $0x1f8] sm:$0xff]
    %v3243 = vld [vmem:[%s3178 + $0x200] sm:$0xff]
    %v3244 = vld [vmem:[%s3178 + $0x208] sm:$0xff]
    %v3245 = vld [vmem:[%s3178 + $0x210] sm:$0xff]
    %v3246 = vld [vmem:[%s3178 + $0x218] sm:$0xff]
    %v3247 = vld [vmem:[%s3178 + $0x220] sm:$0xff]
    %v3248 = vld [vmem:[%s3178 + $0x228] sm:$0xff]
    %v3249 = vld [vmem:[%s3178 + $0x230] sm:$0xff]
    %v3250 = vld [vmem:[%s3178 + $0x238] sm:$0xff]
    %v3251 = vld [vmem:[%s3178 + $0x240] sm:$0xff]
    %v3252 = vld [vmem:[%s3178 + $0x248] sm:$0xff]
    %v3253 = vld [vmem:[%s3178 + $0x250] sm:$0xff]
    %v3254 = vld [vmem:[%s3178 + $0x258] sm:$0xff]
    %v3255 = vld [vmem:[%s3178 + $0x260] sm:$0xff]
    %v3256 = vld [vmem:[%s3178 + $0x268] sm:$0xff]
    %v3257 = vld [vmem:[%s3178 + $0x270] sm:$0xff]
    %v3258 = vld [vmem:[%s3178 + $0x278] sm:$0xff]
    %v3259 = vld [vmem:[%s3178 + $0x280] sm:$0xff]
    %v3260 = vld [vmem:[%s3178 + $0x288] sm:$0xff]
    %v3261 = vld [vmem:[%s3178 + $0x290] sm:$0xff]
    %v3262 = vld [vmem:[%s3178 + $0x298] sm:$0xff]
    %v3263 = vld [vmem:[%s3178 + $0x2a0] sm:$0xff]
    %v3264 = vld [vmem:[%s3178 + $0x2a8] sm:$0xff]
    %v3265 = vld [vmem:[%s3178 + $0x2b0] sm:$0xff]
    %v3266 = vld [vmem:[%s3178 + $0x2b8] sm:$0xff]
    %v3267 = vld [vmem:[%s3178 + $0x2c0] sm:$0xff]
    %v3268 = vld [vmem:[%s3178 + $0x2c8] sm:$0xff]
    %v3269 = vld [vmem:[%s3178 + $0x2d0] sm:$0xff]
    %v3270 = vld [vmem:[%s3178 + $0x2d8] sm:$0xff]
    %v3271 = vld [vmem:[%s3178 + $0x2e0] sm:$0xff]
    %v3272 = vld [vmem:[%s3178 + $0x2e8] sm:$0xff]
    %v3273 = vld [vmem:[%s3178 + $0x2f0] sm:$0xff]
    %v3274 = vld [vmem:[%s3178 + $0x2f8] sm:$0xff]
    %v3275 = vld [vmem:[%s3178 + $0x300] sm:$0xff]
    %v3276 = vld [vmem:[%s3178 + $0x308] sm:$0xff]
    %v3277 = vld [vmem:[%s3178 + $0x310] sm:$0xff]
    %v3278 = vld [vmem:[%s3178 + $0x318] sm:$0xff]
    %v3279 = vld [vmem:[%s3178 + $0x320] sm:$0xff]
    %v3280 = vld [vmem:[%s3178 + $0x328] sm:$0xff]
    %v3281 = vld [vmem:[%s3178 + $0x330] sm:$0xff]
    %v3282 = vld [vmem:[%s3178 + $0x338] sm:$0xff]
    %v3283 = vld [vmem:[%s3178 + $0x340] sm:$0xff]
    %v3284 = vld [vmem:[%s3178 + $0x348] sm:$0xff]
    %v3285 = vld [vmem:[%s3178 + $0x350] sm:$0xff]
    %v3286 = vld [vmem:[%s3178 + $0x358] sm:$0xff]
    %v3287 = vld [vmem:[%s3178 + $0x360] sm:$0xff]
    %v3288 = vld [vmem:[%s3178 + $0x368] sm:$0xff]
    %v3289 = vld [vmem:[%s3178 + $0x370] sm:$0xff]
    %v3290 = vld [vmem:[%s3178 + $0x378] sm:$0xff]
    %v3291 = vld [vmem:[%s3178 + $0x380] sm:$0xff]
    %v3292 = vld [vmem:[%s3178 + $0x388] sm:$0xff]
    %v3293 = vld [vmem:[%s3178 + $0x390] sm:$0xff]
    %v3294 = vld [vmem:[%s3178 + $0x398] sm:$0xff]
    %v3295 = vld [vmem:[%s3178 + $0x3a0] sm:$0xff]
    %v3296 = vld [vmem:[%s3178 + $0x3a8] sm:$0xff]
    %v3297 = vld [vmem:[%s3178 + $0x3b0] sm:$0xff]
    %v3298 = vld [vmem:[%s3178 + $0x3b8] sm:$0xff]
    %v3299 = vld [vmem:[%s3178 + $0x3c0] sm:$0xff]
    %v3300 = vld [vmem:[%s3178 + $0x3c8] sm:$0xff]
    %v3301 = vld [vmem:[%s3178 + $0x3d0] sm:$0xff]
    %v3302 = vld [vmem:[%s3178 + $0x3d8] sm:$0xff]
    %v3303 = vld [vmem:[%s3178 + $0x3e0] sm:$0xff]
    %v3304 = vld [vmem:[%s3178 + $0x3e8] sm:$0xff]
    %v3305 = vld [vmem:[%s3178 + $0x3f0] sm:$0xff]
    %v3306 = vld [vmem:[%s3178 + $0x3f8] sm:$0xff]
    %v3317 = vunpack.c.l.b16 %v3038
    %v3318 = vunpack.c.h.b16 %v3038
    %v3319 = vunpack.c.l.b16 %v3039
    %v3320 = vunpack.c.h.b16 %v3039
    %v3321 = vunpack.c.l.b16 %v3040
    %v3322 = vunpack.c.h.b16 %v3040
    %v3323 = vunpack.c.l.b16 %v3041
    %v3324 = vunpack.c.h.b16 %v3041
    %v3325 = vunpack.c.l.b16 %v3042
    %v3326 = vunpack.c.h.b16 %v3042
    %v3327 = vunpack.c.l.b16 %v3043
    %v3328 = vunpack.c.h.b16 %v3043
    %v3329 = vunpack.c.l.b16 %v3044
    %v3330 = vunpack.c.h.b16 %v3044
    %v3331 = vunpack.c.l.b16 %v3045
    %v3332 = vunpack.c.h.b16 %v3045
    %v3333 = vunpack.c.l.b16 %v3176
    %v3334 = vunpack.c.h.b16 %v3176
    %v3335 = vunpack.c.l.b16 %v3177
    %v3336 = vunpack.c.h.b16 %v3177
    %v3337 = vpack.c.b16 %v3321, %v3317
    %v3338 = vpack.c.b16 %v3322, %v3318
    %v3339 = vpack.c.b16 %v3323, %v3319
    %v3340 = vpack.c.b16 %v3324, %v3320
    %v3341 = vpack.c.b16 %v3329, %v3325
    %v3342 = vpack.c.b16 %v3330, %v3326
    %v3343 = vpack.c.b16 %v3331, %v3327
    %v3344 = vpack.c.b16 %v3332, %v3328
    %v3345 = vpack.c.b16 %v3333, %v3333
    %v3346 = vpack.c.b16 %v3334, %v3334
    %v3347 = vpack.c.b16 %v3335, %v3335
    %v3348 = vpack.c.b16 %v3336, %v3336
    %v3350 = vshrl.u32 %v3337, 16
    %v3352 = vshll.u32 %v3337, 16
    %v3354 = vrot.slane %v3352, 1
    %v3355 = vor.u32 %v3350, %v3354
    %v3357 = vshll.u32 %v3341, 16
    %v3359 = vrot.slane %v3357, 1
    %v3360 = vsel %vm216, %v3355, %v3359
    %v3362 = vshrl.u32 %v3338, 16
    %v3364 = vshll.u32 %v3338, 16
    %v3366 = vrot.slane %v3364, 1
    %v3367 = vor.u32 %v3362, %v3366
    %v3369 = vshll.u32 %v3342, 16
    %v3371 = vrot.slane %v3369, 1
    %v3372 = vsel %vm216, %v3367, %v3371
    %v3374 = vshrl.u32 %v3339, 16
    %v3376 = vshll.u32 %v3339, 16
    %v3378 = vrot.slane %v3376, 1
    %v3379 = vor.u32 %v3374, %v3378
    %v3381 = vshll.u32 %v3343, 16
    %v3383 = vrot.slane %v3381, 1
    %v3384 = vsel %vm216, %v3379, %v3383
    %v3386 = vshrl.u32 %v3340, 16
    %v3388 = vshll.u32 %v3340, 16
    %v3390 = vrot.slane %v3388, 1
    %v3391 = vor.u32 %v3386, %v3390
    %v3393 = vshll.u32 %v3344, 16
    %v3395 = vrot.slane %v3393, 1
    %v3396 = vsel %vm216, %v3391, %v3395
    %v3397 = vshrl.u32 %v3341, 16
    %v3399 = vor.u32 %v3397, %v3359
    %v3401 = vshll.u32 %v3345, 16
    %v3403 = vrot.slane %v3401, 1
    %v3404 = vsel %vm216, %v3399, %v3403
    %v3405 = vshrl.u32 %v3342, 16
    %v3407 = vor.u32 %v3405, %v3371
    %v3409 = vshll.u32 %v3346, 16
    %v3411 = vrot.slane %v3409, 1
    %v3412 = vsel %vm216, %v3407, %v3411
    %v3413 = vshrl.u32 %v3343, 16
    %v3415 = vor.u32 %v3413, %v3383
    %v3417 = vshll.u32 %v3347, 16
    %v3419 = vrot.slane %v3417, 1
    %v3420 = vsel %vm216, %v3415, %v3419
    %v3421 = vshrl.u32 %v3344, 16
    %v3423 = vor.u32 %v3421, %v3395
    %v3425 = vshll.u32 %v3348, 16
    %v3427 = vrot.slane %v3425, 1
    %v3428 = vsel %vm216, %v3423, %v3427
    %v3429 = vshrl.u32 %v3345, 16
    %v3431 = vor.u32 %v3429, %v3403
    %v3432 = vshrl.u32 %v3346, 16
    %v3434 = vor.u32 %v3432, %v3411
    %v3435 = vshrl.u32 %v3347, 16
    %v3437 = vor.u32 %v3435, %v3419
    %v3438 = vshrl.u32 %v3348, 16
    %v3440 = vor.u32 %v3438, %v3427
    %v3581 = vunpack.c.l.b16 %v3179
    %v3582 = vunpack.c.h.b16 %v3179
    %v3583 = vunpack.c.l.b16 %v3180
    %v3584 = vunpack.c.h.b16 %v3180
    %v3585 = vunpack.c.l.b16 %v3181
    %v3586 = vunpack.c.h.b16 %v3181
    %v3587 = vunpack.c.l.b16 %v3182
    %v3588 = vunpack.c.h.b16 %v3182
    %v3589 = vunpack.c.l.b16 %v3183
    %v3590 = vunpack.c.h.b16 %v3183
    %v3591 = vunpack.c.l.b16 %v3184
    %v3592 = vunpack.c.h.b16 %v3184
    %v3593 = vunpack.c.l.b16 %v3185
    %v3594 = vunpack.c.h.b16 %v3185
    %v3595 = vunpack.c.l.b16 %v3186
    %v3596 = vunpack.c.h.b16 %v3186
    %v3597 = vunpack.c.l.b16 %v3187
    %v3598 = vunpack.c.h.b16 %v3187
    %v3599 = vunpack.c.l.b16 %v3188
    %v3600 = vunpack.c.h.b16 %v3188
    %v3601 = vunpack.c.l.b16 %v3189
    %v3602 = vunpack.c.h.b16 %v3189
    %v3603 = vunpack.c.l.b16 %v3190
    %v3604 = vunpack.c.h.b16 %v3190
    %v3605 = vunpack.c.l.b16 %v3191
    %v3606 = vunpack.c.h.b16 %v3191
    %v3607 = vunpack.c.l.b16 %v3192
    %v3608 = vunpack.c.h.b16 %v3192
    %v3609 = vunpack.c.l.b16 %v3193
    %v3610 = vunpack.c.h.b16 %v3193
    %v3611 = vunpack.c.l.b16 %v3194
    %v3612 = vunpack.c.h.b16 %v3194
    %v3613 = vunpack.c.l.b16 %v3195
    %v3614 = vunpack.c.h.b16 %v3195
    %v3615 = vunpack.c.l.b16 %v3196
    %v3616 = vunpack.c.h.b16 %v3196
    %v3617 = vunpack.c.l.b16 %v3197
    %v3618 = vunpack.c.h.b16 %v3197
    %v3619 = vunpack.c.l.b16 %v3198
    %v3620 = vunpack.c.h.b16 %v3198
    %v3621 = vunpack.c.l.b16 %v3199
    %v3622 = vunpack.c.h.b16 %v3199
    %v3623 = vunpack.c.l.b16 %v3200
    %v3624 = vunpack.c.h.b16 %v3200
    %v3625 = vunpack.c.l.b16 %v3201
    %v3626 = vunpack.c.h.b16 %v3201
    %v3627 = vunpack.c.l.b16 %v3202
    %v3628 = vunpack.c.h.b16 %v3202
    %v3629 = vunpack.c.l.b16 %v3203
    %v3630 = vunpack.c.h.b16 %v3203
    %v3631 = vunpack.c.l.b16 %v3204
    %v3632 = vunpack.c.h.b16 %v3204
    %v3633 = vunpack.c.l.b16 %v3205
    %v3634 = vunpack.c.h.b16 %v3205
    %v3635 = vunpack.c.l.b16 %v3206
    %v3636 = vunpack.c.h.b16 %v3206
    %v3637 = vunpack.c.l.b16 %v3207
    %v3638 = vunpack.c.h.b16 %v3207
    %v3639 = vunpack.c.l.b16 %v3208
    %v3640 = vunpack.c.h.b16 %v3208
    %v3641 = vunpack.c.l.b16 %v3209
    %v3642 = vunpack.c.h.b16 %v3209
    %v3643 = vunpack.c.l.b16 %v3210
    %v3644 = vunpack.c.h.b16 %v3210
    %v3645 = vunpack.c.l.b16 %v3211
    %v3646 = vunpack.c.h.b16 %v3211
    %v3647 = vunpack.c.l.b16 %v3212
    %v3648 = vunpack.c.h.b16 %v3212
    %v3649 = vunpack.c.l.b16 %v3213
    %v3650 = vunpack.c.h.b16 %v3213
    %v3651 = vunpack.c.l.b16 %v3214
    %v3652 = vunpack.c.h.b16 %v3214
    %v3653 = vunpack.c.l.b16 %v3215
    %v3654 = vunpack.c.h.b16 %v3215
    %v3655 = vunpack.c.l.b16 %v3216
    %v3656 = vunpack.c.h.b16 %v3216
    %v3657 = vunpack.c.l.b16 %v3217
    %v3658 = vunpack.c.h.b16 %v3217
    %v3659 = vunpack.c.l.b16 %v3218
    %v3660 = vunpack.c.h.b16 %v3218
    %v3661 = vunpack.c.l.b16 %v3219
    %v3662 = vunpack.c.h.b16 %v3219
    %v3663 = vunpack.c.l.b16 %v3220
    %v3664 = vunpack.c.h.b16 %v3220
    %v3665 = vunpack.c.l.b16 %v3221
    %v3666 = vunpack.c.h.b16 %v3221
    %v3667 = vunpack.c.l.b16 %v3222
    %v3668 = vunpack.c.h.b16 %v3222
    %v3669 = vunpack.c.l.b16 %v3223
    %v3670 = vunpack.c.h.b16 %v3223
    %v3671 = vunpack.c.l.b16 %v3224
    %v3672 = vunpack.c.h.b16 %v3224
    %v3673 = vunpack.c.l.b16 %v3225
    %v3674 = vunpack.c.h.b16 %v3225
    %v3675 = vunpack.c.l.b16 %v3226
    %v3676 = vunpack.c.h.b16 %v3226
    %v3677 = vunpack.c.l.b16 %v3227
    %v3678 = vunpack.c.h.b16 %v3227
    %v3679 = vunpack.c.l.b16 %v3228
    %v3680 = vunpack.c.h.b16 %v3228
    %v3681 = vunpack.c.l.b16 %v3229
    %v3682 = vunpack.c.h.b16 %v3229
    %v3683 = vunpack.c.l.b16 %v3230
    %v3684 = vunpack.c.h.b16 %v3230
    %v3685 = vunpack.c.l.b16 %v3231
    %v3686 = vunpack.c.h.b16 %v3231
    %v3687 = vunpack.c.l.b16 %v3232
    %v3688 = vunpack.c.h.b16 %v3232
    %v3689 = vunpack.c.l.b16 %v3233
    %v3690 = vunpack.c.h.b16 %v3233
    %v3691 = vunpack.c.l.b16 %v3234
    %v3692 = vunpack.c.h.b16 %v3234
    %v3693 = vunpack.c.l.b16 %v3235
    %v3694 = vunpack.c.h.b16 %v3235
    %v3695 = vunpack.c.l.b16 %v3236
    %v3696 = vunpack.c.h.b16 %v3236
    %v3697 = vunpack.c.l.b16 %v3237
    %v3698 = vunpack.c.h.b16 %v3237
    %v3699 = vunpack.c.l.b16 %v3238
    %v3700 = vunpack.c.h.b16 %v3238
    %v3701 = vunpack.c.l.b16 %v3239
    %v3702 = vunpack.c.h.b16 %v3239
    %v3703 = vunpack.c.l.b16 %v3240
    %v3704 = vunpack.c.h.b16 %v3240
    %v3705 = vunpack.c.l.b16 %v3241
    %v3706 = vunpack.c.h.b16 %v3241
    %v3707 = vunpack.c.l.b16 %v3242
    %v3708 = vunpack.c.h.b16 %v3242
    %v3709 = vunpack.c.l.b16 %v3243
    %v3710 = vunpack.c.h.b16 %v3243
    %v3711 = vunpack.c.l.b16 %v3244
    %v3712 = vunpack.c.h.b16 %v3244
    %v3713 = vunpack.c.l.b16 %v3245
    %v3714 = vunpack.c.h.b16 %v3245
    %v3715 = vunpack.c.l.b16 %v3246
    %v3716 = vunpack.c.h.b16 %v3246
    %v3717 = vunpack.c.l.b16 %v3247
    %v3718 = vunpack.c.h.b16 %v3247
    %v3719 = vunpack.c.l.b16 %v3248
    %v3720 = vunpack.c.h.b16 %v3248
    %v3721 = vunpack.c.l.b16 %v3249
    %v3722 = vunpack.c.h.b16 %v3249
    %v3723 = vunpack.c.l.b16 %v3250
    %v3724 = vunpack.c.h.b16 %v3250
    %v3725 = vunpack.c.l.b16 %v3251
    %v3726 = vunpack.c.h.b16 %v3251
    %v3727 = vunpack.c.l.b16 %v3252
    %v3728 = vunpack.c.h.b16 %v3252
    %v3729 = vunpack.c.l.b16 %v3253
    %v3730 = vunpack.c.h.b16 %v3253
    %v3731 = vunpack.c.l.b16 %v3254
    %v3732 = vunpack.c.h.b16 %v3254
    %v3733 = vunpack.c.l.b16 %v3255
    %v3734 = vunpack.c.h.b16 %v3255
    %v3735 = vunpack.c.l.b16 %v3256
    %v3736 = vunpack.c.h.b16 %v3256
    %v3737 = vunpack.c.l.b16 %v3257
    %v3738 = vunpack.c.h.b16 %v3257
    %v3739 = vunpack.c.l.b16 %v3258
    %v3740 = vunpack.c.h.b16 %v3258
    %v3741 = vunpack.c.l.b16 %v3259
    %v3742 = vunpack.c.h.b16 %v3259
    %v3743 = vunpack.c.l.b16 %v3260
    %v3744 = vunpack.c.h.b16 %v3260
    %v3745 = vunpack.c.l.b16 %v3261
    %v3746 = vunpack.c.h.b16 %v3261
    %v3747 = vunpack.c.l.b16 %v3262
    %v3748 = vunpack.c.h.b16 %v3262
    %v3749 = vunpack.c.l.b16 %v3263
    %v3750 = vunpack.c.h.b16 %v3263
    %v3751 = vunpack.c.l.b16 %v3264
    %v3752 = vunpack.c.h.b16 %v3264
    %v3753 = vunpack.c.l.b16 %v3265
    %v3754 = vunpack.c.h.b16 %v3265
    %v3755 = vunpack.c.l.b16 %v3266
    %v3756 = vunpack.c.h.b16 %v3266
    %v3757 = vunpack.c.l.b16 %v3267
    %v3758 = vunpack.c.h.b16 %v3267
    %v3759 = vunpack.c.l.b16 %v3268
    %v3760 = vunpack.c.h.b16 %v3268
    %v3761 = vunpack.c.l.b16 %v3269
    %v3762 = vunpack.c.h.b16 %v3269
    %v3763 = vunpack.c.l.b16 %v3270
    %v3764 = vunpack.c.h.b16 %v3270
    %v3765 = vunpack.c.l.b16 %v3271
    %v3766 = vunpack.c.h.b16 %v3271
    %v3767 = vunpack.c.l.b16 %v3272
    %v3768 = vunpack.c.h.b16 %v3272
    %v3769 = vunpack.c.l.b16 %v3273
    %v3770 = vunpack.c.h.b16 %v3273
    %v3771 = vunpack.c.l.b16 %v3274
    %v3772 = vunpack.c.h.b16 %v3274
    %v3773 = vunpack.c.l.b16 %v3275
    %v3774 = vunpack.c.h.b16 %v3275
    %v3775 = vunpack.c.l.b16 %v3276
    %v3776 = vunpack.c.h.b16 %v3276
    %v3777 = vunpack.c.l.b16 %v3277
    %v3778 = vunpack.c.h.b16 %v3277
    %v3779 = vunpack.c.l.b16 %v3278
    %v3780 = vunpack.c.h.b16 %v3278
    %v3781 = vunpack.c.l.b16 %v3279
    %v3782 = vunpack.c.h.b16 %v3279
    %v3783 = vunpack.c.l.b16 %v3280
    %v3784 = vunpack.c.h.b16 %v3280
    %v3785 = vunpack.c.l.b16 %v3281
    %v3786 = vunpack.c.h.b16 %v3281
    %v3787 = vunpack.c.l.b16 %v3282
    %v3788 = vunpack.c.h.b16 %v3282
    %v3789 = vunpack.c.l.b16 %v3283
    %v3790 = vunpack.c.h.b16 %v3283
    %v3791 = vunpack.c.l.b16 %v3284
    %v3792 = vunpack.c.h.b16 %v3284
    %v3793 = vunpack.c.l.b16 %v3285
    %v3794 = vunpack.c.h.b16 %v3285
    %v3795 = vunpack.c.l.b16 %v3286
    %v3796 = vunpack.c.h.b16 %v3286
    %v3797 = vunpack.c.l.b16 %v3287
    %v3798 = vunpack.c.h.b16 %v3287
    %v3799 = vunpack.c.l.b16 %v3288
    %v3800 = vunpack.c.h.b16 %v3288
    %v3801 = vunpack.c.l.b16 %v3289
    %v3802 = vunpack.c.h.b16 %v3289
    %v3803 = vunpack.c.l.b16 %v3290
    %v3804 = vunpack.c.h.b16 %v3290
    %v3805 = vunpack.c.l.b16 %v3291
    %v3806 = vunpack.c.h.b16 %v3291
    %v3807 = vunpack.c.l.b16 %v3292
    %v3808 = vunpack.c.h.b16 %v3292
    %v3809 = vunpack.c.l.b16 %v3293
    %v3810 = vunpack.c.h.b16 %v3293
    %v3811 = vunpack.c.l.b16 %v3294
    %v3812 = vunpack.c.h.b16 %v3294
    %v3813 = vunpack.c.l.b16 %v3295
    %v3814 = vunpack.c.h.b16 %v3295
    %v3815 = vunpack.c.l.b16 %v3296
    %v3816 = vunpack.c.h.b16 %v3296
    %v3817 = vunpack.c.l.b16 %v3297
    %v3818 = vunpack.c.h.b16 %v3297
    %v3819 = vunpack.c.l.b16 %v3298
    %v3820 = vunpack.c.h.b16 %v3298
    %v3821 = vunpack.c.l.b16 %v3299
    %v3822 = vunpack.c.h.b16 %v3299
    %v3823 = vunpack.c.l.b16 %v3300
    %v3824 = vunpack.c.h.b16 %v3300
    %v3825 = vunpack.c.l.b16 %v3301
    %v3826 = vunpack.c.h.b16 %v3301
    %v3827 = vunpack.c.l.b16 %v3302
    %v3828 = vunpack.c.h.b16 %v3302
    %v3829 = vunpack.c.l.b16 %v3303
    %v3830 = vunpack.c.h.b16 %v3303
    %v3831 = vunpack.c.l.b16 %v3304
    %v3832 = vunpack.c.h.b16 %v3304
    %v3833 = vunpack.c.l.b16 %v3305
    %v3834 = vunpack.c.h.b16 %v3305
    %v3835 = vunpack.c.l.b16 %v3306
    %v3836 = vunpack.c.h.b16 %v3306
    %v3837 = vpack.c.b16 %v3585, %v3581
    %v3838 = vpack.c.b16 %v3586, %v3582
    %v3839 = vpack.c.b16 %v3587, %v3583
    %v3840 = vpack.c.b16 %v3588, %v3584
    %v3841 = vpack.c.b16 %v3593, %v3589
    %v3842 = vpack.c.b16 %v3594, %v3590
    %v3843 = vpack.c.b16 %v3595, %v3591
    %v3844 = vpack.c.b16 %v3596, %v3592
    %v3845 = vpack.c.b16 %v3601, %v3597
    %v3846 = vpack.c.b16 %v3602, %v3598
    %v3847 = vpack.c.b16 %v3603, %v3599
    %v3848 = vpack.c.b16 %v3604, %v3600
    %v3849 = vpack.c.b16 %v3609, %v3605
    %v3850 = vpack.c.b16 %v3610, %v3606
    %v3851 = vpack.c.b16 %v3611, %v3607
    %v3852 = vpack.c.b16 %v3612, %v3608
    %v3853 = vpack.c.b16 %v3617, %v3613
    %v3854 = vpack.c.b16 %v3618, %v3614
    %v3855 = vpack.c.b16 %v3619, %v3615
    %v3856 = vpack.c.b16 %v3620, %v3616
    %v3857 = vpack.c.b16 %v3625, %v3621
    %v3858 = vpack.c.b16 %v3626, %v3622
    %v3859 = vpack.c.b16 %v3627, %v3623
    %v3860 = vpack.c.b16 %v3628, %v3624
    %v3861 = vpack.c.b16 %v3633, %v3629
    %v3862 = vpack.c.b16 %v3634, %v3630
    %v3863 = vpack.c.b16 %v3635, %v3631
    %v3864 = vpack.c.b16 %v3636, %v3632
    %v3865 = vpack.c.b16 %v3641, %v3637
    %v3866 = vpack.c.b16 %v3642, %v3638
    %v3867 = vpack.c.b16 %v3643, %v3639
    %v3868 = vpack.c.b16 %v3644, %v3640
    %v3869 = vpack.c.b16 %v3649, %v3645
    %v3870 = vpack.c.b16 %v3650, %v3646
    %v3871 = vpack.c.b16 %v3651, %v3647
    %v3872 = vpack.c.b16 %v3652, %v3648
    %v3873 = vpack.c.b16 %v3657, %v3653
    %v3874 = vpack.c.b16 %v3658, %v3654
    %v3875 = vpack.c.b16 %v3659, %v3655
    %v3876 = vpack.c.b16 %v3660, %v3656
    %v3877 = vpack.c.b16 %v3665, %v3661
    %v3878 = vpack.c.b16 %v3666, %v3662
    %v3879 = vpack.c.b16 %v3667, %v3663
    %v3880 = vpack.c.b16 %v3668, %v3664
    %v3881 = vpack.c.b16 %v3673, %v3669
    %v3882 = vpack.c.b16 %v3674, %v3670
    %v3883 = vpack.c.b16 %v3675, %v3671
    %v3884 = vpack.c.b16 %v3676, %v3672
    %v3885 = vpack.c.b16 %v3681, %v3677
    %v3886 = vpack.c.b16 %v3682, %v3678
    %v3887 = vpack.c.b16 %v3683, %v3679
    %v3888 = vpack.c.b16 %v3684, %v3680
    %v3889 = vpack.c.b16 %v3689, %v3685
    %v3890 = vpack.c.b16 %v3690, %v3686
    %v3891 = vpack.c.b16 %v3691, %v3687
    %v3892 = vpack.c.b16 %v3692, %v3688
    %v3893 = vpack.c.b16 %v3697, %v3693
    %v3894 = vpack.c.b16 %v3698, %v3694
    %v3895 = vpack.c.b16 %v3699, %v3695
    %v3896 = vpack.c.b16 %v3700, %v3696
    %v3897 = vpack.c.b16 %v3705, %v3701
    %v3898 = vpack.c.b16 %v3706, %v3702
    %v3899 = vpack.c.b16 %v3707, %v3703
    %v3900 = vpack.c.b16 %v3708, %v3704
    %v3901 = vpack.c.b16 %v3713, %v3709
    %v3902 = vpack.c.b16 %v3714, %v3710
    %v3903 = vpack.c.b16 %v3715, %v3711
    %v3904 = vpack.c.b16 %v3716, %v3712
    %v3905 = vpack.c.b16 %v3721, %v3717
    %v3906 = vpack.c.b16 %v3722, %v3718
    %v3907 = vpack.c.b16 %v3723, %v3719
    %v3908 = vpack.c.b16 %v3724, %v3720
    %v3909 = vpack.c.b16 %v3729, %v3725
    %v3910 = vpack.c.b16 %v3730, %v3726
    %v3911 = vpack.c.b16 %v3731, %v3727
    %v3912 = vpack.c.b16 %v3732, %v3728
    %v3913 = vpack.c.b16 %v3737, %v3733
    %v3914 = vpack.c.b16 %v3738, %v3734
    %v3915 = vpack.c.b16 %v3739, %v3735
    %v3916 = vpack.c.b16 %v3740, %v3736
    %v3917 = vpack.c.b16 %v3745, %v3741
    %v3918 = vpack.c.b16 %v3746, %v3742
    %v3919 = vpack.c.b16 %v3747, %v3743
    %v3920 = vpack.c.b16 %v3748, %v3744
    %v3921 = vpack.c.b16 %v3753, %v3749
    %v3922 = vpack.c.b16 %v3754, %v3750
    %v3923 = vpack.c.b16 %v3755, %v3751
    %v3924 = vpack.c.b16 %v3756, %v3752
    %v3925 = vpack.c.b16 %v3761, %v3757
    %v3926 = vpack.c.b16 %v3762, %v3758
    %v3927 = vpack.c.b16 %v3763, %v3759
    %v3928 = vpack.c.b16 %v3764, %v3760
    %v3929 = vpack.c.b16 %v3769, %v3765
    %v3930 = vpack.c.b16 %v3770, %v3766
    %v3931 = vpack.c.b16 %v3771, %v3767
    %v3932 = vpack.c.b16 %v3772, %v3768
    %v3933 = vpack.c.b16 %v3777, %v3773
    %v3934 = vpack.c.b16 %v3778, %v3774
    %v3935 = vpack.c.b16 %v3779, %v3775
    %v3936 = vpack.c.b16 %v3780, %v3776
    %v3937 = vpack.c.b16 %v3785, %v3781
    %v3938 = vpack.c.b16 %v3786, %v3782
    %v3939 = vpack.c.b16 %v3787, %v3783
    %v3940 = vpack.c.b16 %v3788, %v3784
    %v3941 = vpack.c.b16 %v3793, %v3789
    %v3942 = vpack.c.b16 %v3794, %v3790
    %v3943 = vpack.c.b16 %v3795, %v3791
    %v3944 = vpack.c.b16 %v3796, %v3792
    %v3945 = vpack.c.b16 %v3801, %v3797
    %v3946 = vpack.c.b16 %v3802, %v3798
    %v3947 = vpack.c.b16 %v3803, %v3799
    %v3948 = vpack.c.b16 %v3804, %v3800
    %v3949 = vpack.c.b16 %v3809, %v3805
    %v3950 = vpack.c.b16 %v3810, %v3806
    %v3951 = vpack.c.b16 %v3811, %v3807
    %v3952 = vpack.c.b16 %v3812, %v3808
    %v3953 = vpack.c.b16 %v3817, %v3813
    %v3954 = vpack.c.b16 %v3818, %v3814
    %v3955 = vpack.c.b16 %v3819, %v3815
    %v3956 = vpack.c.b16 %v3820, %v3816
    %v3957 = vpack.c.b16 %v3825, %v3821
    %v3958 = vpack.c.b16 %v3826, %v3822
    %v3959 = vpack.c.b16 %v3827, %v3823
    %v3960 = vpack.c.b16 %v3828, %v3824
    %v3961 = vpack.c.b16 %v3833, %v3829
    %v3962 = vpack.c.b16 %v3834, %v3830
    %v3963 = vpack.c.b16 %v3835, %v3831
    %v3964 = vpack.c.b16 %v3836, %v3832
    %4093 = vmatprep.subr.bf16.mxu0 %v3866
    %4094 = vmatpush1.bf16.msra.mxu0 %v3865
    %4095 = vmatprep.subr.bf16.mxu0 %v3862
    %4096 = vmatpush1.bf16.msra.mxu0 %v3861
    %4097 = vmatprep.subr.bf16.mxu0 %v3858
    %4098 = vmatpush1.bf16.msra.mxu0 %v3857
    %4099 = vmatprep.subr.bf16.mxu0 %v3854
    %4100 = vmatpush1.bf16.msra.mxu0 %v3853
    %4101 = vmatprep.subr.bf16.mxu0 %v3850
    %4102 = vmatpush1.bf16.msra.mxu0 %v3849
    %4103 = vmatprep.subr.bf16.mxu0 %v3846
    %4104 = vmatpush1.bf16.msra.mxu0 %v3845
    %4105 = vmatprep.subr.bf16.mxu0 %v3842
    %4106 = vmatpush1.bf16.msra.mxu0 %v3841
    %4107 = vmatprep.subr.bf16.mxu0 %v3838
    %4108 = vmatpush1.bf16.msra.mxu0 %v3837
    %4109 = vmatprep.subr.bf16.mxu0 %v3898
    %4110 = vmatpush2.bf16.msra.mxu0 %v3897
    %4111 = vmatprep.subr.bf16.mxu0 %v3894
    %4112 = vmatpush2.bf16.msra.mxu0 %v3893
    %4113 = vmatprep.subr.bf16.mxu0 %v3890
    %4114 = vmatpush2.bf16.msra.mxu0 %v3889
    %4115 = vmatprep.subr.bf16.mxu0 %v3886
    %4116 = vmatpush2.bf16.msra.mxu0 %v3885
    %4117 = vmatprep.subr.bf16.mxu0 %v3882
    %4118 = vmatpush2.bf16.msra.mxu0 %v3881
    %4119 = vmatprep.subr.bf16.mxu0 %v3878
    %4120 = vmatpush2.bf16.msra.mxu0 %v3877
    %4121 = vmatprep.subr.bf16.mxu0 %v3874
    %4122 = vmatpush2.bf16.msra.mxu0 %v3873
    %4123 = vmatprep.subr.bf16.mxu0 %v3870
    %4124 = vmatpush2.bf16.msra.mxu0 %v3869
    %4125 = vmatprep.mubr.bf16.mxu0 %v3372
    %4126 = vmatmul.mubr.bf16.gmra.mxu0 %v3360
    %v4127 = vpop.f32.mrf.mxu0
    %v4128 = vadd.f32 0.0, %v4127
    %v4129 = vpop.f32.mrf.mxu0
    %v4130 = vadd.f32 0.0, %v4129
    %v4131 = vpop.f32.mrf.mxu0
    %v4132 = vadd.f32 0.0, %v4131
    %v4133 = vpop.f32.mrf.mxu0
    %v4134 = vadd.f32 0.0, %v4133
    %4135 = vmatprep.mubr.bf16.mxu0 %v3412
    %4136 = vmatmul.mubr.bf16.gmra.mxu0 %v3404
    %v4137 = vpop.f32.mrf.mxu0
    %v4138 = vadd.f32 0.0, %v4137
    %v4139 = vpop.f32.mrf.mxu0
    %v4140 = vadd.f32 0.0, %v4139
    %v4141 = vpop.f32.mrf.mxu0
    %v4142 = vadd.f32 0.0, %v4141
    %v4143 = vpop.f32.mrf.mxu0
    %v4144 = vadd.f32 0.0, %v4143
    %4145 = vmatprep.mubr.bf16.mxu0 %v3434
    %4146 = vmatmul.mubr.bf16.gmra.mxu0 %v3431
    %v4147 = vpop.f32.mrf.mxu0
    %v4148 = vadd.f32 0.0, %v4147
    %v4149 = vpop.f32.mrf.mxu0
    %v4150 = vadd.f32 0.0, %v4149
    %v4151 = vpop.f32.mrf.mxu0
    %v4152 = vpop.f32.mrf.mxu0
    %4153 = vdwg.mxu0
    %4154 = vmatprep.subr.bf16.mxu0 %v3930
    %4155 = vmatpush1.bf16.msra.mxu0 %v3929
    %4156 = vmatprep.subr.bf16.mxu0 %v3926
    %4157 = vmatpush1.bf16.msra.mxu0 %v3925
    %4158 = vmatprep.subr.bf16.mxu0 %v3922
    %4159 = vmatpush1.bf16.msra.mxu0 %v3921
    %4160 = vmatprep.subr.bf16.mxu0 %v3918
    %4161 = vmatpush1.bf16.msra.mxu0 %v3917
    %4162 = vmatprep.subr.bf16.mxu0 %v3914
    %4163 = vmatpush1.bf16.msra.mxu0 %v3913
    %4164 = vmatprep.subr.bf16.mxu0 %v3910
    %4165 = vmatpush1.bf16.msra.mxu0 %v3909
    %4166 = vmatprep.subr.bf16.mxu0 %v3906
    %4167 = vmatpush1.bf16.msra.mxu0 %v3905
    %4168 = vmatprep.subr.bf16.mxu0 %v3902
    %4169 = vmatpush1.bf16.msra.mxu0 %v3901
    %4170 = vmatprep.subr.bf16.mxu0 %v3962
    %4171 = vmatpush2.bf16.msra.mxu0 %v3961
    %4172 = vmatprep.subr.bf16.mxu0 %v3958
    %4173 = vmatpush2.bf16.msra.mxu0 %v3957
    %4174 = vmatprep.subr.bf16.mxu0 %v3954
    %4175 = vmatpush2.bf16.msra.mxu0 %v3953
    %4176 = vmatprep.subr.bf16.mxu0 %v3950
    %4177 = vmatpush2.bf16.msra.mxu0 %v3949
    %4178 = vmatprep.subr.bf16.mxu0 %v3946
    %4179 = vmatpush2.bf16.msra.mxu0 %v3945
    %4180 = vmatprep.subr.bf16.mxu0 %v3942
    %4181 = vmatpush2.bf16.msra.mxu0 %v3941
    %4182 = vmatprep.subr.bf16.mxu0 %v3938
    %4183 = vmatpush2.bf16.msra.mxu0 %v3937
    %4184 = vmatprep.subr.bf16.mxu0 %v3934
    %4185 = vmatpush2.bf16.msra.mxu0 %v3933
    %4186 = vmatprep.mubr.bf16.mxu0 %v3396
    %4187 = vmatmul.mubr.bf16.gmra.mxu0 %v3384
    %v4188 = vpop.f32.mrf.mxu0
    %v4189 = vadd.f32 %v4128, %v4188
    %v4190 = vpop.f32.mrf.mxu0
    %v4191 = vadd.f32 %v4130, %v4190
    %v4192 = vpop.f32.mrf.mxu0
    %v4193 = vadd.f32 %v4132, %v4192
    %v4194 = vpop.f32.mrf.mxu0
    %v4195 = vadd.f32 %v4134, %v4194
    %4196 = vmatprep.mubr.bf16.mxu0 %v3428
    %4197 = vmatmul.mubr.bf16.gmra.mxu0 %v3420
    %v4198 = vpop.f32.mrf.mxu0
    %v4199 = vadd.f32 %v4138, %v4198
    %v4200 = vpop.f32.mrf.mxu0
    %v4201 = vadd.f32 %v4140, %v4200
    %v4202 = vpop.f32.mrf.mxu0
    %v4203 = vadd.f32 %v4142, %v4202
    %v4204 = vpop.f32.mrf.mxu0
    %v4205 = vadd.f32 %v4144, %v4204
    %4206 = vmatprep.mubr.bf16.mxu0 %v3440
    %4207 = vmatmul.mubr.bf16.gmra.mxu0 %v3437
    %v4208 = vpop.f32.mrf.mxu0
    %v4209 = vadd.f32 %v4148, %v4208
    %v4210 = vpop.f32.mrf.mxu0
    %v4211 = vadd.f32 %v4150, %v4210
    %v4212 = vpop.f32.mrf.mxu0
    %v4213 = vpop.f32.mrf.mxu0
    %4214 = vdwg.mxu0
    %4215 = vmatprep.subr.bf16.mxu0 %v3868
    %4216 = vmatpush1.bf16.msra.mxu0 %v3867
    %4217 = vmatprep.subr.bf16.mxu0 %v3864
    %4218 = vmatpush1.bf16.msra.mxu0 %v3863
    %4219 = vmatprep.subr.bf16.mxu0 %v3860
    %4220 = vmatpush1.bf16.msra.mxu0 %v3859
    %4221 = vmatprep.subr.bf16.mxu0 %v3856
    %4222 = vmatpush1.bf16.msra.mxu0 %v3855
    %4223 = vmatprep.subr.bf16.mxu0 %v3852
    %4224 = vmatpush1.bf16.msra.mxu0 %v3851
    %4225 = vmatprep.subr.bf16.mxu0 %v3848
    %4226 = vmatpush1.bf16.msra.mxu0 %v3847
    %4227 = vmatprep.subr.bf16.mxu0 %v3844
    %4228 = vmatpush1.bf16.msra.mxu0 %v3843
    %4229 = vmatprep.subr.bf16.mxu0 %v3840
    %4230 = vmatpush1.bf16.msra.mxu0 %v3839
    %4231 = vmatprep.subr.bf16.mxu0 %v3900
    %4232 = vmatpush2.bf16.msra.mxu0 %v3899
    %4233 = vmatprep.subr.bf16.mxu0 %v3896
    %4234 = vmatpush2.bf16.msra.mxu0 %v3895
    %4235 = vmatprep.subr.bf16.mxu0 %v3892
    %4236 = vmatpush2.bf16.msra.mxu0 %v3891
    %4237 = vmatprep.subr.bf16.mxu0 %v3888
    %4238 = vmatpush2.bf16.msra.mxu0 %v3887
    %4239 = vmatprep.subr.bf16.mxu0 %v3884
    %4240 = vmatpush2.bf16.msra.mxu0 %v3883
    %4241 = vmatprep.subr.bf16.mxu0 %v3880
    %4242 = vmatpush2.bf16.msra.mxu0 %v3879
    %4243 = vmatprep.subr.bf16.mxu0 %v3876
    %4244 = vmatpush2.bf16.msra.mxu0 %v3875
    %4245 = vmatprep.subr.bf16.mxu0 %v3872
    %4246 = vmatpush2.bf16.msra.mxu0 %v3871
    %4247 = vmatprep.mubr.bf16.mxu0 %v3372
    %4248 = vmatmul.mubr.bf16.gmra.mxu0 %v3360
    %v4249 = vpop.f32.mrf.mxu0
    %v4250 = vadd.f32 0.0, %v4249
    %v4251 = vpop.f32.mrf.mxu0
    %v4252 = vadd.f32 0.0, %v4251
    %v4253 = vpop.f32.mrf.mxu0
    %v4254 = vadd.f32 0.0, %v4253
    %v4255 = vpop.f32.mrf.mxu0
    %v4256 = vadd.f32 0.0, %v4255
    %4257 = vmatprep.mubr.bf16.mxu0 %v3412
    %4258 = vmatmul.mubr.bf16.gmra.mxu0 %v3404
    %v4259 = vpop.f32.mrf.mxu0
    %v4260 = vadd.f32 0.0, %v4259
    %v4261 = vpop.f32.mrf.mxu0
    %v4262 = vadd.f32 0.0, %v4261
    %v4263 = vpop.f32.mrf.mxu0
    %v4264 = vadd.f32 0.0, %v4263
    %v4265 = vpop.f32.mrf.mxu0
    %v4266 = vadd.f32 0.0, %v4265
    %4267 = vmatprep.mubr.bf16.mxu0 %v3434
    %4268 = vmatmul.mubr.bf16.gmra.mxu0 %v3431
    %v4269 = vpop.f32.mrf.mxu0
    %v4270 = vadd.f32 0.0, %v4269
    %v4271 = vpop.f32.mrf.mxu0
    %v4272 = vadd.f32 0.0, %v4271
    %v4273 = vpop.f32.mrf.mxu0
    %v4274 = vpop.f32.mrf.mxu0
    %4275 = vdwg.mxu0
    %4276 = vmatprep.subr.bf16.mxu0 %v3932
    %4277 = vmatpush1.bf16.msra.mxu0 %v3931
    %4278 = vmatprep.subr.bf16.mxu0 %v3928
    %4279 = vmatpush1.bf16.msra.mxu0 %v3927
    %4280 = vmatprep.subr.bf16.mxu0 %v3924
    %4281 = vmatpush1.bf16.msra.mxu0 %v3923
    %4282 = vmatprep.subr.bf16.mxu0 %v3920
    %4283 = vmatpush1.bf16.msra.mxu0 %v3919
    %4284 = vmatprep.subr.bf16.mxu0 %v3916
    %4285 = vmatpush1.bf16.msra.mxu0 %v3915
    %4286 = vmatprep.subr.bf16.mxu0 %v3912
    %4287 = vmatpush1.bf16.msra.mxu0 %v3911
    %4288 = vmatprep.subr.bf16.mxu0 %v3908
    %4289 = vmatpush1.bf16.msra.mxu0 %v3907
    %4290 = vmatprep.subr.bf16.mxu0 %v3904
    %4291 = vmatpush1.bf16.msra.mxu0 %v3903
    %4292 = vmatprep.subr.bf16.mxu0 %v3964
    %4293 = vmatpush2.bf16.msra.mxu0 %v3963
    %4294 = vmatprep.subr.bf16.mxu0 %v3960
    %4295 = vmatpush2.bf16.msra.mxu0 %v3959
    %4296 = vmatprep.subr.bf16.mxu0 %v3956
    %4297 = vmatpush2.bf16.msra.mxu0 %v3955
    %4298 = vmatprep.subr.bf16.mxu0 %v3952
    %4299 = vmatpush2.bf16.msra.mxu0 %v3951
    %4300 = vmatprep.subr.bf16.mxu0 %v3948
    %4301 = vmatpush2.bf16.msra.mxu0 %v3947
    %4302 = vmatprep.subr.bf16.mxu0 %v3944
    %4303 = vmatpush2.bf16.msra.mxu0 %v3943
    %4304 = vmatprep.subr.bf16.mxu0 %v3940
    %4305 = vmatpush2.bf16.msra.mxu0 %v3939
    %4306 = vmatprep.subr.bf16.mxu0 %v3936
    %4307 = vmatpush2.bf16.msra.mxu0 %v3935
    %4308 = vmatprep.mubr.bf16.mxu0 %v3396
    %4309 = vmatmul.mubr.bf16.gmra.mxu0 %v3384
    %v4310 = vpop.f32.mrf.mxu0
    %v4311 = vadd.f32 %v4250, %v4310
    %v4312 = vpop.f32.mrf.mxu0
    %v4313 = vadd.f32 %v4252, %v4312
    %v4314 = vpop.f32.mrf.mxu0
    %v4315 = vadd.f32 %v4254, %v4314
    %v4316 = vpop.f32.mrf.mxu0
    %v4317 = vadd.f32 %v4256, %v4316
    %4318 = vmatprep.mubr.bf16.mxu0 %v3428
    %4319 = vmatmul.mubr.bf16.gmra.mxu0 %v3420
    %v4320 = vpop.f32.mrf.mxu0
    %v4321 = vadd.f32 %v4260, %v4320
    %v4322 = vpop.f32.mrf.mxu0
    %v4323 = vadd.f32 %v4262, %v4322
    %v4324 = vpop.f32.mrf.mxu0
    %v4325 = vadd.f32 %v4264, %v4324
    %v4326 = vpop.f32.mrf.mxu0
    %v4327 = vadd.f32 %v4266, %v4326
    %4328 = vmatprep.mubr.bf16.mxu0 %v3440
    %4329 = vmatmul.mubr.bf16.gmra.mxu0 %v3437
    %v4330 = vpop.f32.mrf.mxu0
    %v4331 = vadd.f32 %v4270, %v4330
    %v4332 = vpop.f32.mrf.mxu0
    %v4333 = vadd.f32 %v4272, %v4332
    %v4334 = vpop.f32.mrf.mxu0
    %v4335 = vpop.f32.mrf.mxu0
    %4336 = vdwg.mxu0
    %v4339 = vunpack.c.l.b16 %v3046
    %v4340 = vunpack.c.h.b16 %v3046
    %v4341 = vunpack.c.l.b16 %v3047
    %v4342 = vunpack.c.h.b16 %v3047
    %v4343 = vpack.c.b16 %v4339, %v4339
    %v4344 = vpack.c.b16 %v4340, %v4340
    %v4345 = vpack.c.b16 %v4341, %v4341
    %v4346 = vpack.c.b16 %v4342, %v4342
    %v4487 = vunpack.c.l.b16 %v3048
    %v4488 = vunpack.c.h.b16 %v3048
    %v4489 = vunpack.c.l.b16 %v3049
    %v4490 = vunpack.c.h.b16 %v3049
    %v4491 = vunpack.c.l.b16 %v3050
    %v4492 = vunpack.c.h.b16 %v3050
    %v4493 = vunpack.c.l.b16 %v3051
    %v4494 = vunpack.c.h.b16 %v3051
    %v4495 = vunpack.c.l.b16 %v3052
    %v4496 = vunpack.c.h.b16 %v3052
    %v4497 = vunpack.c.l.b16 %v3053
    %v4498 = vunpack.c.h.b16 %v3053
    %v4499 = vunpack.c.l.b16 %v3054
    %v4500 = vunpack.c.h.b16 %v3054
    %v4501 = vunpack.c.l.b16 %v3055
    %v4502 = vunpack.c.h.b16 %v3055
    %v4503 = vunpack.c.l.b16 %v3056
    %v4504 = vunpack.c.h.b16 %v3056
    %v4505 = vunpack.c.l.b16 %v3057
    %v4506 = vunpack.c.h.b16 %v3057
    %v4507 = vunpack.c.l.b16 %v3058
    %v4508 = vunpack.c.h.b16 %v3058
    %v4509 = vunpack.c.l.b16 %v3059
    %v4510 = vunpack.c.h.b16 %v3059
    %v4511 = vunpack.c.l.b16 %v3060
    %v4512 = vunpack.c.h.b16 %v3060
    %v4513 = vunpack.c.l.b16 %v3061
    %v4514 = vunpack.c.h.b16 %v3061
    %v4515 = vunpack.c.l.b16 %v3062
    %v4516 = vunpack.c.h.b16 %v3062
    %v4517 = vunpack.c.l.b16 %v3063
    %v4518 = vunpack.c.h.b16 %v3063
    %v4519 = vunpack.c.l.b16 %v3064
    %v4520 = vunpack.c.h.b16 %v3064
    %v4521 = vunpack.c.l.b16 %v3065
    %v4522 = vunpack.c.h.b16 %v3065
    %v4523 = vunpack.c.l.b16 %v3066
    %v4524 = vunpack.c.h.b16 %v3066
    %v4525 = vunpack.c.l.b16 %v3067
    %v4526 = vunpack.c.h.b16 %v3067
    %v4527 = vunpack.c.l.b16 %v3068
    %v4528 = vunpack.c.h.b16 %v3068
    %v4529 = vunpack.c.l.b16 %v3069
    %v4530 = vunpack.c.h.b16 %v3069
    %v4531 = vunpack.c.l.b16 %v3070
    %v4532 = vunpack.c.h.b16 %v3070
    %v4533 = vunpack.c.l.b16 %v3071
    %v4534 = vunpack.c.h.b16 %v3071
    %v4535 = vunpack.c.l.b16 %v3072
    %v4536 = vunpack.c.h.b16 %v3072
    %v4537 = vunpack.c.l.b16 %v3073
    %v4538 = vunpack.c.h.b16 %v3073
    %v4539 = vunpack.c.l.b16 %v3074
    %v4540 = vunpack.c.h.b16 %v3074
    %v4541 = vunpack.c.l.b16 %v3075
    %v4542 = vunpack.c.h.b16 %v3075
    %v4543 = vunpack.c.l.b16 %v3076
    %v4544 = vunpack.c.h.b16 %v3076
    %v4545 = vunpack.c.l.b16 %v3077
    %v4546 = vunpack.c.h.b16 %v3077
    %v4547 = vunpack.c.l.b16 %v3078
    %v4548 = vunpack.c.h.b16 %v3078
    %v4549 = vunpack.c.l.b16 %v3079
    %v4550 = vunpack.c.h.b16 %v3079
    %v4551 = vunpack.c.l.b16 %v3080
    %v4552 = vunpack.c.h.b16 %v3080
    %v4553 = vunpack.c.l.b16 %v3081
    %v4554 = vunpack.c.h.b16 %v3081
    %v4555 = vunpack.c.l.b16 %v3082
    %v4556 = vunpack.c.h.b16 %v3082
    %v4557 = vunpack.c.l.b16 %v3083
    %v4558 = vunpack.c.h.b16 %v3083
    %v4559 = vunpack.c.l.b16 %v3084
    %v4560 = vunpack.c.h.b16 %v3084
    %v4561 = vunpack.c.l.b16 %v3085
    %v4562 = vunpack.c.h.b16 %v3085
    %v4563 = vunpack.c.l.b16 %v3086
    %v4564 = vunpack.c.h.b16 %v3086
    %v4565 = vunpack.c.l.b16 %v3087
    %v4566 = vunpack.c.h.b16 %v3087
    %v4567 = vunpack.c.l.b16 %v3088
    %v4568 = vunpack.c.h.b16 %v3088
    %v4569 = vunpack.c.l.b16 %v3089
    %v4570 = vunpack.c.h.b16 %v3089
    %v4571 = vunpack.c.l.b16 %v3090
    %v4572 = vunpack.c.h.b16 %v3090
    %v4573 = vunpack.c.l.b16 %v3091
    %v4574 = vunpack.c.h.b16 %v3091
    %v4575 = vunpack.c.l.b16 %v3092
    %v4576 = vunpack.c.h.b16 %v3092
    %v4577 = vunpack.c.l.b16 %v3093
    %v4578 = vunpack.c.h.b16 %v3093
    %v4579 = vunpack.c.l.b16 %v3094
    %v4580 = vunpack.c.h.b16 %v3094
    %v4581 = vunpack.c.l.b16 %v3095
    %v4582 = vunpack.c.h.b16 %v3095
    %v4583 = vunpack.c.l.b16 %v3096
    %v4584 = vunpack.c.h.b16 %v3096
    %v4585 = vunpack.c.l.b16 %v3097
    %v4586 = vunpack.c.h.b16 %v3097
    %v4587 = vunpack.c.l.b16 %v3098
    %v4588 = vunpack.c.h.b16 %v3098
    %v4589 = vunpack.c.l.b16 %v3099
    %v4590 = vunpack.c.h.b16 %v3099
    %v4591 = vunpack.c.l.b16 %v3100
    %v4592 = vunpack.c.h.b16 %v3100
    %v4593 = vunpack.c.l.b16 %v3101
    %v4594 = vunpack.c.h.b16 %v3101
    %v4595 = vunpack.c.l.b16 %v3102
    %v4596 = vunpack.c.h.b16 %v3102
    %v4597 = vunpack.c.l.b16 %v3103
    %v4598 = vunpack.c.h.b16 %v3103
    %v4599 = vunpack.c.l.b16 %v3104
    %v4600 = vunpack.c.h.b16 %v3104
    %v4601 = vunpack.c.l.b16 %v3105
    %v4602 = vunpack.c.h.b16 %v3105
    %v4603 = vunpack.c.l.b16 %v3106
    %v4604 = vunpack.c.h.b16 %v3106
    %v4605 = vunpack.c.l.b16 %v3107
    %v4606 = vunpack.c.h.b16 %v3107
    %v4607 = vunpack.c.l.b16 %v3108
    %v4608 = vunpack.c.h.b16 %v3108
    %v4609 = vunpack.c.l.b16 %v3109
    %v4610 = vunpack.c.h.b16 %v3109
    %v4611 = vunpack.c.l.b16 %v3110
    %v4612 = vunpack.c.h.b16 %v3110
    %v4613 = vunpack.c.l.b16 %v3111
    %v4614 = vunpack.c.h.b16 %v3111
    %v4615 = vunpack.c.l.b16 %v3112
    %v4616 = vunpack.c.h.b16 %v3112
    %v4617 = vunpack.c.l.b16 %v3113
    %v4618 = vunpack.c.h.b16 %v3113
    %v4619 = vunpack.c.l.b16 %v3114
    %v4620 = vunpack.c.h.b16 %v3114
    %v4621 = vunpack.c.l.b16 %v3115
    %v4622 = vunpack.c.h.b16 %v3115
    %v4623 = vunpack.c.l.b16 %v3116
    %v4624 = vunpack.c.h.b16 %v3116
    %v4625 = vunpack.c.l.b16 %v3117
    %v4626 = vunpack.c.h.b16 %v3117
    %v4627 = vunpack.c.l.b16 %v3118
    %v4628 = vunpack.c.h.b16 %v3118
    %v4629 = vunpack.c.l.b16 %v3119
    %v4630 = vunpack.c.h.b16 %v3119
    %v4631 = vunpack.c.l.b16 %v3120
    %v4632 = vunpack.c.h.b16 %v3120
    %v4633 = vunpack.c.l.b16 %v3121
    %v4634 = vunpack.c.h.b16 %v3121
    %v4635 = vunpack.c.l.b16 %v3122
    %v4636 = vunpack.c.h.b16 %v3122
    %v4637 = vunpack.c.l.b16 %v3123
    %v4638 = vunpack.c.h.b16 %v3123
    %v4639 = vunpack.c.l.b16 %v3124
    %v4640 = vunpack.c.h.b16 %v3124
    %v4641 = vunpack.c.l.b16 %v3125
    %v4642 = vunpack.c.h.b16 %v3125
    %v4643 = vunpack.c.l.b16 %v3126
    %v4644 = vunpack.c.h.b16 %v3126
    %v4645 = vunpack.c.l.b16 %v3127
    %v4646 = vunpack.c.h.b16 %v3127
    %v4647 = vunpack.c.l.b16 %v3128
    %v4648 = vunpack.c.h.b16 %v3128
    %v4649 = vunpack.c.l.b16 %v3129
    %v4650 = vunpack.c.h.b16 %v3129
    %v4651 = vunpack.c.l.b16 %v3130
    %v4652 = vunpack.c.h.b16 %v3130
    %v4653 = vunpack.c.l.b16 %v3131
    %v4654 = vunpack.c.h.b16 %v3131
    %v4655 = vunpack.c.l.b16 %v3132
    %v4656 = vunpack.c.h.b16 %v3132
    %v4657 = vunpack.c.l.b16 %v3133
    %v4658 = vunpack.c.h.b16 %v3133
    %v4659 = vunpack.c.l.b16 %v3134
    %v4660 = vunpack.c.h.b16 %v3134
    %v4661 = vunpack.c.l.b16 %v3135
    %v4662 = vunpack.c.h.b16 %v3135
    %v4663 = vunpack.c.l.b16 %v3136
    %v4664 = vunpack.c.h.b16 %v3136
    %v4665 = vunpack.c.l.b16 %v3137
    %v4666 = vunpack.c.h.b16 %v3137
    %v4667 = vunpack.c.l.b16 %v3138
    %v4668 = vunpack.c.h.b16 %v3138
    %v4669 = vunpack.c.l.b16 %v3139
    %v4670 = vunpack.c.h.b16 %v3139
    %v4671 = vunpack.c.l.b16 %v3140
    %v4672 = vunpack.c.h.b16 %v3140
    %v4673 = vunpack.c.l.b16 %v3141
    %v4674 = vunpack.c.h.b16 %v3141
    %v4675 = vunpack.c.l.b16 %v3142
    %v4676 = vunpack.c.h.b16 %v3142
    %v4677 = vunpack.c.l.b16 %v3143
    %v4678 = vunpack.c.h.b16 %v3143
    %v4679 = vunpack.c.l.b16 %v3144
    %v4680 = vunpack.c.h.b16 %v3144
    %v4681 = vunpack.c.l.b16 %v3145
    %v4682 = vunpack.c.h.b16 %v3145
    %v4683 = vunpack.c.l.b16 %v3146
    %v4684 = vunpack.c.h.b16 %v3146
    %v4685 = vunpack.c.l.b16 %v3147
    %v4686 = vunpack.c.h.b16 %v3147
    %v4687 = vunpack.c.l.b16 %v3148
    %v4688 = vunpack.c.h.b16 %v3148
    %v4689 = vunpack.c.l.b16 %v3149
    %v4690 = vunpack.c.h.b16 %v3149
    %v4691 = vunpack.c.l.b16 %v3150
    %v4692 = vunpack.c.h.b16 %v3150
    %v4693 = vunpack.c.l.b16 %v3151
    %v4694 = vunpack.c.h.b16 %v3151
    %v4695 = vunpack.c.l.b16 %v3152
    %v4696 = vunpack.c.h.b16 %v3152
    %v4697 = vunpack.c.l.b16 %v3153
    %v4698 = vunpack.c.h.b16 %v3153
    %v4699 = vunpack.c.l.b16 %v3154
    %v4700 = vunpack.c.h.b16 %v3154
    %v4701 = vunpack.c.l.b16 %v3155
    %v4702 = vunpack.c.h.b16 %v3155
    %v4703 = vunpack.c.l.b16 %v3156
    %v4704 = vunpack.c.h.b16 %v3156
    %v4705 = vunpack.c.l.b16 %v3157
    %v4706 = vunpack.c.h.b16 %v3157
    %v4707 = vunpack.c.l.b16 %v3158
    %v4708 = vunpack.c.h.b16 %v3158
    %v4709 = vunpack.c.l.b16 %v3159
    %v4710 = vunpack.c.h.b16 %v3159
    %v4711 = vunpack.c.l.b16 %v3160
    %v4712 = vunpack.c.h.b16 %v3160
    %v4713 = vunpack.c.l.b16 %v3161
    %v4714 = vunpack.c.h.b16 %v3161
    %v4715 = vunpack.c.l.b16 %v3162
    %v4716 = vunpack.c.h.b16 %v3162
    %v4717 = vunpack.c.l.b16 %v3163
    %v4718 = vunpack.c.h.b16 %v3163
    %v4719 = vunpack.c.l.b16 %v3164
    %v4720 = vunpack.c.h.b16 %v3164
    %v4721 = vunpack.c.l.b16 %v3165
    %v4722 = vunpack.c.h.b16 %v3165
    %v4723 = vunpack.c.l.b16 %v3166
    %v4724 = vunpack.c.h.b16 %v3166
    %v4725 = vunpack.c.l.b16 %v3167
    %v4726 = vunpack.c.h.b16 %v3167
    %v4727 = vunpack.c.l.b16 %v3168
    %v4728 = vunpack.c.h.b16 %v3168
    %v4729 = vunpack.c.l.b16 %v3169
    %v4730 = vunpack.c.h.b16 %v3169
    %v4731 = vunpack.c.l.b16 %v3170
    %v4732 = vunpack.c.h.b16 %v3170
    %v4733 = vunpack.c.l.b16 %v3171
    %v4734 = vunpack.c.h.b16 %v3171
    %v4735 = vunpack.c.l.b16 %v3172
    %v4736 = vunpack.c.h.b16 %v3172
    %v4737 = vunpack.c.l.b16 %v3173
    %v4738 = vunpack.c.h.b16 %v3173
    %v4739 = vunpack.c.l.b16 %v3174
    %v4740 = vunpack.c.h.b16 %v3174
    %v4741 = vunpack.c.l.b16 %v3175
    %v4742 = vunpack.c.h.b16 %v3175
    %v4743 = vpack.c.b16 %v4491, %v4487
    %v4744 = vpack.c.b16 %v4492, %v4488
    %v4745 = vpack.c.b16 %v4493, %v4489
    %v4746 = vpack.c.b16 %v4494, %v4490
    %v4747 = vpack.c.b16 %v4499, %v4495
    %v4748 = vpack.c.b16 %v4500, %v4496
    %v4749 = vpack.c.b16 %v4501, %v4497
    %v4750 = vpack.c.b16 %v4502, %v4498
    %v4751 = vpack.c.b16 %v4507, %v4503
    %v4752 = vpack.c.b16 %v4508, %v4504
    %v4753 = vpack.c.b16 %v4509, %v4505
    %v4754 = vpack.c.b16 %v4510, %v4506
    %v4755 = vpack.c.b16 %v4515, %v4511
    %v4756 = vpack.c.b16 %v4516, %v4512
    %v4757 = vpack.c.b16 %v4517, %v4513
    %v4758 = vpack.c.b16 %v4518, %v4514
    %v4759 = vpack.c.b16 %v4523, %v4519
    %v4760 = vpack.c.b16 %v4524, %v4520
    %v4761 = vpack.c.b16 %v4525, %v4521
    %v4762 = vpack.c.b16 %v4526, %v4522
    %v4763 = vpack.c.b16 %v4531, %v4527
    %v4764 = vpack.c.b16 %v4532, %v4528
    %v4765 = vpack.c.b16 %v4533, %v4529
    %v4766 = vpack.c.b16 %v4534, %v4530
    %v4767 = vpack.c.b16 %v4539, %v4535
    %v4768 = vpack.c.b16 %v4540, %v4536
    %v4769 = vpack.c.b16 %v4541, %v4537
    %v4770 = vpack.c.b16 %v4542, %v4538
    %v4771 = vpack.c.b16 %v4547, %v4543
    %v4772 = vpack.c.b16 %v4548, %v4544
    %v4773 = vpack.c.b16 %v4549, %v4545
    %v4774 = vpack.c.b16 %v4550, %v4546
    %v4775 = vpack.c.b16 %v4555, %v4551
    %v4776 = vpack.c.b16 %v4556, %v4552
    %v4777 = vpack.c.b16 %v4557, %v4553
    %v4778 = vpack.c.b16 %v4558, %v4554
    %v4779 = vpack.c.b16 %v4563, %v4559
    %v4780 = vpack.c.b16 %v4564, %v4560
    %v4781 = vpack.c.b16 %v4565, %v4561
    %v4782 = vpack.c.b16 %v4566, %v4562
    %v4783 = vpack.c.b16 %v4571, %v4567
    %v4784 = vpack.c.b16 %v4572, %v4568
    %v4785 = vpack.c.b16 %v4573, %v4569
    %v4786 = vpack.c.b16 %v4574, %v4570
    %v4787 = vpack.c.b16 %v4579, %v4575
    %v4788 = vpack.c.b16 %v4580, %v4576
    %v4789 = vpack.c.b16 %v4581, %v4577
    %v4790 = vpack.c.b16 %v4582, %v4578
    %v4791 = vpack.c.b16 %v4587, %v4583
    %v4792 = vpack.c.b16 %v4588, %v4584
    %v4793 = vpack.c.b16 %v4589, %v4585
    %v4794 = vpack.c.b16 %v4590, %v4586
    %v4795 = vpack.c.b16 %v4595, %v4591
    %v4796 = vpack.c.b16 %v4596, %v4592
    %v4797 = vpack.c.b16 %v4597, %v4593
    %v4798 = vpack.c.b16 %v4598, %v4594
    %v4799 = vpack.c.b16 %v4603, %v4599
    %v4800 = vpack.c.b16 %v4604, %v4600
    %v4801 = vpack.c.b16 %v4605, %v4601
    %v4802 = vpack.c.b16 %v4606, %v4602
    %v4803 = vpack.c.b16 %v4611, %v4607
    %v4804 = vpack.c.b16 %v4612, %v4608
    %v4805 = vpack.c.b16 %v4613, %v4609
    %v4806 = vpack.c.b16 %v4614, %v4610
    %v4807 = vpack.c.b16 %v4619, %v4615
    %v4808 = vpack.c.b16 %v4620, %v4616
    %v4809 = vpack.c.b16 %v4621, %v4617
    %v4810 = vpack.c.b16 %v4622, %v4618
    %v4811 = vpack.c.b16 %v4627, %v4623
    %v4812 = vpack.c.b16 %v4628, %v4624
    %v4813 = vpack.c.b16 %v4629, %v4625
    %v4814 = vpack.c.b16 %v4630, %v4626
    %v4815 = vpack.c.b16 %v4635, %v4631
    %v4816 = vpack.c.b16 %v4636, %v4632
    %v4817 = vpack.c.b16 %v4637, %v4633
    %v4818 = vpack.c.b16 %v4638, %v4634
    %v4819 = vpack.c.b16 %v4643, %v4639
    %v4820 = vpack.c.b16 %v4644, %v4640
    %v4821 = vpack.c.b16 %v4645, %v4641
    %v4822 = vpack.c.b16 %v4646, %v4642
    %v4823 = vpack.c.b16 %v4651, %v4647
    %v4824 = vpack.c.b16 %v4652, %v4648
    %v4825 = vpack.c.b16 %v4653, %v4649
    %v4826 = vpack.c.b16 %v4654, %v4650
    %v4827 = vpack.c.b16 %v4659, %v4655
    %v4828 = vpack.c.b16 %v4660, %v4656
    %v4829 = vpack.c.b16 %v4661, %v4657
    %v4830 = vpack.c.b16 %v4662, %v4658
    %v4831 = vpack.c.b16 %v4667, %v4663
    %v4832 = vpack.c.b16 %v4668, %v4664
    %v4833 = vpack.c.b16 %v4669, %v4665
    %v4834 = vpack.c.b16 %v4670, %v4666
    %v4835 = vpack.c.b16 %v4675, %v4671
    %v4836 = vpack.c.b16 %v4676, %v4672
    %v4837 = vpack.c.b16 %v4677, %v4673
    %v4838 = vpack.c.b16 %v4678, %v4674
    %v4839 = vpack.c.b16 %v4683, %v4679
    %v4840 = vpack.c.b16 %v4684, %v4680
    %v4841 = vpack.c.b16 %v4685, %v4681
    %v4842 = vpack.c.b16 %v4686, %v4682
    %v4843 = vpack.c.b16 %v4691, %v4687
    %v4844 = vpack.c.b16 %v4692, %v4688
    %v4845 = vpack.c.b16 %v4693, %v4689
    %v4846 = vpack.c.b16 %v4694, %v4690
    %v4847 = vpack.c.b16 %v4699, %v4695
    %v4848 = vpack.c.b16 %v4700, %v4696
    %v4849 = vpack.c.b16 %v4701, %v4697
    %v4850 = vpack.c.b16 %v4702, %v4698
    %v4851 = vpack.c.b16 %v4707, %v4703
    %v4852 = vpack.c.b16 %v4708, %v4704
    %v4853 = vpack.c.b16 %v4709, %v4705
    %v4854 = vpack.c.b16 %v4710, %v4706
    %v4855 = vpack.c.b16 %v4715, %v4711
    %v4856 = vpack.c.b16 %v4716, %v4712
    %v4857 = vpack.c.b16 %v4717, %v4713
    %v4858 = vpack.c.b16 %v4718, %v4714
    %v4859 = vpack.c.b16 %v4723, %v4719
    %v4860 = vpack.c.b16 %v4724, %v4720
    %v4861 = vpack.c.b16 %v4725, %v4721
    %v4862 = vpack.c.b16 %v4726, %v4722
    %v4863 = vpack.c.b16 %v4731, %v4727
    %v4864 = vpack.c.b16 %v4732, %v4728
    %v4865 = vpack.c.b16 %v4733, %v4729
    %v4866 = vpack.c.b16 %v4734, %v4730
    %v4867 = vpack.c.b16 %v4739, %v4735
    %v4868 = vpack.c.b16 %v4740, %v4736
    %v4869 = vpack.c.b16 %v4741, %v4737
    %v4870 = vpack.c.b16 %v4742, %v4738
    %4999 = vmatprep.subr.bf16.mxu0 %v4772
    %5000 = vmatpush1.bf16.msra.mxu0 %v4771
    %5001 = vmatprep.subr.bf16.mxu0 %v4768
    %5002 = vmatpush1.bf16.msra.mxu0 %v4767
    %5003 = vmatprep.subr.bf16.mxu0 %v4764
    %5004 = vmatpush1.bf16.msra.mxu0 %v4763
    %5005 = vmatprep.subr.bf16.mxu0 %v4760
    %5006 = vmatpush1.bf16.msra.mxu0 %v4759
    %5007 = vmatprep.subr.bf16.mxu0 %v4756
    %5008 = vmatpush1.bf16.msra.mxu0 %v4755
    %5009 = vmatprep.subr.bf16.mxu0 %v4752
    %5010 = vmatpush1.bf16.msra.mxu0 %v4751
    %5011 = vmatprep.subr.bf16.mxu0 %v4748
    %5012 = vmatpush1.bf16.msra.mxu0 %v4747
    %5013 = vmatprep.subr.bf16.mxu0 %v4744
    %5014 = vmatpush1.bf16.msra.mxu0 %v4743
    %5015 = vmatprep.subr.bf16.mxu0 %v4804
    %5016 = vmatpush2.bf16.msra.mxu0 %v4803
    %5017 = vmatprep.subr.bf16.mxu0 %v4800
    %5018 = vmatpush2.bf16.msra.mxu0 %v4799
    %5019 = vmatprep.subr.bf16.mxu0 %v4796
    %5020 = vmatpush2.bf16.msra.mxu0 %v4795
    %5021 = vmatprep.subr.bf16.mxu0 %v4792
    %5022 = vmatpush2.bf16.msra.mxu0 %v4791
    %5023 = vmatprep.subr.bf16.mxu0 %v4788
    %5024 = vmatpush2.bf16.msra.mxu0 %v4787
    %5025 = vmatprep.subr.bf16.mxu0 %v4784
    %5026 = vmatpush2.bf16.msra.mxu0 %v4783
    %5027 = vmatprep.subr.bf16.mxu0 %v4780
    %5028 = vmatpush2.bf16.msra.mxu0 %v4779
    %5029 = vmatprep.subr.bf16.mxu0 %v4776
    %5030 = vmatpush2.bf16.msra.mxu0 %v4775
    %5031 = vmatprep.mubr.bf16.mxu0 %v3338
    %5032 = vmatmul.mubr.bf16.gmra.mxu0 %v3337
    %v5033 = vpop.f32.mrf.mxu0
    %v5034 = vadd.f32 %v4189, %v5033
    %v5035 = vpop.f32.mrf.mxu0
    %v5036 = vadd.f32 %v4191, %v5035
    %v5037 = vpop.f32.mrf.mxu0
    %v5038 = vadd.f32 %v4193, %v5037
    %v5039 = vpop.f32.mrf.mxu0
    %v5040 = vadd.f32 %v4195, %v5039
    %5041 = vmatprep.mubr.bf16.mxu0 %v3342
    %5042 = vmatmul.mubr.bf16.gmra.mxu0 %v3341
    %v5043 = vpop.f32.mrf.mxu0
    %v5044 = vadd.f32 %v4199, %v5043
    %v5045 = vpop.f32.mrf.mxu0
    %v5046 = vadd.f32 %v4201, %v5045
    %v5047 = vpop.f32.mrf.mxu0
    %v5048 = vadd.f32 %v4203, %v5047
    %v5049 = vpop.f32.mrf.mxu0
    %v5050 = vadd.f32 %v4205, %v5049
    %5051 = vmatprep.mubr.bf16.mxu0 %v4344
    %5052 = vmatmul.mubr.bf16.gmra.mxu0 %v4343
    %v5053 = vpop.f32.mrf.mxu0
    %v5054 = vadd.f32 %v4209, %v5053
    %v5055 = vpop.f32.mrf.mxu0
    %v5056 = vadd.f32 %v4211, %v5055
    %v5057 = vpop.f32.mrf.mxu0
    %v5058 = vpop.f32.mrf.mxu0
    %5059 = vdwg.mxu0
    %5060 = vmatprep.subr.bf16.mxu0 %v4836
    %5061 = vmatpush1.bf16.msra.mxu0 %v4835
    %5062 = vmatprep.subr.bf16.mxu0 %v4832
    %5063 = vmatpush1.bf16.msra.mxu0 %v4831
    %5064 = vmatprep.subr.bf16.mxu0 %v4828
    %5065 = vmatpush1.bf16.msra.mxu0 %v4827
    %5066 = vmatprep.subr.bf16.mxu0 %v4824
    %5067 = vmatpush1.bf16.msra.mxu0 %v4823
    %5068 = vmatprep.subr.bf16.mxu0 %v4820
    %5069 = vmatpush1.bf16.msra.mxu0 %v4819
    %5070 = vmatprep.subr.bf16.mxu0 %v4816
    %5071 = vmatpush1.bf16.msra.mxu0 %v4815
    %5072 = vmatprep.subr.bf16.mxu0 %v4812
    %5073 = vmatpush1.bf16.msra.mxu0 %v4811
    %5074 = vmatprep.subr.bf16.mxu0 %v4808
    %5075 = vmatpush1.bf16.msra.mxu0 %v4807
    %5076 = vmatprep.subr.bf16.mxu0 %v4868
    %5077 = vmatpush2.bf16.msra.mxu0 %v4867
    %5078 = vmatprep.subr.bf16.mxu0 %v4864
    %5079 = vmatpush2.bf16.msra.mxu0 %v4863
    %5080 = vmatprep.subr.bf16.mxu0 %v4860
    %5081 = vmatpush2.bf16.msra.mxu0 %v4859
    %5082 = vmatprep.subr.bf16.mxu0 %v4856
    %5083 = vmatpush2.bf16.msra.mxu0 %v4855
    %5084 = vmatprep.subr.bf16.mxu0 %v4852
    %5085 = vmatpush2.bf16.msra.mxu0 %v4851
    %5086 = vmatprep.subr.bf16.mxu0 %v4848
    %5087 = vmatpush2.bf16.msra.mxu0 %v4847
    %5088 = vmatprep.subr.bf16.mxu0 %v4844
    %5089 = vmatpush2.bf16.msra.mxu0 %v4843
    %5090 = vmatprep.subr.bf16.mxu0 %v4840
    %5091 = vmatpush2.bf16.msra.mxu0 %v4839
    %5092 = vmatprep.mubr.bf16.mxu0 %v3340
    %5093 = vmatmul.mubr.bf16.gmra.mxu0 %v3339
    %v5094 = vpop.f32.mrf.mxu0
    %v5095 = vadd.f32 %v5034, %v5094
    %v5096 = vpop.f32.mrf.mxu0
    %v5097 = vadd.f32 %v5036, %v5096
    %v5098 = vpop.f32.mrf.mxu0
    %v5099 = vadd.f32 %v5038, %v5098
    %v5100 = vpop.f32.mrf.mxu0
    %v5101 = vadd.f32 %v5040, %v5100
    %5102 = vmatprep.mubr.bf16.mxu0 %v3344
    %5103 = vmatmul.mubr.bf16.gmra.mxu0 %v3343
    %v5104 = vpop.f32.mrf.mxu0
    %v5105 = vadd.f32 %v5044, %v5104
    %v5106 = vpop.f32.mrf.mxu0
    %v5107 = vadd.f32 %v5046, %v5106
    %v5108 = vpop.f32.mrf.mxu0
    %v5109 = vadd.f32 %v5048, %v5108
    %v5110 = vpop.f32.mrf.mxu0
    %v5111 = vadd.f32 %v5050, %v5110
    %5112 = vmatprep.mubr.bf16.mxu0 %v4346
    %5113 = vmatmul.mubr.bf16.gmra.mxu0 %v4345
    %v5114 = vpop.f32.mrf.mxu0
    %v5115 = vadd.f32 %v5054, %v5114
    %v5116 = vpop.f32.mrf.mxu0
    %v5117 = vadd.f32 %v5056, %v5116
    %v5118 = vpop.f32.mrf.mxu0
    %v5119 = vpop.f32.mrf.mxu0
    %5120 = vdwg.mxu0
    %5121 = vmatprep.subr.bf16.mxu0 %v4774
    %5122 = vmatpush1.bf16.msra.mxu0 %v4773
    %5123 = vmatprep.subr.bf16.mxu0 %v4770
    %5124 = vmatpush1.bf16.msra.mxu0 %v4769
    %5125 = vmatprep.subr.bf16.mxu0 %v4766
    %5126 = vmatpush1.bf16.msra.mxu0 %v4765
    %5127 = vmatprep.subr.bf16.mxu0 %v4762
    %5128 = vmatpush1.bf16.msra.mxu0 %v4761
    %5129 = vmatprep.subr.bf16.mxu0 %v4758
    %5130 = vmatpush1.bf16.msra.mxu0 %v4757
    %5131 = vmatprep.subr.bf16.mxu0 %v4754
    %5132 = vmatpush1.bf16.msra.mxu0 %v4753
    %5133 = vmatprep.subr.bf16.mxu0 %v4750
    %5134 = vmatpush1.bf16.msra.mxu0 %v4749
    %5135 = vmatprep.subr.bf16.mxu0 %v4746
    %5136 = vmatpush1.bf16.msra.mxu0 %v4745
    %5137 = vmatprep.subr.bf16.mxu0 %v4806
    %5138 = vmatpush2.bf16.msra.mxu0 %v4805
    %5139 = vmatprep.subr.bf16.mxu0 %v4802
    %5140 = vmatpush2.bf16.msra.mxu0 %v4801
    %5141 = vmatprep.subr.bf16.mxu0 %v4798
    %5142 = vmatpush2.bf16.msra.mxu0 %v4797
    %5143 = vmatprep.subr.bf16.mxu0 %v4794
    %5144 = vmatpush2.bf16.msra.mxu0 %v4793
    %5145 = vmatprep.subr.bf16.mxu0 %v4790
    %5146 = vmatpush2.bf16.msra.mxu0 %v4789
    %5147 = vmatprep.subr.bf16.mxu0 %v4786
    %5148 = vmatpush2.bf16.msra.mxu0 %v4785
    %5149 = vmatprep.subr.bf16.mxu0 %v4782
    %5150 = vmatpush2.bf16.msra.mxu0 %v4781
    %5151 = vmatprep.subr.bf16.mxu0 %v4778
    %5152 = vmatpush2.bf16.msra.mxu0 %v4777
    %5153 = vmatprep.mubr.bf16.mxu0 %v3338
    %5154 = vmatmul.mubr.bf16.gmra.mxu0 %v3337
    %v5155 = vpop.f32.mrf.mxu0
    %v5156 = vadd.f32 %v4311, %v5155
    %v5157 = vpop.f32.mrf.mxu0
    %v5158 = vadd.f32 %v4313, %v5157
    %v5159 = vpop.f32.mrf.mxu0
    %v5160 = vadd.f32 %v4315, %v5159
    %v5161 = vpop.f32.mrf.mxu0
    %v5162 = vadd.f32 %v4317, %v5161
    %5163 = vmatprep.mubr.bf16.mxu0 %v3342
    %5164 = vmatmul.mubr.bf16.gmra.mxu0 %v3341
    %v5165 = vpop.f32.mrf.mxu0
    %v5166 = vadd.f32 %v4321, %v5165
    %v5167 = vpop.f32.mrf.mxu0
    %v5168 = vadd.f32 %v4323, %v5167
    %v5169 = vpop.f32.mrf.mxu0
    %v5170 = vadd.f32 %v4325, %v5169
    %v5171 = vpop.f32.mrf.mxu0
    %v5172 = vadd.f32 %v4327, %v5171
    %5173 = vmatprep.mubr.bf16.mxu0 %v4344
    %5174 = vmatmul.mubr.bf16.gmra.mxu0 %v4343
    %v5175 = vpop.f32.mrf.mxu0
    %v5176 = vadd.f32 %v4331, %v5175
    %v5177 = vpop.f32.mrf.mxu0
    %v5178 = vadd.f32 %v4333, %v5177
    %v5179 = vpop.f32.mrf.mxu0
    %v5180 = vpop.f32.mrf.mxu0
    %5181 = vdwg.mxu0
    %5182 = vmatprep.subr.bf16.mxu0 %v4838
    %5183 = vmatpush1.bf16.msra.mxu0 %v4837
    %5184 = vmatprep.subr.bf16.mxu0 %v4834
    %5185 = vmatpush1.bf16.msra.mxu0 %v4833
    %5186 = vmatprep.subr.bf16.mxu0 %v4830
    %5187 = vmatpush1.bf16.msra.mxu0 %v4829
    %5188 = vmatprep.subr.bf16.mxu0 %v4826
    %5189 = vmatpush1.bf16.msra.mxu0 %v4825
    %5190 = vmatprep.subr.bf16.mxu0 %v4822
    %5191 = vmatpush1.bf16.msra.mxu0 %v4821
    %5192 = vmatprep.subr.bf16.mxu0 %v4818
    %5193 = vmatpush1.bf16.msra.mxu0 %v4817
    %5194 = vmatprep.subr.bf16.mxu0 %v4814
    %5195 = vmatpush1.bf16.msra.mxu0 %v4813
    %5196 = vmatprep.subr.bf16.mxu0 %v4810
    %5197 = vmatpush1.bf16.msra.mxu0 %v4809
    %5198 = vmatprep.subr.bf16.mxu0 %v4870
    %5199 = vmatpush2.bf16.msra.mxu0 %v4869
    %5200 = vmatprep.subr.bf16.mxu0 %v4866
    %5201 = vmatpush2.bf16.msra.mxu0 %v4865
    %5202 = vmatprep.subr.bf16.mxu0 %v4862
    %5203 = vmatpush2.bf16.msra.mxu0 %v4861
    %5204 = vmatprep.subr.bf16.mxu0 %v4858
    %5205 = vmatpush2.bf16.msra.mxu0 %v4857
    %5206 = vmatprep.subr.bf16.mxu0 %v4854
    %5207 = vmatpush2.bf16.msra.mxu0 %v4853
    %5208 = vmatprep.subr.bf16.mxu0 %v4850
    %5209 = vmatpush2.bf16.msra.mxu0 %v4849
    %5210 = vmatprep.subr.bf16.mxu0 %v4846
    %5211 = vmatpush2.bf16.msra.mxu0 %v4845
    %5212 = vmatprep.subr.bf16.mxu0 %v4842
    %5213 = vmatpush2.bf16.msra.mxu0 %v4841
    %5214 = vmatprep.mubr.bf16.mxu0 %v3340
    %5215 = vmatmul.mubr.bf16.gmra.mxu0 %v3339
    %v5216 = vpop.f32.mrf.mxu0
    %v5217 = vadd.f32 %v5156, %v5216
    %v5218 = vpop.f32.mrf.mxu0
    %v5219 = vadd.f32 %v5158, %v5218
    %v5220 = vpop.f32.mrf.mxu0
    %v5221 = vadd.f32 %v5160, %v5220
    %v5222 = vpop.f32.mrf.mxu0
    %v5223 = vadd.f32 %v5162, %v5222
    %5224 = vmatprep.mubr.bf16.mxu0 %v3344
    %5225 = vmatmul.mubr.bf16.gmra.mxu0 %v3343
    %v5226 = vpop.f32.mrf.mxu0
    %v5227 = vadd.f32 %v5166, %v5226
    %v5228 = vpop.f32.mrf.mxu0
    %v5229 = vadd.f32 %v5168, %v5228
    %v5230 = vpop.f32.mrf.mxu0
    %v5231 = vadd.f32 %v5170, %v5230
    %v5232 = vpop.f32.mrf.mxu0
    %v5233 = vadd.f32 %v5172, %v5232
    %5234 = vmatprep.mubr.bf16.mxu0 %v4346
    %5235 = vmatmul.mubr.bf16.gmra.mxu0 %v4345
    %v5236 = vpop.f32.mrf.mxu0
    %v5237 = vadd.f32 %v5176, %v5236
    %v5238 = vpop.f32.mrf.mxu0
    %v5239 = vadd.f32 %v5178, %v5238
    %v5240 = vpop.f32.mrf.mxu0
    %v5241 = vpop.f32.mrf.mxu0
    %5242 = vdwg.mxu0
    %v5243 = vld [vmem:[#allocation4] sm:$0xee]
    %v5244 = vld [vmem:[#allocation4 + $0x8] sm:$0xee]
    %s5245 = scalar_lea.vmem %s8, 2048
    %v5246 = vld [vmem:[%s5245] sm:$0xff]
    %v5247 = vld [vmem:[%s5245 + $0x8] sm:$0xff]
    %v5248 = vld [vmem:[%s5245 + $0x10] sm:$0xff]
    %v5249 = vld [vmem:[%s5245 + $0x18] sm:$0xff]
    %v5250 = vld [vmem:[%s5245 + $0x20] sm:$0xff]
    %v5251 = vld [vmem:[%s5245 + $0x28] sm:$0xff]
    %v5252 = vld [vmem:[%s5245 + $0x30] sm:$0xff]
    %v5253 = vld [vmem:[%s5245 + $0x38] sm:$0xff]
    %v5254 = vld [vmem:[%s5245 + $0x40] sm:$0xff]
    %v5255 = vld [vmem:[%s5245 + $0x48] sm:$0xff]
    %v5256 = vld [vmem:[%s5245 + $0x50] sm:$0xff]
    %v5257 = vld [vmem:[%s5245 + $0x58] sm:$0xff]
    %v5258 = vld [vmem:[%s5245 + $0x60] sm:$0xff]
    %v5259 = vld [vmem:[%s5245 + $0x68] sm:$0xff]
    %v5260 = vld [vmem:[%s5245 + $0x70] sm:$0xff]
    %v5261 = vld [vmem:[%s5245 + $0x78] sm:$0xff]
    %v5262 = vld [vmem:[%s5245 + $0x80] sm:$0xff]
    %v5263 = vld [vmem:[%s5245 + $0x88] sm:$0xff]
    %v5264 = vld [vmem:[%s5245 + $0x90] sm:$0xff]
    %v5265 = vld [vmem:[%s5245 + $0x98] sm:$0xff]
    %v5266 = vld [vmem:[%s5245 + $0xa0] sm:$0xff]
    %v5267 = vld [vmem:[%s5245 + $0xa8] sm:$0xff]
    %v5268 = vld [vmem:[%s5245 + $0xb0] sm:$0xff]
    %v5269 = vld [vmem:[%s5245 + $0xb8] sm:$0xff]
    %v5270 = vld [vmem:[%s5245 + $0xc0] sm:$0xff]
    %v5271 = vld [vmem:[%s5245 + $0xc8] sm:$0xff]
    %v5272 = vld [vmem:[%s5245 + $0xd0] sm:$0xff]
    %v5273 = vld [vmem:[%s5245 + $0xd8] sm:$0xff]
    %v5274 = vld [vmem:[%s5245 + $0xe0] sm:$0xff]
    %v5275 = vld [vmem:[%s5245 + $0xe8] sm:$0xff]
    %v5276 = vld [vmem:[%s5245 + $0xf0] sm:$0xff]
    %v5277 = vld [vmem:[%s5245 + $0xf8] sm:$0xff]
    %v5278 = vld [vmem:[%s5245 + $0x100] sm:$0xff]
    %v5279 = vld [vmem:[%s5245 + $0x108] sm:$0xff]
    %v5280 = vld [vmem:[%s5245 + $0x110] sm:$0xff]
    %v5281 = vld [vmem:[%s5245 + $0x118] sm:$0xff]
    %v5282 = vld [vmem:[%s5245 + $0x120] sm:$0xff]
    %v5283 = vld [vmem:[%s5245 + $0x128] sm:$0xff]
    %v5284 = vld [vmem:[%s5245 + $0x130] sm:$0xff]
    %v5285 = vld [vmem:[%s5245 + $0x138] sm:$0xff]
    %v5286 = vld [vmem:[%s5245 + $0x140] sm:$0xff]
    %v5287 = vld [vmem:[%s5245 + $0x148] sm:$0xff]
    %v5288 = vld [vmem:[%s5245 + $0x150] sm:$0xff]
    %v5289 = vld [vmem:[%s5245 + $0x158] sm:$0xff]
    %v5290 = vld [vmem:[%s5245 + $0x160] sm:$0xff]
    %v5291 = vld [vmem:[%s5245 + $0x168] sm:$0xff]
    %v5292 = vld [vmem:[%s5245 + $0x170] sm:$0xff]
    %v5293 = vld [vmem:[%s5245 + $0x178] sm:$0xff]
    %v5294 = vld [vmem:[%s5245 + $0x180] sm:$0xff]
    %v5295 = vld [vmem:[%s5245 + $0x188] sm:$0xff]
    %v5296 = vld [vmem:[%s5245 + $0x190] sm:$0xff]
    %v5297 = vld [vmem:[%s5245 + $0x198] sm:$0xff]
    %v5298 = vld [vmem:[%s5245 + $0x1a0] sm:$0xff]
    %v5299 = vld [vmem:[%s5245 + $0x1a8] sm:$0xff]
    %v5300 = vld [vmem:[%s5245 + $0x1b0] sm:$0xff]
    %v5301 = vld [vmem:[%s5245 + $0x1b8] sm:$0xff]
    %v5302 = vld [vmem:[%s5245 + $0x1c0] sm:$0xff]
    %v5303 = vld [vmem:[%s5245 + $0x1c8] sm:$0xff]
    %v5304 = vld [vmem:[%s5245 + $0x1d0] sm:$0xff]
    %v5305 = vld [vmem:[%s5245 + $0x1d8] sm:$0xff]
    %v5306 = vld [vmem:[%s5245 + $0x1e0] sm:$0xff]
    %v5307 = vld [vmem:[%s5245 + $0x1e8] sm:$0xff]
    %v5308 = vld [vmem:[%s5245 + $0x1f0] sm:$0xff]
    %v5309 = vld [vmem:[%s5245 + $0x1f8] sm:$0xff]
    %v5310 = vld [vmem:[%s5245 + $0x200] sm:$0xff]
    %v5311 = vld [vmem:[%s5245 + $0x208] sm:$0xff]
    %v5312 = vld [vmem:[%s5245 + $0x210] sm:$0xff]
    %v5313 = vld [vmem:[%s5245 + $0x218] sm:$0xff]
    %v5314 = vld [vmem:[%s5245 + $0x220] sm:$0xff]
    %v5315 = vld [vmem:[%s5245 + $0x228] sm:$0xff]
    %v5316 = vld [vmem:[%s5245 + $0x230] sm:$0xff]
    %v5317 = vld [vmem:[%s5245 + $0x238] sm:$0xff]
    %v5318 = vld [vmem:[%s5245 + $0x240] sm:$0xff]
    %v5319 = vld [vmem:[%s5245 + $0x248] sm:$0xff]
    %v5320 = vld [vmem:[%s5245 + $0x250] sm:$0xff]
    %v5321 = vld [vmem:[%s5245 + $0x258] sm:$0xff]
    %v5322 = vld [vmem:[%s5245 + $0x260] sm:$0xff]
    %v5323 = vld [vmem:[%s5245 + $0x268] sm:$0xff]
    %v5324 = vld [vmem:[%s5245 + $0x270] sm:$0xff]
    %v5325 = vld [vmem:[%s5245 + $0x278] sm:$0xff]
    %v5326 = vld [vmem:[%s5245 + $0x280] sm:$0xff]
    %v5327 = vld [vmem:[%s5245 + $0x288] sm:$0xff]
    %v5328 = vld [vmem:[%s5245 + $0x290] sm:$0xff]
    %v5329 = vld [vmem:[%s5245 + $0x298] sm:$0xff]
    %v5330 = vld [vmem:[%s5245 + $0x2a0] sm:$0xff]
    %v5331 = vld [vmem:[%s5245 + $0x2a8] sm:$0xff]
    %v5332 = vld [vmem:[%s5245 + $0x2b0] sm:$0xff]
    %v5333 = vld [vmem:[%s5245 + $0x2b8] sm:$0xff]
    %v5334 = vld [vmem:[%s5245 + $0x2c0] sm:$0xff]
    %v5335 = vld [vmem:[%s5245 + $0x2c8] sm:$0xff]
    %v5336 = vld [vmem:[%s5245 + $0x2d0] sm:$0xff]
    %v5337 = vld [vmem:[%s5245 + $0x2d8] sm:$0xff]
    %v5338 = vld [vmem:[%s5245 + $0x2e0] sm:$0xff]
    %v5339 = vld [vmem:[%s5245 + $0x2e8] sm:$0xff]
    %v5340 = vld [vmem:[%s5245 + $0x2f0] sm:$0xff]
    %v5341 = vld [vmem:[%s5245 + $0x2f8] sm:$0xff]
    %v5342 = vld [vmem:[%s5245 + $0x300] sm:$0xff]
    %v5343 = vld [vmem:[%s5245 + $0x308] sm:$0xff]
    %v5344 = vld [vmem:[%s5245 + $0x310] sm:$0xff]
    %v5345 = vld [vmem:[%s5245 + $0x318] sm:$0xff]
    %v5346 = vld [vmem:[%s5245 + $0x320] sm:$0xff]
    %v5347 = vld [vmem:[%s5245 + $0x328] sm:$0xff]
    %v5348 = vld [vmem:[%s5245 + $0x330] sm:$0xff]
    %v5349 = vld [vmem:[%s5245 + $0x338] sm:$0xff]
    %v5350 = vld [vmem:[%s5245 + $0x340] sm:$0xff]
    %v5351 = vld [vmem:[%s5245 + $0x348] sm:$0xff]
    %v5352 = vld [vmem:[%s5245 + $0x350] sm:$0xff]
    %v5353 = vld [vmem:[%s5245 + $0x358] sm:$0xff]
    %v5354 = vld [vmem:[%s5245 + $0x360] sm:$0xff]
    %v5355 = vld [vmem:[%s5245 + $0x368] sm:$0xff]
    %v5356 = vld [vmem:[%s5245 + $0x370] sm:$0xff]
    %v5357 = vld [vmem:[%s5245 + $0x378] sm:$0xff]
    %v5358 = vld [vmem:[%s5245 + $0x380] sm:$0xff]
    %v5359 = vld [vmem:[%s5245 + $0x388] sm:$0xff]
    %v5360 = vld [vmem:[%s5245 + $0x390] sm:$0xff]
    %v5361 = vld [vmem:[%s5245 + $0x398] sm:$0xff]
    %v5362 = vld [vmem:[%s5245 + $0x3a0] sm:$0xff]
    %v5363 = vld [vmem:[%s5245 + $0x3a8] sm:$0xff]
    %v5364 = vld [vmem:[%s5245 + $0x3b0] sm:$0xff]
    %v5365 = vld [vmem:[%s5245 + $0x3b8] sm:$0xff]
    %v5366 = vld [vmem:[%s5245 + $0x3c0] sm:$0xff]
    %v5367 = vld [vmem:[%s5245 + $0x3c8] sm:$0xff]
    %v5368 = vld [vmem:[%s5245 + $0x3d0] sm:$0xff]
    %v5369 = vld [vmem:[%s5245 + $0x3d8] sm:$0xff]
    %v5370 = vld [vmem:[%s5245 + $0x3e0] sm:$0xff]
    %v5371 = vld [vmem:[%s5245 + $0x3e8] sm:$0xff]
    %v5372 = vld [vmem:[%s5245 + $0x3f0] sm:$0xff]
    %v5373 = vld [vmem:[%s5245 + $0x3f8] sm:$0xff]
    %v5376 = vunpack.c.l.b16 %v5243
    %v5377 = vunpack.c.h.b16 %v5243
    %v5378 = vunpack.c.l.b16 %v5244
    %v5379 = vunpack.c.h.b16 %v5244
    %v5380 = vpack.c.b16 %v3321, %v5376
    %v5381 = vpack.c.b16 %v3322, %v5377
    %v5382 = vpack.c.b16 %v3323, %v5378
    %v5383 = vpack.c.b16 %v3324, %v5379
    %v5384 = vrot.slane %v5380, 1
    %v5385 = vrot.slane %v3341, 1
    %v5386 = vsel %vm475, %v5384, %v5385
    %v5387 = vrot.slane %v5381, 1
    %v5388 = vrot.slane %v3342, 1
    %v5389 = vsel %vm475, %v5387, %v5388
    %v5390 = vrot.slane %v5382, 1
    %v5391 = vrot.slane %v3343, 1
    %v5392 = vsel %vm475, %v5390, %v5391
    %v5393 = vrot.slane %v5383, 1
    %v5394 = vrot.slane %v3344, 1
    %v5395 = vsel %vm475, %v5393, %v5394
    %v5396 = vrot.slane %v3345, 1
    %v5397 = vsel %vm475, %v5385, %v5396
    %v5398 = vrot.slane %v3346, 1
    %v5399 = vsel %vm475, %v5388, %v5398
    %v5400 = vrot.slane %v3347, 1
    %v5401 = vsel %vm475, %v5391, %v5400
    %v5402 = vrot.slane %v3348, 1
    %v5403 = vsel %vm475, %v5394, %v5402
    %v5544 = vunpack.c.l.b16 %v5246
    %v5545 = vunpack.c.h.b16 %v5246
    %v5546 = vunpack.c.l.b16 %v5247
    %v5547 = vunpack.c.h.b16 %v5247
    %v5548 = vunpack.c.l.b16 %v5248
    %v5549 = vunpack.c.h.b16 %v5248
    %v5550 = vunpack.c.l.b16 %v5249
    %v5551 = vunpack.c.h.b16 %v5249
    %v5552 = vunpack.c.l.b16 %v5250
    %v5553 = vunpack.c.h.b16 %v5250
    %v5554 = vunpack.c.l.b16 %v5251
    %v5555 = vunpack.c.h.b16 %v5251
    %v5556 = vunpack.c.l.b16 %v5252
    %v5557 = vunpack.c.h.b16 %v5252
    %v5558 = vunpack.c.l.b16 %v5253
    %v5559 = vunpack.c.h.b16 %v5253
    %v5560 = vunpack.c.l.b16 %v5254
    %v5561 = vunpack.c.h.b16 %v5254
    %v5562 = vunpack.c.l.b16 %v5255
    %v5563 = vunpack.c.h.b16 %v5255
    %v5564 = vunpack.c.l.b16 %v5256
    %v5565 = vunpack.c.h.b16 %v5256
    %v5566 = vunpack.c.l.b16 %v5257
    %v5567 = vunpack.c.h.b16 %v5257
    %v5568 = vunpack.c.l.b16 %v5258
    %v5569 = vunpack.c.h.b16 %v5258
    %v5570 = vunpack.c.l.b16 %v5259
    %v5571 = vunpack.c.h.b16 %v5259
    %v5572 = vunpack.c.l.b16 %v5260
    %v5573 = vunpack.c.h.b16 %v5260
    %v5574 = vunpack.c.l.b16 %v5261
    %v5575 = vunpack.c.h.b16 %v5261
    %v5576 = vunpack.c.l.b16 %v5262
    %v5577 = vunpack.c.h.b16 %v5262
    %v5578 = vunpack.c.l.b16 %v5263
    %v5579 = vunpack.c.h.b16 %v5263
    %v5580 = vunpack.c.l.b16 %v5264
    %v5581 = vunpack.c.h.b16 %v5264
    %v5582 = vunpack.c.l.b16 %v5265
    %v5583 = vunpack.c.h.b16 %v5265
    %v5584 = vunpack.c.l.b16 %v5266
    %v5585 = vunpack.c.h.b16 %v5266
    %v5586 = vunpack.c.l.b16 %v5267
    %v5587 = vunpack.c.h.b16 %v5267
    %v5588 = vunpack.c.l.b16 %v5268
    %v5589 = vunpack.c.h.b16 %v5268
    %v5590 = vunpack.c.l.b16 %v5269
    %v5591 = vunpack.c.h.b16 %v5269
    %v5592 = vunpack.c.l.b16 %v5270
    %v5593 = vunpack.c.h.b16 %v5270
    %v5594 = vunpack.c.l.b16 %v5271
    %v5595 = vunpack.c.h.b16 %v5271
    %v5596 = vunpack.c.l.b16 %v5272
    %v5597 = vunpack.c.h.b16 %v5272
    %v5598 = vunpack.c.l.b16 %v5273
    %v5599 = vunpack.c.h.b16 %v5273
    %v5600 = vunpack.c.l.b16 %v5274
    %v5601 = vunpack.c.h.b16 %v5274
    %v5602 = vunpack.c.l.b16 %v5275
    %v5603 = vunpack.c.h.b16 %v5275
    %v5604 = vunpack.c.l.b16 %v5276
    %v5605 = vunpack.c.h.b16 %v5276
    %v5606 = vunpack.c.l.b16 %v5277
    %v5607 = vunpack.c.h.b16 %v5277
    %v5608 = vunpack.c.l.b16 %v5278
    %v5609 = vunpack.c.h.b16 %v5278
    %v5610 = vunpack.c.l.b16 %v5279
    %v5611 = vunpack.c.h.b16 %v5279
    %v5612 = vunpack.c.l.b16 %v5280
    %v5613 = vunpack.c.h.b16 %v5280
    %v5614 = vunpack.c.l.b16 %v5281
    %v5615 = vunpack.c.h.b16 %v5281
    %v5616 = vunpack.c.l.b16 %v5282
    %v5617 = vunpack.c.h.b16 %v5282
    %v5618 = vunpack.c.l.b16 %v5283
    %v5619 = vunpack.c.h.b16 %v5283
    %v5620 = vunpack.c.l.b16 %v5284
    %v5621 = vunpack.c.h.b16 %v5284
    %v5622 = vunpack.c.l.b16 %v5285
    %v5623 = vunpack.c.h.b16 %v5285
    %v5624 = vunpack.c.l.b16 %v5286
    %v5625 = vunpack.c.h.b16 %v5286
    %v5626 = vunpack.c.l.b16 %v5287
    %v5627 = vunpack.c.h.b16 %v5287
    %v5628 = vunpack.c.l.b16 %v5288
    %v5629 = vunpack.c.h.b16 %v5288
    %v5630 = vunpack.c.l.b16 %v5289
    %v5631 = vunpack.c.h.b16 %v5289
    %v5632 = vunpack.c.l.b16 %v5290
    %v5633 = vunpack.c.h.b16 %v5290
    %v5634 = vunpack.c.l.b16 %v5291
    %v5635 = vunpack.c.h.b16 %v5291
    %v5636 = vunpack.c.l.b16 %v5292
    %v5637 = vunpack.c.h.b16 %v5292
    %v5638 = vunpack.c.l.b16 %v5293
    %v5639 = vunpack.c.h.b16 %v5293
    %v5640 = vunpack.c.l.b16 %v5294
    %v5641 = vunpack.c.h.b16 %v5294
    %v5642 = vunpack.c.l.b16 %v5295
    %v5643 = vunpack.c.h.b16 %v5295
    %v5644 = vunpack.c.l.b16 %v5296
    %v5645 = vunpack.c.h.b16 %v5296
    %v5646 = vunpack.c.l.b16 %v5297
    %v5647 = vunpack.c.h.b16 %v5297
    %v5648 = vunpack.c.l.b16 %v5298
    %v5649 = vunpack.c.h.b16 %v5298
    %v5650 = vunpack.c.l.b16 %v5299
    %v5651 = vunpack.c.h.b16 %v5299
    %v5652 = vunpack.c.l.b16 %v5300
    %v5653 = vunpack.c.h.b16 %v5300
    %v5654 = vunpack.c.l.b16 %v5301
    %v5655 = vunpack.c.h.b16 %v5301
    %v5656 = vunpack.c.l.b16 %v5302
    %v5657 = vunpack.c.h.b16 %v5302
    %v5658 = vunpack.c.l.b16 %v5303
    %v5659 = vunpack.c.h.b16 %v5303
    %v5660 = vunpack.c.l.b16 %v5304
    %v5661 = vunpack.c.h.b16 %v5304
    %v5662 = vunpack.c.l.b16 %v5305
    %v5663 = vunpack.c.h.b16 %v5305
    %v5664 = vunpack.c.l.b16 %v5306
    %v5665 = vunpack.c.h.b16 %v5306
    %v5666 = vunpack.c.l.b16 %v5307
    %v5667 = vunpack.c.h.b16 %v5307
    %v5668 = vunpack.c.l.b16 %v5308
    %v5669 = vunpack.c.h.b16 %v5308
    %v5670 = vunpack.c.l.b16 %v5309
    %v5671 = vunpack.c.h.b16 %v5309
    %v5672 = vunpack.c.l.b16 %v5310
    %v5673 = vunpack.c.h.b16 %v5310
    %v5674 = vunpack.c.l.b16 %v5311
    %v5675 = vunpack.c.h.b16 %v5311
    %v5676 = vunpack.c.l.b16 %v5312
    %v5677 = vunpack.c.h.b16 %v5312
    %v5678 = vunpack.c.l.b16 %v5313
    %v5679 = vunpack.c.h.b16 %v5313
    %v5680 = vunpack.c.l.b16 %v5314
    %v5681 = vunpack.c.h.b16 %v5314
    %v5682 = vunpack.c.l.b16 %v5315
    %v5683 = vunpack.c.h.b16 %v5315
    %v5684 = vunpack.c.l.b16 %v5316
    %v5685 = vunpack.c.h.b16 %v5316
    %v5686 = vunpack.c.l.b16 %v5317
    %v5687 = vunpack.c.h.b16 %v5317
    %v5688 = vunpack.c.l.b16 %v5318
    %v5689 = vunpack.c.h.b16 %v5318
    %v5690 = vunpack.c.l.b16 %v5319
    %v5691 = vunpack.c.h.b16 %v5319
    %v5692 = vunpack.c.l.b16 %v5320
    %v5693 = vunpack.c.h.b16 %v5320
    %v5694 = vunpack.c.l.b16 %v5321
    %v5695 = vunpack.c.h.b16 %v5321
    %v5696 = vunpack.c.l.b16 %v5322
    %v5697 = vunpack.c.h.b16 %v5322
    %v5698 = vunpack.c.l.b16 %v5323
    %v5699 = vunpack.c.h.b16 %v5323
    %v5700 = vunpack.c.l.b16 %v5324
    %v5701 = vunpack.c.h.b16 %v5324
    %v5702 = vunpack.c.l.b16 %v5325
    %v5703 = vunpack.c.h.b16 %v5325
    %v5704 = vunpack.c.l.b16 %v5326
    %v5705 = vunpack.c.h.b16 %v5326
    %v5706 = vunpack.c.l.b16 %v5327
    %v5707 = vunpack.c.h.b16 %v5327
    %v5708 = vunpack.c.l.b16 %v5328
    %v5709 = vunpack.c.h.b16 %v5328
    %v5710 = vunpack.c.l.b16 %v5329
    %v5711 = vunpack.c.h.b16 %v5329
    %v5712 = vunpack.c.l.b16 %v5330
    %v5713 = vunpack.c.h.b16 %v5330
    %v5714 = vunpack.c.l.b16 %v5331
    %v5715 = vunpack.c.h.b16 %v5331
    %v5716 = vunpack.c.l.b16 %v5332
    %v5717 = vunpack.c.h.b16 %v5332
    %v5718 = vunpack.c.l.b16 %v5333
    %v5719 = vunpack.c.h.b16 %v5333
    %v5720 = vunpack.c.l.b16 %v5334
    %v5721 = vunpack.c.h.b16 %v5334
    %v5722 = vunpack.c.l.b16 %v5335
    %v5723 = vunpack.c.h.b16 %v5335
    %v5724 = vunpack.c.l.b16 %v5336
    %v5725 = vunpack.c.h.b16 %v5336
    %v5726 = vunpack.c.l.b16 %v5337
    %v5727 = vunpack.c.h.b16 %v5337
    %v5728 = vunpack.c.l.b16 %v5338
    %v5729 = vunpack.c.h.b16 %v5338
    %v5730 = vunpack.c.l.b16 %v5339
    %v5731 = vunpack.c.h.b16 %v5339
    %v5732 = vunpack.c.l.b16 %v5340
    %v5733 = vunpack.c.h.b16 %v5340
    %v5734 = vunpack.c.l.b16 %v5341
    %v5735 = vunpack.c.h.b16 %v5341
    %v5736 = vunpack.c.l.b16 %v5342
    %v5737 = vunpack.c.h.b16 %v5342
    %v5738 = vunpack.c.l.b16 %v5343
    %v5739 = vunpack.c.h.b16 %v5343
    %v5740 = vunpack.c.l.b16 %v5344
    %v5741 = vunpack.c.h.b16 %v5344
    %v5742 = vunpack.c.l.b16 %v5345
    %v5743 = vunpack.c.h.b16 %v5345
    %v5744 = vunpack.c.l.b16 %v5346
    %v5745 = vunpack.c.h.b16 %v5346
    %v5746 = vunpack.c.l.b16 %v5347
    %v5747 = vunpack.c.h.b16 %v5347
    %v5748 = vunpack.c.l.b16 %v5348
    %v5749 = vunpack.c.h.b16 %v5348
    %v5750 = vunpack.c.l.b16 %v5349
    %v5751 = vunpack.c.h.b16 %v5349
    %v5752 = vunpack.c.l.b16 %v5350
    %v5753 = vunpack.c.h.b16 %v5350
    %v5754 = vunpack.c.l.b16 %v5351
    %v5755 = vunpack.c.h.b16 %v5351
    %v5756 = vunpack.c.l.b16 %v5352
    %v5757 = vunpack.c.h.b16 %v5352
    %v5758 = vunpack.c.l.b16 %v5353
    %v5759 = vunpack.c.h.b16 %v5353
    %v5760 = vunpack.c.l.b16 %v5354
    %v5761 = vunpack.c.h.b16 %v5354
    %v5762 = vunpack.c.l.b16 %v5355
    %v5763 = vunpack.c.h.b16 %v5355
    %v5764 = vunpack.c.l.b16 %v5356
    %v5765 = vunpack.c.h.b16 %v5356
    %v5766 = vunpack.c.l.b16 %v5357
    %v5767 = vunpack.c.h.b16 %v5357
    %v5768 = vunpack.c.l.b16 %v5358
    %v5769 = vunpack.c.h.b16 %v5358
    %v5770 = vunpack.c.l.b16 %v5359
    %v5771 = vunpack.c.h.b16 %v5359
    %v5772 = vunpack.c.l.b16 %v5360
    %v5773 = vunpack.c.h.b16 %v5360
    %v5774 = vunpack.c.l.b16 %v5361
    %v5775 = vunpack.c.h.b16 %v5361
    %v5776 = vunpack.c.l.b16 %v5362
    %v5777 = vunpack.c.h.b16 %v5362
    %v5778 = vunpack.c.l.b16 %v5363
    %v5779 = vunpack.c.h.b16 %v5363
    %v5780 = vunpack.c.l.b16 %v5364
    %v5781 = vunpack.c.h.b16 %v5364
    %v5782 = vunpack.c.l.b16 %v5365
    %v5783 = vunpack.c.h.b16 %v5365
    %v5784 = vunpack.c.l.b16 %v5366
    %v5785 = vunpack.c.h.b16 %v5366
    %v5786 = vunpack.c.l.b16 %v5367
    %v5787 = vunpack.c.h.b16 %v5367
    %v5788 = vunpack.c.l.b16 %v5368
    %v5789 = vunpack.c.h.b16 %v5368
    %v5790 = vunpack.c.l.b16 %v5369
    %v5791 = vunpack.c.h.b16 %v5369
    %v5792 = vunpack.c.l.b16 %v5370
    %v5793 = vunpack.c.h.b16 %v5370
    %v5794 = vunpack.c.l.b16 %v5371
    %v5795 = vunpack.c.h.b16 %v5371
    %v5796 = vunpack.c.l.b16 %v5372
    %v5797 = vunpack.c.h.b16 %v5372
    %v5798 = vunpack.c.l.b16 %v5373
    %v5799 = vunpack.c.h.b16 %v5373
    %v5800 = vpack.c.b16 %v5548, %v5544
    %v5801 = vpack.c.b16 %v5549, %v5545
    %v5802 = vpack.c.b16 %v5550, %v5546
    %v5803 = vpack.c.b16 %v5551, %v5547
    %v5804 = vpack.c.b16 %v5556, %v5552
    %v5805 = vpack.c.b16 %v5557, %v5553
    %v5806 = vpack.c.b16 %v5558, %v5554
    %v5807 = vpack.c.b16 %v5559, %v5555
    %v5808 = vpack.c.b16 %v5564, %v5560
    %v5809 = vpack.c.b16 %v5565, %v5561
    %v5810 = vpack.c.b16 %v5566, %v5562
    %v5811 = vpack.c.b16 %v5567, %v5563
    %v5812 = vpack.c.b16 %v5572, %v5568
    %v5813 = vpack.c.b16 %v5573, %v5569
    %v5814 = vpack.c.b16 %v5574, %v5570
    %v5815 = vpack.c.b16 %v5575, %v5571
    %v5816 = vpack.c.b16 %v5580, %v5576
    %v5817 = vpack.c.b16 %v5581, %v5577
    %v5818 = vpack.c.b16 %v5582, %v5578
    %v5819 = vpack.c.b16 %v5583, %v5579
    %v5820 = vpack.c.b16 %v5588, %v5584
    %v5821 = vpack.c.b16 %v5589, %v5585
    %v5822 = vpack.c.b16 %v5590, %v5586
    %v5823 = vpack.c.b16 %v5591, %v5587
    %v5824 = vpack.c.b16 %v5596, %v5592
    %v5825 = vpack.c.b16 %v5597, %v5593
    %v5826 = vpack.c.b16 %v5598, %v5594
    %v5827 = vpack.c.b16 %v5599, %v5595
    %v5828 = vpack.c.b16 %v5604, %v5600
    %v5829 = vpack.c.b16 %v5605, %v5601
    %v5830 = vpack.c.b16 %v5606, %v5602
    %v5831 = vpack.c.b16 %v5607, %v5603
    %v5832 = vpack.c.b16 %v5612, %v5608
    %v5833 = vpack.c.b16 %v5613, %v5609
    %v5834 = vpack.c.b16 %v5614, %v5610
    %v5835 = vpack.c.b16 %v5615, %v5611
    %v5836 = vpack.c.b16 %v5620, %v5616
    %v5837 = vpack.c.b16 %v5621, %v5617
    %v5838 = vpack.c.b16 %v5622, %v5618
    %v5839 = vpack.c.b16 %v5623, %v5619
    %v5840 = vpack.c.b16 %v5628, %v5624
    %v5841 = vpack.c.b16 %v5629, %v5625
    %v5842 = vpack.c.b16 %v5630, %v5626
    %v5843 = vpack.c.b16 %v5631, %v5627
    %v5844 = vpack.c.b16 %v5636, %v5632
    %v5845 = vpack.c.b16 %v5637, %v5633
    %v5846 = vpack.c.b16 %v5638, %v5634
    %v5847 = vpack.c.b16 %v5639, %v5635
    %v5848 = vpack.c.b16 %v5644, %v5640
    %v5849 = vpack.c.b16 %v5645, %v5641
    %v5850 = vpack.c.b16 %v5646, %v5642
    %v5851 = vpack.c.b16 %v5647, %v5643
    %v5852 = vpack.c.b16 %v5652, %v5648
    %v5853 = vpack.c.b16 %v5653, %v5649
    %v5854 = vpack.c.b16 %v5654, %v5650
    %v5855 = vpack.c.b16 %v5655, %v5651
    %v5856 = vpack.c.b16 %v5660, %v5656
    %v5857 = vpack.c.b16 %v5661, %v5657
    %v5858 = vpack.c.b16 %v5662, %v5658
    %v5859 = vpack.c.b16 %v5663, %v5659
    %v5860 = vpack.c.b16 %v5668, %v5664
    %v5861 = vpack.c.b16 %v5669, %v5665
    %v5862 = vpack.c.b16 %v5670, %v5666
    %v5863 = vpack.c.b16 %v5671, %v5667
    %v5864 = vpack.c.b16 %v5676, %v5672
    %v5865 = vpack.c.b16 %v5677, %v5673
    %v5866 = vpack.c.b16 %v5678, %v5674
    %v5867 = vpack.c.b16 %v5679, %v5675
    %v5868 = vpack.c.b16 %v5684, %v5680
    %v5869 = vpack.c.b16 %v5685, %v5681
    %v5870 = vpack.c.b16 %v5686, %v5682
    %v5871 = vpack.c.b16 %v5687, %v5683
    %v5872 = vpack.c.b16 %v5692, %v5688
    %v5873 = vpack.c.b16 %v5693, %v5689
    %v5874 = vpack.c.b16 %v5694, %v5690
    %v5875 = vpack.c.b16 %v5695, %v5691
    %v5876 = vpack.c.b16 %v5700, %v5696
    %v5877 = vpack.c.b16 %v5701, %v5697
    %v5878 = vpack.c.b16 %v5702, %v5698
    %v5879 = vpack.c.b16 %v5703, %v5699
    %v5880 = vpack.c.b16 %v5708, %v5704
    %v5881 = vpack.c.b16 %v5709, %v5705
    %v5882 = vpack.c.b16 %v5710, %v5706
    %v5883 = vpack.c.b16 %v5711, %v5707
    %v5884 = vpack.c.b16 %v5716, %v5712
    %v5885 = vpack.c.b16 %v5717, %v5713
    %v5886 = vpack.c.b16 %v5718, %v5714
    %v5887 = vpack.c.b16 %v5719, %v5715
    %v5888 = vpack.c.b16 %v5724, %v5720
    %v5889 = vpack.c.b16 %v5725, %v5721
    %v5890 = vpack.c.b16 %v5726, %v5722
    %v5891 = vpack.c.b16 %v5727, %v5723
    %v5892 = vpack.c.b16 %v5732, %v5728
    %v5893 = vpack.c.b16 %v5733, %v5729
    %v5894 = vpack.c.b16 %v5734, %v5730
    %v5895 = vpack.c.b16 %v5735, %v5731
    %v5896 = vpack.c.b16 %v5740, %v5736
    %v5897 = vpack.c.b16 %v5741, %v5737
    %v5898 = vpack.c.b16 %v5742, %v5738
    %v5899 = vpack.c.b16 %v5743, %v5739
    %v5900 = vpack.c.b16 %v5748, %v5744
    %v5901 = vpack.c.b16 %v5749, %v5745
    %v5902 = vpack.c.b16 %v5750, %v5746
    %v5903 = vpack.c.b16 %v5751, %v5747
    %v5904 = vpack.c.b16 %v5756, %v5752
    %v5905 = vpack.c.b16 %v5757, %v5753
    %v5906 = vpack.c.b16 %v5758, %v5754
    %v5907 = vpack.c.b16 %v5759, %v5755
    %v5908 = vpack.c.b16 %v5764, %v5760
    %v5909 = vpack.c.b16 %v5765, %v5761
    %v5910 = vpack.c.b16 %v5766, %v5762
    %v5911 = vpack.c.b16 %v5767, %v5763
    %v5912 = vpack.c.b16 %v5772, %v5768
    %v5913 = vpack.c.b16 %v5773, %v5769
    %v5914 = vpack.c.b16 %v5774, %v5770
    %v5915 = vpack.c.b16 %v5775, %v5771
    %v5916 = vpack.c.b16 %v5780, %v5776
    %v5917 = vpack.c.b16 %v5781, %v5777
    %v5918 = vpack.c.b16 %v5782, %v5778
    %v5919 = vpack.c.b16 %v5783, %v5779
    %v5920 = vpack.c.b16 %v5788, %v5784
    %v5921 = vpack.c.b16 %v5789, %v5785
    %v5922 = vpack.c.b16 %v5790, %v5786
    %v5923 = vpack.c.b16 %v5791, %v5787
    %v5924 = vpack.c.b16 %v5796, %v5792
    %v5925 = vpack.c.b16 %v5797, %v5793
    %v5926 = vpack.c.b16 %v5798, %v5794
    %v5927 = vpack.c.b16 %v5799, %v5795
    %6056 = vmatprep.subr.bf16.mxu0 %v5829
    %6057 = vmatpush1.bf16.msra.mxu0 %v5828
    %6058 = vmatprep.subr.bf16.mxu0 %v5825
    %6059 = vmatpush1.bf16.msra.mxu0 %v5824
    %6060 = vmatprep.subr.bf16.mxu0 %v5821
    %6061 = vmatpush1.bf16.msra.mxu0 %v5820
    %6062 = vmatprep.subr.bf16.mxu0 %v5817
    %6063 = vmatpush1.bf16.msra.mxu0 %v5816
    %6064 = vmatprep.subr.bf16.mxu0 %v5813
    %6065 = vmatpush1.bf16.msra.mxu0 %v5812
    %6066 = vmatprep.subr.bf16.mxu0 %v5809
    %6067 = vmatpush1.bf16.msra.mxu0 %v5808
    %6068 = vmatprep.subr.bf16.mxu0 %v5805
    %6069 = vmatpush1.bf16.msra.mxu0 %v5804
    %6070 = vmatprep.subr.bf16.mxu0 %v5801
    %6071 = vmatpush1.bf16.msra.mxu0 %v5800
    %6072 = vmatprep.subr.bf16.mxu0 %v5861
    %6073 = vmatpush2.bf16.msra.mxu0 %v5860
    %6074 = vmatprep.subr.bf16.mxu0 %v5857
    %6075 = vmatpush2.bf16.msra.mxu0 %v5856
    %6076 = vmatprep.subr.bf16.mxu0 %v5853
    %6077 = vmatpush2.bf16.msra.mxu0 %v5852
    %6078 = vmatprep.subr.bf16.mxu0 %v5849
    %6079 = vmatpush2.bf16.msra.mxu0 %v5848
    %6080 = vmatprep.subr.bf16.mxu0 %v5845
    %6081 = vmatpush2.bf16.msra.mxu0 %v5844
    %6082 = vmatprep.subr.bf16.mxu0 %v5841
    %6083 = vmatpush2.bf16.msra.mxu0 %v5840
    %6084 = vmatprep.subr.bf16.mxu0 %v5837
    %6085 = vmatpush2.bf16.msra.mxu0 %v5836
    %6086 = vmatprep.subr.bf16.mxu0 %v5833
    %6087 = vmatpush2.bf16.msra.mxu0 %v5832
    %6088 = vmatprep.mubr.bf16.mxu0 %v5389
    %6089 = vmatmul.mubr.bf16.gmra.mxu0 %v5386
    %v6090 = vpop.f32.mrf.mxu0
    %v6091 = vadd.f32 0.0, %v6090
    %v6092 = vpop.f32.mrf.mxu0
    %v6093 = vadd.f32 0.0, %v6092
    %v6094 = vpop.f32.mrf.mxu0
    %v6095 = vadd.f32 0.0, %v6094
    %v6096 = vpop.f32.mrf.mxu0
    %v6097 = vadd.f32 0.0, %v6096
    %6098 = vmatprep.mubr.bf16.mxu0 %v5399
    %6099 = vmatmul.mubr.bf16.gmra.mxu0 %v5397
    %v6100 = vpop.f32.mrf.mxu0
    %v6101 = vadd.f32 0.0, %v6100
    %v6102 = vpop.f32.mrf.mxu0
    %v6103 = vadd.f32 0.0, %v6102
    %v6104 = vpop.f32.mrf.mxu0
    %v6105 = vadd.f32 0.0, %v6104
    %v6106 = vpop.f32.mrf.mxu0
    %v6107 = vadd.f32 0.0, %v6106
    %6108 = vmatprep.mubr.bf16.mxu0 %v5398
    %6109 = vmatmul.mubr.bf16.gmra.mxu0 %v5396
    %v6110 = vpop.f32.mrf.mxu0
    %v6111 = vadd.f32 0.0, %v6110
    %v6112 = vpop.f32.mrf.mxu0
    %v6113 = vadd.f32 0.0, %v6112
    %v6114 = vpop.f32.mrf.mxu0
    %v6115 = vpop.f32.mrf.mxu0
    %6116 = vdwg.mxu0
    %6117 = vmatprep.subr.bf16.mxu0 %v5893
    %6118 = vmatpush1.bf16.msra.mxu0 %v5892
    %6119 = vmatprep.subr.bf16.mxu0 %v5889
    %6120 = vmatpush1.bf16.msra.mxu0 %v5888
    %6121 = vmatprep.subr.bf16.mxu0 %v5885
    %6122 = vmatpush1.bf16.msra.mxu0 %v5884
    %6123 = vmatprep.subr.bf16.mxu0 %v5881
    %6124 = vmatpush1.bf16.msra.mxu0 %v5880
    %6125 = vmatprep.subr.bf16.mxu0 %v5877
    %6126 = vmatpush1.bf16.msra.mxu0 %v5876
    %6127 = vmatprep.subr.bf16.mxu0 %v5873
    %6128 = vmatpush1.bf16.msra.mxu0 %v5872
    %6129 = vmatprep.subr.bf16.mxu0 %v5869
    %6130 = vmatpush1.bf16.msra.mxu0 %v5868
    %6131 = vmatprep.subr.bf16.mxu0 %v5865
    %6132 = vmatpush1.bf16.msra.mxu0 %v5864
    %6133 = vmatprep.subr.bf16.mxu0 %v5925
    %6134 = vmatpush2.bf16.msra.mxu0 %v5924
    %6135 = vmatprep.subr.bf16.mxu0 %v5921
    %6136 = vmatpush2.bf16.msra.mxu0 %v5920
    %6137 = vmatprep.subr.bf16.mxu0 %v5917
    %6138 = vmatpush2.bf16.msra.mxu0 %v5916
    %6139 = vmatprep.subr.bf16.mxu0 %v5913
    %6140 = vmatpush2.bf16.msra.mxu0 %v5912
    %6141 = vmatprep.subr.bf16.mxu0 %v5909
    %6142 = vmatpush2.bf16.msra.mxu0 %v5908
    %6143 = vmatprep.subr.bf16.mxu0 %v5905
    %6144 = vmatpush2.bf16.msra.mxu0 %v5904
    %6145 = vmatprep.subr.bf16.mxu0 %v5901
    %6146 = vmatpush2.bf16.msra.mxu0 %v5900
    %6147 = vmatprep.subr.bf16.mxu0 %v5897
    %6148 = vmatpush2.bf16.msra.mxu0 %v5896
    %6149 = vmatprep.mubr.bf16.mxu0 %v5395
    %6150 = vmatmul.mubr.bf16.gmra.mxu0 %v5392
    %v6151 = vpop.f32.mrf.mxu0
    %v6152 = vadd.f32 %v6091, %v6151
    %v6153 = vpop.f32.mrf.mxu0
    %v6154 = vadd.f32 %v6093, %v6153
    %v6155 = vpop.f32.mrf.mxu0
    %v6156 = vadd.f32 %v6095, %v6155
    %v6157 = vpop.f32.mrf.mxu0
    %v6158 = vadd.f32 %v6097, %v6157
    %6159 = vmatprep.mubr.bf16.mxu0 %v5403
    %6160 = vmatmul.mubr.bf16.gmra.mxu0 %v5401
    %v6161 = vpop.f32.mrf.mxu0
    %v6162 = vadd.f32 %v6101, %v6161
    %v6163 = vpop.f32.mrf.mxu0
    %v6164 = vadd.f32 %v6103, %v6163
    %v6165 = vpop.f32.mrf.mxu0
    %v6166 = vadd.f32 %v6105, %v6165
    %v6167 = vpop.f32.mrf.mxu0
    %v6168 = vadd.f32 %v6107, %v6167
    %6169 = vmatprep.mubr.bf16.mxu0 %v5402
    %6170 = vmatmul.mubr.bf16.gmra.mxu0 %v5400
    %v6171 = vpop.f32.mrf.mxu0
    %v6172 = vadd.f32 %v6111, %v6171
    %v6173 = vpop.f32.mrf.mxu0
    %v6174 = vadd.f32 %v6113, %v6173
    %v6175 = vpop.f32.mrf.mxu0
    %v6176 = vpop.f32.mrf.mxu0
    %6177 = vdwg.mxu0
    %6178 = vmatprep.subr.bf16.mxu0 %v5831
    %6179 = vmatpush1.bf16.msra.mxu0 %v5830
    %6180 = vmatprep.subr.bf16.mxu0 %v5827
    %6181 = vmatpush1.bf16.msra.mxu0 %v5826
    %6182 = vmatprep.subr.bf16.mxu0 %v5823
    %6183 = vmatpush1.bf16.msra.mxu0 %v5822
    %6184 = vmatprep.subr.bf16.mxu0 %v5819
    %6185 = vmatpush1.bf16.msra.mxu0 %v5818
    %6186 = vmatprep.subr.bf16.mxu0 %v5815
    %6187 = vmatpush1.bf16.msra.mxu0 %v5814
    %6188 = vmatprep.subr.bf16.mxu0 %v5811
    %6189 = vmatpush1.bf16.msra.mxu0 %v5810
    %6190 = vmatprep.subr.bf16.mxu0 %v5807
    %6191 = vmatpush1.bf16.msra.mxu0 %v5806
    %6192 = vmatprep.subr.bf16.mxu0 %v5803
    %6193 = vmatpush1.bf16.msra.mxu0 %v5802
    %6194 = vmatprep.subr.bf16.mxu0 %v5863
    %6195 = vmatpush2.bf16.msra.mxu0 %v5862
    %6196 = vmatprep.subr.bf16.mxu0 %v5859
    %6197 = vmatpush2.bf16.msra.mxu0 %v5858
    %6198 = vmatprep.subr.bf16.mxu0 %v5855
    %6199 = vmatpush2.bf16.msra.mxu0 %v5854
    %6200 = vmatprep.subr.bf16.mxu0 %v5851
    %6201 = vmatpush2.bf16.msra.mxu0 %v5850
    %6202 = vmatprep.subr.bf16.mxu0 %v5847
    %6203 = vmatpush2.bf16.msra.mxu0 %v5846
    %6204 = vmatprep.subr.bf16.mxu0 %v5843
    %6205 = vmatpush2.bf16.msra.mxu0 %v5842
    %6206 = vmatprep.subr.bf16.mxu0 %v5839
    %6207 = vmatpush2.bf16.msra.mxu0 %v5838
    %6208 = vmatprep.subr.bf16.mxu0 %v5835
    %6209 = vmatpush2.bf16.msra.mxu0 %v5834
    %6210 = vmatprep.mubr.bf16.mxu0 %v5389
    %6211 = vmatmul.mubr.bf16.gmra.mxu0 %v5386
    %v6212 = vpop.f32.mrf.mxu0
    %v6213 = vadd.f32 0.0, %v6212
    %v6214 = vpop.f32.mrf.mxu0
    %v6215 = vadd.f32 0.0, %v6214
    %v6216 = vpop.f32.mrf.mxu0
    %v6217 = vadd.f32 0.0, %v6216
    %v6218 = vpop.f32.mrf.mxu0
    %v6219 = vadd.f32 0.0, %v6218
    %6220 = vmatprep.mubr.bf16.mxu0 %v5399
    %6221 = vmatmul.mubr.bf16.gmra.mxu0 %v5397
    %v6222 = vpop.f32.mrf.mxu0
    %v6223 = vadd.f32 0.0, %v6222
    %v6224 = vpop.f32.mrf.mxu0
    %v6225 = vadd.f32 0.0, %v6224
    %v6226 = vpop.f32.mrf.mxu0
    %v6227 = vadd.f32 0.0, %v6226
    %v6228 = vpop.f32.mrf.mxu0
    %v6229 = vadd.f32 0.0, %v6228
    %6230 = vmatprep.mubr.bf16.mxu0 %v5398
    %6231 = vmatmul.mubr.bf16.gmra.mxu0 %v5396
    %v6232 = vpop.f32.mrf.mxu0
    %v6233 = vadd.f32 0.0, %v6232
    %v6234 = vpop.f32.mrf.mxu0
    %v6235 = vadd.f32 0.0, %v6234
    %v6236 = vpop.f32.mrf.mxu0
    %v6237 = vpop.f32.mrf.mxu0
    %6238 = vdwg.mxu0
    %6239 = vmatprep.subr.bf16.mxu0 %v5895
    %6240 = vmatpush1.bf16.msra.mxu0 %v5894
    %6241 = vmatprep.subr.bf16.mxu0 %v5891
    %6242 = vmatpush1.bf16.msra.mxu0 %v5890
    %6243 = vmatprep.subr.bf16.mxu0 %v5887
    %6244 = vmatpush1.bf16.msra.mxu0 %v5886
    %6245 = vmatprep.subr.bf16.mxu0 %v5883
    %6246 = vmatpush1.bf16.msra.mxu0 %v5882
    %6247 = vmatprep.subr.bf16.mxu0 %v5879
    %6248 = vmatpush1.bf16.msra.mxu0 %v5878
    %6249 = vmatprep.subr.bf16.mxu0 %v5875
    %6250 = vmatpush1.bf16.msra.mxu0 %v5874
    %6251 = vmatprep.subr.bf16.mxu0 %v5871
    %6252 = vmatpush1.bf16.msra.mxu0 %v5870
    %6253 = vmatprep.subr.bf16.mxu0 %v5867
    %6254 = vmatpush1.bf16.msra.mxu0 %v5866
    %6255 = vmatprep.subr.bf16.mxu0 %v5927
    %6256 = vmatpush2.bf16.msra.mxu0 %v5926
    %6257 = vmatprep.subr.bf16.mxu0 %v5923
    %6258 = vmatpush2.bf16.msra.mxu0 %v5922
    %6259 = vmatprep.subr.bf16.mxu0 %v5919
    %6260 = vmatpush2.bf16.msra.mxu0 %v5918
    %6261 = vmatprep.subr.bf16.mxu0 %v5915
    %6262 = vmatpush2.bf16.msra.mxu0 %v5914
    %6263 = vmatprep.subr.bf16.mxu0 %v5911
    %6264 = vmatpush2.bf16.msra.mxu0 %v5910
    %6265 = vmatprep.subr.bf16.mxu0 %v5907
    %6266 = vmatpush2.bf16.msra.mxu0 %v5906
    %6267 = vmatprep.subr.bf16.mxu0 %v5903
    %6268 = vmatpush2.bf16.msra.mxu0 %v5902
    %6269 = vmatprep.subr.bf16.mxu0 %v5899
    %6270 = vmatpush2.bf16.msra.mxu0 %v5898
    %6271 = vmatprep.mubr.bf16.mxu0 %v5395
    %6272 = vmatmul.mubr.bf16.gmra.mxu0 %v5392
    %v6273 = vpop.f32.mrf.mxu0
    %v6274 = vadd.f32 %v6213, %v6273
    %v6275 = vpop.f32.mrf.mxu0
    %v6276 = vadd.f32 %v6215, %v6275
    %v6277 = vpop.f32.mrf.mxu0
    %v6278 = vadd.f32 %v6217, %v6277
    %v6279 = vpop.f32.mrf.mxu0
    %v6280 = vadd.f32 %v6219, %v6279
    %6281 = vmatprep.mubr.bf16.mxu0 %v5403
    %6282 = vmatmul.mubr.bf16.gmra.mxu0 %v5401
    %v6283 = vpop.f32.mrf.mxu0
    %v6284 = vadd.f32 %v6223, %v6283
    %v6285 = vpop.f32.mrf.mxu0
    %v6286 = vadd.f32 %v6225, %v6285
    %v6287 = vpop.f32.mrf.mxu0
    %v6288 = vadd.f32 %v6227, %v6287
    %v6289 = vpop.f32.mrf.mxu0
    %v6290 = vadd.f32 %v6229, %v6289
    %6291 = vmatprep.mubr.bf16.mxu0 %v5402
    %6292 = vmatmul.mubr.bf16.gmra.mxu0 %v5400
    %v6293 = vpop.f32.mrf.mxu0
    %v6294 = vadd.f32 %v6233, %v6293
    %v6295 = vpop.f32.mrf.mxu0
    %v6296 = vadd.f32 %v6235, %v6295
    %v6297 = vpop.f32.mrf.mxu0
    %v6298 = vpop.f32.mrf.mxu0
    %6299 = vdwg.mxu0
    %v6300 = vadd.f32 %v5095, %v6152
    %v6301 = vadd.f32 %v5097, %v6154
    %v6302 = vadd.f32 %v5217, %v6274
    %v6303 = vadd.f32 %v5219, %v6276
    %v6304 = vadd.f32 %v5099, %v6156
    %v6305 = vadd.f32 %v5101, %v6158
    %v6306 = vadd.f32 %v5221, %v6278
    %v6307 = vadd.f32 %v5223, %v6280
    %v6308 = vadd.f32 %v5105, %v6162
    %v6309 = vadd.f32 %v5107, %v6164
    %v6310 = vadd.f32 %v5227, %v6284
    %v6311 = vadd.f32 %v5229, %v6286
    %v6312 = vadd.f32 %v5109, %v6166
    %v6313 = vadd.f32 %v5111, %v6168
    %v6314 = vadd.f32 %v5231, %v6288
    %v6315 = vadd.f32 %v5233, %v6290
    %v6316 = vadd.f32 %v5115, %v6172
    %v6317 = vadd.f32 %v5117, %v6174
    %v6318 = vadd.f32 %v5237, %v6294
    %v6319 = vadd.f32 %v5239, %v6296
    %v6321 = vlaneseq
    %v6322 = vshrl.u32 %v6321, 7
    %v6323 = vsub.s32 0, %v6322
    %v6324 = vrot.slane %v3037, %v6323
    %v6325 = vlaneseq
    %v6326 = vshrl.u32 %v6325, 7
    %v6327 = vsub.s32 1, %v6326
    %v6328 = vrot.slane %v3037, %v6327
    %v6329 = vlaneseq
    %v6330 = vshrl.u32 %v6329, 7
    %v6331 = vsub.s32 2, %v6330
    %v6332 = vrot.slane %v3037, %v6331
    %v6333 = vlaneseq
    %v6334 = vshrl.u32 %v6333, 7
    %v6335 = vsub.s32 3, %v6334
    %v6336 = vrot.slane %v3037, %v6335
    %v6341 = vadd.f32 %v6300, %v6324
    %v6342 = vadd.f32 %v6301, %v6328
    %v6343 = vadd.f32 %v6302, %v6332
    %v6344 = vadd.f32 %v6303, %v6336
    %v6345 = vadd.f32 %v6304, %v6324
    %v6346 = vadd.f32 %v6305, %v6328
    %v6347 = vadd.f32 %v6306, %v6332
    %v6348 = vadd.f32 %v6307, %v6336
    %v6349 = vadd.f32 %v6308, %v6324
    %v6350 = vadd.f32 %v6309, %v6328
    %v6351 = vadd.f32 %v6310, %v6332
    %v6352 = vadd.f32 %v6311, %v6336
    %v6353 = vadd.f32 %v6312, %v6324
    %v6354 = vadd.f32 %v6313, %v6328
    %v6355 = vadd.f32 %v6314, %v6332
    %v6356 = vadd.f32 %v6315, %v6336
    %v6357 = vadd.f32 %v6316, %v6324
    %v6358 = vadd.f32 %v6317, %v6328
    %v6359 = vadd.f32 %v6318, %v6332
    %v6360 = vadd.f32 %v6319, %v6336
    %v6361 = vmax.f32 %v6341, 0.0
    %v6362 = vmax.f32 %v6342, 0.0
    %v6363 = vmax.f32 %v6343, 0.0
    %v6364 = vmax.f32 %v6344, 0.0
    %v6365 = vmax.f32 %v6345, 0.0
    %v6366 = vmax.f32 %v6346, 0.0
    %v6367 = vmax.f32 %v6347, 0.0
    %v6368 = vmax.f32 %v6348, 0.0
    %v6369 = vmax.f32 %v6349, 0.0
    %v6370 = vmax.f32 %v6350, 0.0
    %v6371 = vmax.f32 %v6351, 0.0
    %v6372 = vmax.f32 %v6352, 0.0
    %v6373 = vmax.f32 %v6353, 0.0
    %v6374 = vmax.f32 %v6354, 0.0
    %v6375 = vmax.f32 %v6355, 0.0
    %v6376 = vmax.f32 %v6356, 0.0
    %v6377 = vmax.f32 %v6357, 0.0
    %v6378 = vmax.f32 %v6358, 0.0
    %v6379 = vmax.f32 %v6359, 0.0
    %v6380 = vmax.f32 %v6360, 0.0
    %v6381 = vpack.c.bf16 %v6365, %v6361
    %v6382 = vpack.c.bf16 %v6366, %v6362
    %v6383 = vpack.c.bf16 %v6367, %v6363
    %v6384 = vpack.c.bf16 %v6368, %v6364
    %v6385 = vpack.c.bf16 %v6373, %v6369
    %v6386 = vpack.c.bf16 %v6374, %v6370
    %v6387 = vpack.c.bf16 %v6375, %v6371
    %v6388 = vpack.c.bf16 %v6376, %v6372
    %v6389 = vpack.c.bf16 %v6377, %v6377
    %v6390 = vpack.c.bf16 %v6378, %v6378
    %v6391 = vpack.c.bf16 %v6379, %v6379
    %v6392 = vpack.c.bf16 %v6380, %v6380
    %v6393 = vld [vmem:[%s10] sm:$0xf]
    %v6394 = vld [vmem:[%s10 + $0x4] sm:$0xf]
    %v6395 = vld [vmem:[%s10 + $0x8] sm:$0xf]
    %v6396 = vld [vmem:[%s10 + $0xc] sm:$0xf]
    %v6397 = vld [vmem:[%s10 + $0x10] sm:$0xf]
    %v6398 = vld [vmem:[%s10 + $0x14] sm:$0xf]
    %v6399 = vld [vmem:[%s10 + $0x18] sm:$0xf]
    %v6400 = vld [vmem:[%s10 + $0x1c] sm:$0xf]
    %v6401 = vld [vmem:[%s10 + $0x20] sm:$0xf]
    %v6402 = vld [vmem:[%s10 + $0x24] sm:$0xf]
    %v6403 = vld [vmem:[%s10 + $0x28] sm:$0xf]
    %v6404 = vld [vmem:[%s10 + $0x2c] sm:$0xf]
    %v6405 = vld [vmem:[%s10 + $0x30] sm:$0xf]
    %v6406 = vld [vmem:[%s10 + $0x34] sm:$0xf]
    %v6407 = vld [vmem:[%s10 + $0x38] sm:$0xf]
    %v6408 = vld [vmem:[%s10 + $0x3c] sm:$0xf]
    %v6409 = vld [vmem:[%s10 + $0x40] sm:$0xf]
    %v6410 = vld [vmem:[%s10 + $0x44] sm:$0xf]
    %v6411 = vld [vmem:[%s10 + $0x48] sm:$0xf]
    %v6412 = vld [vmem:[%s10 + $0x4c] sm:$0xf]
    %v6413 = vld [vmem:[%s10 + $0x50] sm:$0xf]
    %v6414 = vld [vmem:[%s10 + $0x54] sm:$0xf]
    %v6415 = vld [vmem:[%s10 + $0x58] sm:$0xf]
    %v6416 = vld [vmem:[%s10 + $0x5c] sm:$0xf]
    %v6417 = vld [vmem:[%s10 + $0x60] sm:$0xf]
    %v6418 = vld [vmem:[%s10 + $0x64] sm:$0xf]
    %v6419 = vld [vmem:[%s10 + $0x68] sm:$0xf]
    %v6420 = vld [vmem:[%s10 + $0x6c] sm:$0xf]
    %v6421 = vld [vmem:[%s10 + $0x70] sm:$0xf]
    %v6422 = vld [vmem:[%s10 + $0x74] sm:$0xf]
    %v6423 = vld [vmem:[%s10 + $0x78] sm:$0xf]
    %v6424 = vld [vmem:[%s10 + $0x7c] sm:$0xf]
    %v6425 = vld [vmem:[%s10 + $0x80] sm:$0xf]
    %v6426 = vld [vmem:[%s10 + $0x84] sm:$0xf]
    %v6427 = vld [vmem:[%s10 + $0x88] sm:$0xf]
    %v6428 = vld [vmem:[%s10 + $0x8c] sm:$0xf]
    %v6429 = vld [vmem:[%s10 + $0x90] sm:$0xf]
    %v6430 = vld [vmem:[%s10 + $0x94] sm:$0xf]
    %v6431 = vld [vmem:[%s10 + $0x98] sm:$0xf]
    %v6432 = vld [vmem:[%s10 + $0x9c] sm:$0xf]
    %v6433 = vld [vmem:[%s10 + $0xa0] sm:$0xf]
    %v6434 = vld [vmem:[%s10 + $0xa4] sm:$0xf]
    %v6435 = vld [vmem:[%s10 + $0xa8] sm:$0xf]
    %v6436 = vld [vmem:[%s10 + $0xac] sm:$0xf]
    %v6437 = vld [vmem:[%s10 + $0xb0] sm:$0xf]
    %v6438 = vld [vmem:[%s10 + $0xb4] sm:$0xf]
    %v6439 = vld [vmem:[%s10 + $0xb8] sm:$0xf]
    %v6440 = vld [vmem:[%s10 + $0xbc] sm:$0xf]
    %v6441 = vld [vmem:[%s10 + $0xc0] sm:$0xf]
    %v6442 = vld [vmem:[%s10 + $0xc4] sm:$0xf]
    %v6443 = vld [vmem:[%s10 + $0xc8] sm:$0xf]
    %v6444 = vld [vmem:[%s10 + $0xcc] sm:$0xf]
    %v6445 = vld [vmem:[%s10 + $0xd0] sm:$0xf]
    %v6446 = vld [vmem:[%s10 + $0xd4] sm:$0xf]
    %v6447 = vld [vmem:[%s10 + $0xd8] sm:$0xf]
    %v6448 = vld [vmem:[%s10 + $0xdc] sm:$0xf]
    %v6449 = vld [vmem:[%s10 + $0xe0] sm:$0xf]
    %v6450 = vld [vmem:[%s10 + $0xe4] sm:$0xf]
    %v6451 = vld [vmem:[%s10 + $0xe8] sm:$0xf]
    %v6452 = vld [vmem:[%s10 + $0xec] sm:$0xf]
    %v6453 = vld [vmem:[%s10 + $0xf0] sm:$0xf]
    %v6454 = vld [vmem:[%s10 + $0xf4] sm:$0xf]
    %v6455 = vld [vmem:[%s10 + $0xf8] sm:$0xf]
    %v6456 = vld [vmem:[%s10 + $0xfc] sm:$0xf]
    %v6457 = vld [vmem:[%s11] sm:$0x1]
    %v6459 = vlaneseq
    %v6460 = vshrl.u32 %v6459, 7
    %v6461 = vsub.s32 0, %v6460
    %v6462 = vrot.slane %v6457, %v6461
    %v6528 = vunpack.c.l.b16 %v6393
    %v6529 = vunpack.c.l.b16 %v6394
    %v6530 = vunpack.c.l.b16 %v6395
    %v6531 = vunpack.c.l.b16 %v6396
    %v6532 = vunpack.c.l.b16 %v6397
    %v6533 = vunpack.c.l.b16 %v6398
    %v6534 = vunpack.c.l.b16 %v6399
    %v6535 = vunpack.c.l.b16 %v6400
    %v6536 = vunpack.c.l.b16 %v6401
    %v6537 = vunpack.c.l.b16 %v6402
    %v6538 = vunpack.c.l.b16 %v6403
    %v6539 = vunpack.c.l.b16 %v6404
    %v6540 = vunpack.c.l.b16 %v6405
    %v6541 = vunpack.c.l.b16 %v6406
    %v6542 = vunpack.c.l.b16 %v6407
    %v6543 = vunpack.c.l.b16 %v6408
    %v6544 = vunpack.c.l.b16 %v6409
    %v6545 = vunpack.c.l.b16 %v6410
    %v6546 = vunpack.c.l.b16 %v6411
    %v6547 = vunpack.c.l.b16 %v6412
    %v6548 = vunpack.c.l.b16 %v6413
    %v6549 = vunpack.c.l.b16 %v6414
    %v6550 = vunpack.c.l.b16 %v6415
    %v6551 = vunpack.c.l.b16 %v6416
    %v6552 = vunpack.c.l.b16 %v6417
    %v6553 = vunpack.c.l.b16 %v6418
    %v6554 = vunpack.c.l.b16 %v6419
    %v6555 = vunpack.c.l.b16 %v6420
    %v6556 = vunpack.c.l.b16 %v6421
    %v6557 = vunpack.c.l.b16 %v6422
    %v6558 = vunpack.c.l.b16 %v6423
    %v6559 = vunpack.c.l.b16 %v6424
    %v6560 = vunpack.c.l.b16 %v6425
    %v6561 = vunpack.c.l.b16 %v6426
    %v6562 = vunpack.c.l.b16 %v6427
    %v6563 = vunpack.c.l.b16 %v6428
    %v6564 = vunpack.c.l.b16 %v6429
    %v6565 = vunpack.c.l.b16 %v6430
    %v6566 = vunpack.c.l.b16 %v6431
    %v6567 = vunpack.c.l.b16 %v6432
    %v6568 = vunpack.c.l.b16 %v6433
    %v6569 = vunpack.c.l.b16 %v6434
    %v6570 = vunpack.c.l.b16 %v6435
    %v6571 = vunpack.c.l.b16 %v6436
    %v6572 = vunpack.c.l.b16 %v6437
    %v6573 = vunpack.c.l.b16 %v6438
    %v6574 = vunpack.c.l.b16 %v6439
    %v6575 = vunpack.c.l.b16 %v6440
    %v6576 = vunpack.c.l.b16 %v6441
    %v6577 = vunpack.c.l.b16 %v6442
    %v6578 = vunpack.c.l.b16 %v6443
    %v6579 = vunpack.c.l.b16 %v6444
    %v6580 = vunpack.c.l.b16 %v6445
    %v6581 = vunpack.c.l.b16 %v6446
    %v6582 = vunpack.c.l.b16 %v6447
    %v6583 = vunpack.c.l.b16 %v6448
    %v6584 = vunpack.c.l.b16 %v6449
    %v6585 = vunpack.c.l.b16 %v6450
    %v6586 = vunpack.c.l.b16 %v6451
    %v6587 = vunpack.c.l.b16 %v6452
    %v6588 = vunpack.c.l.b16 %v6453
    %v6589 = vunpack.c.l.b16 %v6454
    %v6590 = vunpack.c.l.b16 %v6455
    %v6591 = vunpack.c.l.b16 %v6456
    %v6592 = vpack.c.b16 %v6529, %v6528
    %v6593 = vpack.c.b16 %v6531, %v6530
    %v6594 = vpack.c.b16 %v6533, %v6532
    %v6595 = vpack.c.b16 %v6535, %v6534
    %v6596 = vpack.c.b16 %v6537, %v6536
    %v6597 = vpack.c.b16 %v6539, %v6538
    %v6598 = vpack.c.b16 %v6541, %v6540
    %v6599 = vpack.c.b16 %v6543, %v6542
    %v6600 = vpack.c.b16 %v6545, %v6544
    %v6601 = vpack.c.b16 %v6547, %v6546
    %v6602 = vpack.c.b16 %v6549, %v6548
    %v6603 = vpack.c.b16 %v6551, %v6550
    %v6604 = vpack.c.b16 %v6553, %v6552
    %v6605 = vpack.c.b16 %v6555, %v6554
    %v6606 = vpack.c.b16 %v6557, %v6556
    %v6607 = vpack.c.b16 %v6559, %v6558
    %v6608 = vpack.c.b16 %v6561, %v6560
    %v6609 = vpack.c.b16 %v6563, %v6562
    %v6610 = vpack.c.b16 %v6565, %v6564
    %v6611 = vpack.c.b16 %v6567, %v6566
    %v6612 = vpack.c.b16 %v6569, %v6568
    %v6613 = vpack.c.b16 %v6571, %v6570
    %v6614 = vpack.c.b16 %v6573, %v6572
    %v6615 = vpack.c.b16 %v6575, %v6574
    %v6616 = vpack.c.b16 %v6577, %v6576
    %v6617 = vpack.c.b16 %v6579, %v6578
    %v6618 = vpack.c.b16 %v6581, %v6580
    %v6619 = vpack.c.b16 %v6583, %v6582
    %v6620 = vpack.c.b16 %v6585, %v6584
    %v6621 = vpack.c.b16 %v6587, %v6586
    %v6622 = vpack.c.b16 %v6589, %v6588
    %v6623 = vpack.c.b16 %v6591, %v6590
    %6656 = vmatprep.subr.bf16.mxu0 0
    %6657 = vmatpush1.bf16.msra.mxu0 %v6599
    %6658 = vmatprep.subr.bf16.mxu0 0
    %6659 = vmatpush1.bf16.msra.mxu0 %v6598
    %6660 = vmatprep.subr.bf16.mxu0 0
    %6661 = vmatpush1.bf16.msra.mxu0 %v6597
    %6662 = vmatprep.subr.bf16.mxu0 0
    %6663 = vmatpush1.bf16.msra.mxu0 %v6596
    %6664 = vmatprep.subr.bf16.mxu0 0
    %6665 = vmatpush1.bf16.msra.mxu0 %v6595
    %6666 = vmatprep.subr.bf16.mxu0 0
    %6667 = vmatpush1.bf16.msra.mxu0 %v6594
    %6668 = vmatprep.subr.bf16.mxu0 0
    %6669 = vmatpush1.bf16.msra.mxu0 %v6593
    %6670 = vmatprep.subr.bf16.mxu0 0
    %6671 = vmatpush1.bf16.msra.mxu0 %v6592
    %6672 = vmatprep.subr.bf16.mxu0 0
    %6673 = vmatpush2.bf16.msra.mxu0 %v6607
    %6674 = vmatprep.subr.bf16.mxu0 0
    %6675 = vmatpush2.bf16.msra.mxu0 %v6606
    %6676 = vmatprep.subr.bf16.mxu0 0
    %6677 = vmatpush2.bf16.msra.mxu0 %v6605
    %6678 = vmatprep.subr.bf16.mxu0 0
    %6679 = vmatpush2.bf16.msra.mxu0 %v6604
    %6680 = vmatprep.subr.bf16.mxu0 0
    %6681 = vmatpush2.bf16.msra.mxu0 %v6603
    %6682 = vmatprep.subr.bf16.mxu0 0
    %6683 = vmatpush2.bf16.msra.mxu0 %v6602
    %6684 = vmatprep.subr.bf16.mxu0 0
    %6685 = vmatpush2.bf16.msra.mxu0 %v6601
    %6686 = vmatprep.subr.bf16.mxu0 0
    %6687 = vmatpush2.bf16.msra.mxu0 %v6600
    %6688 = vmatprep.mubr.bf16.mxu0 %v6382
    %6689 = vmatmul.mubr.bf16.gmra.mxu0 %v6381
    %v6690 = vpop.f32.mrf.mxu0
    %v6691 = vadd.f32 %v6462, %v6690
    %v6692 = vpop.f32.mrf.mxu0
    %v6693 = vpop.f32.mrf.mxu0
    %v6694 = vadd.f32 %v6462, %v6693
    %v6695 = vpop.f32.mrf.mxu0
    %6696 = vmatprep.mubr.bf16.mxu0 %v6386
    %6697 = vmatmul.mubr.bf16.gmra.mxu0 %v6385
    %v6698 = vpop.f32.mrf.mxu0
    %v6699 = vadd.f32 %v6462, %v6698
    %v6700 = vpop.f32.mrf.mxu0
    %v6701 = vpop.f32.mrf.mxu0
    %v6702 = vadd.f32 %v6462, %v6701
    %v6703 = vpop.f32.mrf.mxu0
    %6704 = vmatprep.mubr.bf16.mxu0 %v6390
    %6705 = vmatmul.mubr.bf16.gmra.mxu0 %v6389
    %v6706 = vpop.f32.mrf.mxu0
    %v6707 = vadd.f32 %v6462, %v6706
    %v6708 = vpop.f32.mrf.mxu0
    %v6709 = vpop.f32.mrf.mxu0
    %v6710 = vpop.f32.mrf.mxu0
    %6711 = vdwg.mxu0
    %6712 = vmatprep.subr.bf16.mxu0 0
    %6713 = vmatpush1.bf16.msra.mxu0 %v6615
    %6714 = vmatprep.subr.bf16.mxu0 0
    %6715 = vmatpush1.bf16.msra.mxu0 %v6614
    %6716 = vmatprep.subr.bf16.mxu0 0
    %6717 = vmatpush1.bf16.msra.mxu0 %v6613
    %6718 = vmatprep.subr.bf16.mxu0 0
    %6719 = vmatpush1.bf16.msra.mxu0 %v6612
    %6720 = vmatprep.subr.bf16.mxu0 0
    %6721 = vmatpush1.bf16.msra.mxu0 %v6611
    %6722 = vmatprep.subr.bf16.mxu0 0
    %6723 = vmatpush1.bf16.msra.mxu0 %v6610
    %6724 = vmatprep.subr.bf16.mxu0 0
    %6725 = vmatpush1.bf16.msra.mxu0 %v6609
    %6726 = vmatprep.subr.bf16.mxu0 0
    %6727 = vmatpush1.bf16.msra.mxu0 %v6608
    %6728 = vmatprep.subr.bf16.mxu0 0
    %6729 = vmatpush2.bf16.msra.mxu0 %v6623
    %6730 = vmatprep.subr.bf16.mxu0 0
    %6731 = vmatpush2.bf16.msra.mxu0 %v6622
    %6732 = vmatprep.subr.bf16.mxu0 0
    %6733 = vmatpush2.bf16.msra.mxu0 %v6621
    %6734 = vmatprep.subr.bf16.mxu0 0
    %6735 = vmatpush2.bf16.msra.mxu0 %v6620
    %6736 = vmatprep.subr.bf16.mxu0 0
    %6737 = vmatpush2.bf16.msra.mxu0 %v6619
    %6738 = vmatprep.subr.bf16.mxu0 0
    %6739 = vmatpush2.bf16.msra.mxu0 %v6618
    %6740 = vmatprep.subr.bf16.mxu0 0
    %6741 = vmatpush2.bf16.msra.mxu0 %v6617
    %6742 = vmatprep.subr.bf16.mxu0 0
    %6743 = vmatpush2.bf16.msra.mxu0 %v6616
    %6744 = vmatprep.mubr.bf16.mxu0 %v6384
    %6745 = vmatmul.mubr.bf16.gmra.mxu0 %v6383
    %v6746 = vpop.f32.mrf.mxu0
    %v6747 = vadd.f32 %v6691, %v6746
    %v6748 = vpop.f32.mrf.mxu0
    %v6749 = vpop.f32.mrf.mxu0
    %v6750 = vadd.f32 %v6694, %v6749
    %v6751 = vpop.f32.mrf.mxu0
    %6752 = vmatprep.mubr.bf16.mxu0 %v6388
    %6753 = vmatmul.mubr.bf16.gmra.mxu0 %v6387
    %v6754 = vpop.f32.mrf.mxu0
    %v6755 = vadd.f32 %v6699, %v6754
    %v6756 = vpop.f32.mrf.mxu0
    %v6757 = vpop.f32.mrf.mxu0
    %v6758 = vadd.f32 %v6702, %v6757
    %v6759 = vpop.f32.mrf.mxu0
    %6760 = vmatprep.mubr.bf16.mxu0 %v6392
    %6761 = vmatmul.mubr.bf16.gmra.mxu0 %v6391
    %v6762 = vpop.f32.mrf.mxu0
    %v6763 = vadd.f32 %v6707, %v6762
    %v6764 = vpop.f32.mrf.mxu0
    %v6765 = vpop.f32.mrf.mxu0
    %v6766 = vpop.f32.mrf.mxu0
    %6767 = vdwg.mxu0
    %6768 = vst.msk [vmem:[%s12] sm:$0xff] %vm280, %v6747
    %6769 = vst.msk [vmem:[%s12 + $0x8] sm:$0xff] %vm280, %v6750
    %s6770 = scalar_lea.vmem %s12, 16
    %vm6771 = vcmask 523266
    %6772 = vst.msk [vmem:[%s6770 - $0x2] sm:$0xfc] %vm6771, %v6755
    %6773 = vst.msk [vmem:[%s6770 + $0x6] sm:$0xff] %vm280, %v6758
    %vm6774 = vcmask 517120
    %6775 = vst.msk [vmem:[%s6770 + $0xe] sm:$0x3] %vm6774, %v6763
    // Predicated region
    $region54: #{extractor_forward.1} parent=1 // pred_check
      _
    $region55: #{extractor_forward.1} parent=1 // pred_check_branch
      %6777 = sbr.rel (0) target = $region57
    $region56: #{extractor_forward.1} parent=1 // pred_region
      _
    $region57: #{extractor_forward.1} parent=1 // pred_fallthru
      _
    // Predicated region
    $region58: #{extractor_forward.1} parent=1 // pred_check
      _
    $region59: #{extractor_forward.1} parent=1 // pred_check_branch
      %6779 = sbr.rel (0) target = $region61
    $region60: #{extractor_forward.1} parent=1 // pred_region
      _
    $region61: #{extractor_forward.1} parent=1 // pred_fallthru
      _
    %6780 = vsyncpa [#allocation6], 1

</llo_original>
